<compile_context>
chip_gen: v6e
topology: v6e:2x2x1
jax: 0.10.0
libtpu: 0.0.40
codegen_flags: <defaults>
</compile_context>

<pallas_src>
import jax
import jax.numpy as jnp
from jax.experimental import pallas as pl
from jax.experimental.pallas import tpu as pltpu


def _lstm_kernel(len_ref, x_ref, wih_ref, whh_ref, bias_ref,
                 h_ref, c_ref, pre_ref):
    """Whole-sequence LSTM in one invocation.

    len_ref : (Bp, 1)    int32  sequence lengths (padded rows = 0)
    x_ref   : (D*Bp, E)  bf16   embedded tokens, time-major, batch-padded
    wih_ref : (E, 4H)    bf16   W_ih^T
    whh_ref : (H, 4H)    bf16   W_hh^T
    bias_ref: (1, 4H)    f32    b_ih + b_hh
    h_ref   : (Bp, H)    f32    final hidden state (output)
    c_ref   : (Bp, H)    f32    final cell state   (output)
    pre_ref : (D*Bp, 4H) f32    scratch: hoisted input-projection gates
    """
    Bp, H = h_ref.shape
    DB, _ = x_ref.shape
    D = DB // Bp

    # --- Hoisted input projection: one MXU matmul with a D*Bp-row LHS. ---
    pre_ref[...] = (
        jnp.dot(x_ref[...], wih_ref[...], preferred_element_type=jnp.float32)
        + bias_ref[...]
    )

    lens = len_ref[...]                           # (Bp, 1) int32, loaded once

    def step(t, carry):
        h_prev, c_prev = carry                    # (Bp, H) f32 each, in vregs

        row = pl.multiple_of(t * Bp, Bp)
        pre_t = pre_ref[pl.ds(row, Bp), :]        # (Bp, 4H) f32

        # Recurrent matmul: bf16 into the MXU, f32 accumulation.
        gates = pre_t + jnp.dot(
            h_prev.astype(jnp.bfloat16), whh_ref[...],
            preferred_element_type=jnp.float32)   # (Bp, 4H) f32

        i_g = jax.nn.sigmoid(gates[:, 0 * H:1 * H])
        f_g = jax.nn.sigmoid(gates[:, 1 * H:2 * H])
        g_g = jnp.tanh(gates[:, 2 * H:3 * H])
        o_g = jax.nn.sigmoid(gates[:, 3 * H:4 * H])

        c_new = f_g * c_prev + i_g * g_g
        h_new = o_g * jnp.tanh(c_new)

        # Only advance the state while t < len[b] (pack_padded_sequence).
        mask = t < lens                           # (Bp, 1) bool
        return (jnp.where(mask, h_new, h_prev),
                jnp.where(mask, c_new, c_prev))

    h0 = jnp.zeros((Bp, H), jnp.float32)
    c0 = jnp.zeros((Bp, H), jnp.float32)
    h_fin, c_fin = jax.lax.fori_loop(0, D, step, (h0, c0), unroll=True)

    h_ref[...] = h_fin
    c_ref[...] = c_fin


@jax.jit
def simple_encoder_lstm_forward(params, p_seq, p_len):
    """Mirrors Simple_Encoder_LSTM.forward.

    p_seq : (B, D) int32 token ids
    p_len : (B,)   int32 lengths (1 <= len <= D)
    returns (h, c), each (1, B, hidden_size) float32
    """
    emb_w = params["embedding"]        # (V, E), row 0 == 0 (padding_idx)
    w_ih = params["w_ih"]              # (4H, E)  PyTorch layout
    w_hh = params["w_hh"]              # (4H, H)
    b_ih = params["b_ih"]              # (4H,)
    b_hh = params["b_hh"]              # (4H,)

    B, D = p_seq.shape
    E = emb_w.shape[1]
    H = w_hh.shape[1]
    Bp = ((B + 7) // 8) * 8            # pad batch to sublane multiple

    # Glue (XLA): embedding gather + time-major transpose + batch pad.
    x = jnp.take(emb_w, p_seq, axis=0)                         # (B, D, E)
    x = jnp.transpose(x, (1, 0, 2))                            # (D, B, E)
    x = jnp.pad(x, ((0, 0), (0, Bp - B), (0, 0)))              # (D, Bp, E)
    x = x.reshape(D * Bp, E).astype(jnp.bfloat16)              # (D*Bp, E)

    wih_t = jnp.transpose(w_ih).astype(jnp.bfloat16)           # (E, 4H)
    whh_t = jnp.transpose(w_hh).astype(jnp.bfloat16)           # (H, 4H)
    bias = (b_ih + b_hh).reshape(1, 4 * H).astype(jnp.float32)
    lens = jnp.pad(p_len.astype(jnp.int32), (0, Bp - B)).reshape(Bp, 1)

    vmem = pl.BlockSpec(memory_space=pltpu.MemorySpace.VMEM)
    h, c = pl.pallas_call(
        _lstm_kernel,
        out_shape=(
            jax.ShapeDtypeStruct((Bp, H), jnp.float32),
            jax.ShapeDtypeStruct((Bp, H), jnp.float32),
        ),
        in_specs=[vmem, vmem, vmem, vmem, vmem],
        out_specs=(vmem, vmem),
        scratch_shapes=[pltpu.VMEM((D * Bp, 4 * H), jnp.float32)],
    )(lens, x, wih_t, whh_t, bias)

    # PyTorch returns (num_layers=1, B, H); drop batch padding.
    return h[:B][None], c[:B][None]


def _reference_forward(params, p_seq, p_len):
    """Pure-JAX f32 reference (lax.scan) for correctness checking."""
    emb_w = params["embedding"]
    w_ih, w_hh = params["w_ih"], params["w_hh"]
    b = params["b_ih"] + params["b_hh"]
    B, D = p_seq.shape
    H = w_hh.shape[1]
    x = jnp.transpose(jnp.take(emb_w, p_seq, axis=0), (1, 0, 2))  # (D, B, E)

    def step(carry, inp):
        h, c = carry
        x_t, t = inp
        gates = x_t @ w_ih.T + h @ w_hh.T + b
        i_g = jax.nn.sigmoid(gates[:, 0 * H:1 * H])
        f_g = jax.nn.sigmoid(gates[:, 1 * H:2 * H])
        g_g = jnp.tanh(gates[:, 2 * H:3 * H])
        o_g = jax.nn.sigmoid(gates[:, 3 * H:4 * H])
        c_new = f_g * c + i_g * g_g
        h_new = o_g * jnp.tanh(c_new)
        mask = (t < p_len)[:, None]
        return (jnp.where(mask, h_new, h), jnp.where(mask, c_new, c)), None

    h0 = jnp.zeros((B, H), jnp.float32)
    c0 = jnp.zeros((B, H), jnp.float32)
    (h, c), _ = jax.lax.scan(step, (h0, c0), (x, jnp.arange(D)))
    return h[None], c[None]


def init_params(key, vocab_size, embd_dim=256, hidden_size=256):
    k1, k2, k3, k4, k5 = jax.random.split(key, 5)
    emb = jax.random.normal(k1, (vocab_size, embd_dim), jnp.float32)
    emb = emb.at[0].set(0.0)  # padding_idx = 0
    bound = 1.0 / (hidden_size ** 0.5)
    u = lambda k, s: jax.random.uniform(k, s, jnp.float32, -bound, bound)
    return {
        "embedding": emb,
        "w_ih": u(k2, (4 * hidden_size, embd_dim)),
        "w_hh": u(k3, (4 * hidden_size, hidden_size)),
        "b_ih": u(k4, (4 * hidden_size,)),
        "b_hh": u(k5, (4 * hidden_size,)),
    }


if __name__ == "__main__":
    VOCAB, B, D = 50, 4, 8  # small shapes; embd/hidden fixed at 256 by the module

    key = jax.random.PRNGKey(0)
    kp, ks, kl = jax.random.split(key, 3)

    params = init_params(kp, VOCAB)

    p_len = jax.random.randint(kl, (B,), 1, D + 1).astype(jnp.int32)
    p_seq = jax.random.randint(ks, (B, D), 1, VOCAB).astype(jnp.int32)
    # zero-pad past each sequence's length (like real padded batches)
    pad_mask = jnp.arange(D)[None, :] < p_len[:, None]
    p_seq = jnp.where(pad_mask, p_seq, 0)

    h, c = simple_encoder_lstm_forward(params, p_seq, p_len)
    jax.block_until_ready((h, c))

    h_ref, c_ref = _reference_forward(params, p_seq, p_len)
    assert h.shape == (1, B, 256) and c.shape == (1, B, 256)
    # bf16 MXU inputs vs f32 reference: use a looser tolerance (recurrence
    # compounds rounding over T); state/gate math and accumulation stay f32.
    assert jnp.allclose(h, h_ref, atol=5e-2, rtol=5e-2)
    assert jnp.allclose(c, c_ref, atol=5e-2, rtol=5e-2)

    print("KERNEL_OK")
</pallas_src>

<mosaic_0001>
module attributes {stable_mosaic.version = 11 : i64} {
  func.func @_lstm_kernel(%arg0: memref<8x1xi32, #tpu.memory_space<vmem>>, %arg1: memref<64x256xbf16, #tpu.memory_space<vmem>>, %arg2: memref<256x1024xbf16, #tpu.memory_space<vmem>>, %arg3: memref<256x1024xbf16, #tpu.memory_space<vmem>>, %arg4: memref<1x1024xf32, #tpu.memory_space<vmem>>, %arg5: memref<8x256xf32, #tpu.memory_space<vmem>>, %arg6: memref<8x256xf32, #tpu.memory_space<vmem>>, %arg7: memref<64x1024xf32, #tpu.memory_space<vmem>>) attributes {dimension_semantics = [], scalar_prefetch = 0 : i64, scratch_operands = 1 : i64, tpu.core_type = #tpu.core_type<tc>} {
    %c0 = arith.constant 0 : index
    %c0_0 = arith.constant 0 : index
    %0 = vector.load %arg1[%c0, %c0_0] : memref<64x256xbf16, #tpu.memory_space<vmem>>, vector<64x256xbf16>
    %c0_1 = arith.constant 0 : index
    %c0_2 = arith.constant 0 : index
    %1 = vector.load %arg2[%c0_1, %c0_2] : memref<256x1024xbf16, #tpu.memory_space<vmem>>, vector<256x1024xbf16>
    %cst = arith.constant dense<0.000000e+00> : vector<64x1024xf32>
    %2 = tpu.matmul %0, %1, %cst {dimension_numbers = #tpu.dot_dimension_numbers<[1], [0], [0], [1], [0, 0, 1, 1], [], []>} : vector<64x256xbf16>, vector<256x1024xbf16>, vector<64x1024xf32> -> vector<64x1024xf32>
    %c0_3 = arith.constant 0 : index
    %c0_4 = arith.constant 0 : index
    %3 = vector.load %arg4[%c0_3, %c0_4] : memref<1x1024xf32, #tpu.memory_space<vmem>>, vector<1x1024xf32>
    %4 = vector.broadcast %3 : vector<1x1024xf32> to vector<64x1024xf32>
    %5 = arith.addf %2, %4 : vector<64x1024xf32>
    %c0_5 = arith.constant 0 : index
    %c0_6 = arith.constant 0 : index
    %6 = vector.load %arg7[%c0_5, %c0_6] : memref<64x1024xf32, #tpu.memory_space<vmem>>, vector<64x1024xf32>
    tpu.vector_store %arg7[%c0_5, %c0_6], %5 {strides = array<i32>} : memref<64x1024xf32, #tpu.memory_space<vmem>>, vector<64x1024xf32>,
    %c0_7 = arith.constant 0 : index
    %c0_8 = arith.constant 0 : index
    %7 = vector.load %arg0[%c0_7, %c0_8] : memref<8x1xi32, #tpu.memory_space<vmem>>, vector<8x1xi32>
    %cst_9 = arith.constant 0.000000e+00 : f32
    %8 = vector.broadcast %cst_9 : f32 to vector<8x256xf32>
    %cst_10 = arith.constant 0.000000e+00 : f32
    %9 = vector.broadcast %cst_10 : f32 to vector<8x256xf32>
    %c0_i32 = arith.constant 0 : i32
    %c8_i32 = arith.constant 8 : i32
    %10 = arith.muli %c0_i32, %c8_i32 : i32
    %11 = tpu.assume_multiple %10, 8 : i32
    %12 = arith.index_cast %11 : i32 to index
    %c0_11 = arith.constant 0 : index
    %13 = vector.load %arg7[%12, %c0_11] : memref<64x1024xf32, #tpu.memory_space<vmem>>, vector<8x1024xf32>
    %14 = arith.truncf %8 : vector<8x256xf32> to vector<8x256xbf16>
    %c0_12 = arith.constant 0 : index
    %c0_13 = arith.constant 0 : index
    %15 = vector.load %arg3[%c0_12, %c0_13] : memref<256x1024xbf16, #tpu.memory_space<vmem>>, vector<256x1024xbf16>
    %cst_14 = arith.constant dense<0.000000e+00> : vector<8x1024xf32>
    %16 = tpu.matmul %14, %15, %cst_14 {dimension_numbers = #tpu.dot_dimension_numbers<[1], [0], [0], [1], [0, 0, 1, 1], [], []>} : vector<8x256xbf16>, vector<256x1024xbf16>, vector<8x1024xf32> -> vector<8x1024xf32>
    %17 = arith.addf %13, %16 : vector<8x1024xf32>
    %18 = vector.extract_strided_slice %17 {offsets = [0, 0], sizes = [8, 256], strides = [1, 1]} : vector<8x1024xf32> to vector<8x256xf32>
    %19 = arith.negf %18 : vector<8x256xf32>
    %20 = math.exp %19 : vector<8x256xf32>
    %cst_15 = arith.constant 1.000000e+00 : f32
    %21 = vector.broadcast %cst_15 : f32 to vector<8x256xf32>
    %22 = arith.addf %21, %20 : vector<8x256xf32>
    %23 = arith.divf %21, %22 : vector<8x256xf32>
    %24 = vector.extract_strided_slice %17 {offsets = [0, 256], sizes = [8, 256], strides = [1, 1]} : vector<8x1024xf32> to vector<8x256xf32>
    %25 = arith.negf %24 : vector<8x256xf32>
    %26 = math.exp %25 : vector<8x256xf32>
    %cst_16 = arith.constant 1.000000e+00 : f32
    %27 = vector.broadcast %cst_16 : f32 to vector<8x256xf32>
    %28 = arith.addf %27, %26 : vector<8x256xf32>
    %29 = arith.divf %27, %28 : vector<8x256xf32>
    %30 = vector.extract_strided_slice %17 {offsets = [0, 512], sizes = [8, 256], strides = [1, 1]} : vector<8x1024xf32> to vector<8x256xf32>
    %31 = math.tanh %30 : vector<8x256xf32>
    %32 = vector.extract_strided_slice %17 {offsets = [0, 768], sizes = [8, 256], strides = [1, 1]} : vector<8x1024xf32> to vector<8x256xf32>
    %33 = arith.negf %32 : vector<8x256xf32>
    %34 = math.exp %33 : vector<8x256xf32>
    %cst_17 = arith.constant 1.000000e+00 : f32
    %35 = vector.broadcast %cst_17 : f32 to vector<8x256xf32>
    %36 = arith.addf %35, %34 : vector<8x256xf32>
    %37 = arith.divf %35, %36 : vector<8x256xf32>
    %38 = arith.mulf %29, %9 : vector<8x256xf32>
    %39 = arith.mulf %23, %31 : vector<8x256xf32>
    %40 = arith.addf %38, %39 : vector<8x256xf32>
    %41 = math.tanh %40 : vector<8x256xf32>
    %42 = arith.mulf %37, %41 : vector<8x256xf32>
    %43 = vector.broadcast %c0_i32 : i32 to vector<8x1xi32>
    %44 = arith.cmpi slt, %43, %7 : vector<8x1xi32>
    %45 = vector.shape_cast %44 : vector<8x1xi1> to vector<8x1xi1>
    %46 = vector.broadcast %45 : vector<8x1xi1> to vector<8x256xi1>
    %47 = arith.select %46, %42, %8 : vector<8x256xi1>, vector<8x256xf32>
    %48 = vector.shape_cast %44 : vector<8x1xi1> to vector<8x1xi1>
    %49 = vector.broadcast %48 : vector<8x1xi1> to vector<8x256xi1>
    %50 = arith.select %49, %40, %9 : vector<8x256xi1>, vector<8x256xf32>
    %c1_i32 = arith.constant 1 : i32
    %c8_i32_18 = arith.constant 8 : i32
    %51 = arith.muli %c1_i32, %c8_i32_18 : i32
    %52 = tpu.assume_multiple %51, 8 : i32
    %53 = arith.index_cast %52 : i32 to index
    %c0_19 = arith.constant 0 : index
    %54 = vector.load %arg7[%53, %c0_19] : memref<64x1024xf32, #tpu.memory_space<vmem>>, vector<8x1024xf32>
    %55 = arith.truncf %47 : vector<8x256xf32> to vector<8x256xbf16>
    %c0_20 = arith.constant 0 : index
    %c0_21 = arith.constant 0 : index
    %56 = vector.load %arg3[%c0_20, %c0_21] : memref<256x1024xbf16, #tpu.memory_space<vmem>>, vector<256x1024xbf16>
    %cst_22 = arith.constant dense<0.000000e+00> : vector<8x1024xf32>
    %57 = tpu.matmul %55, %56, %cst_22 {dimension_numbers = #tpu.dot_dimension_numbers<[1], [0], [0], [1], [0, 0, 1, 1], [], []>} : vector<8x256xbf16>, vector<256x1024xbf16>, vector<8x1024xf32> -> vector<8x1024xf32>
    %58 = arith.addf %54, %57 : vector<8x1024xf32>
    %59 = vector.extract_strided_slice %58 {offsets = [0, 0], sizes = [8, 256], strides = [1, 1]} : vector<8x1024xf32> to vector<8x256xf32>
    %60 = arith.negf %59 : vector<8x256xf32>
    %61 = math.exp %60 : vector<8x256xf32>
    %cst_23 = arith.constant 1.000000e+00 : f32
    %62 = vector.broadcast %cst_23 : f32 to vector<8x256xf32>
    %63 = arith.addf %62, %61 : vector<8x256xf32>
    %64 = arith.divf %62, %63 : vector<8x256xf32>
    %65 = vector.extract_strided_slice %58 {offsets = [0, 256], sizes = [8, 256], strides = [1, 1]} : vector<8x1024xf32> to vector<8x256xf32>
    %66 = arith.negf %65 : vector<8x256xf32>
    %67 = math.exp %66 : vector<8x256xf32>
    %cst_24 = arith.constant 1.000000e+00 : f32
    %68 = vector.broadcast %cst_24 : f32 to vector<8x256xf32>
    %69 = arith.addf %68, %67 : vector<8x256xf32>
    %70 = arith.divf %68, %69 : vector<8x256xf32>
    %71 = vector.extract_strided_slice %58 {offsets = [0, 512], sizes = [8, 256], strides = [1, 1]} : vector<8x1024xf32> to vector<8x256xf32>
    %72 = math.tanh %71 : vector<8x256xf32>
    %73 = vector.extract_strided_slice %58 {offsets = [0, 768], sizes = [8, 256], strides = [1, 1]} : vector<8x1024xf32> to vector<8x256xf32>
    %74 = arith.negf %73 : vector<8x256xf32>
    %75 = math.exp %74 : vector<8x256xf32>
    %cst_25 = arith.constant 1.000000e+00 : f32
    %76 = vector.broadcast %cst_25 : f32 to vector<8x256xf32>
    %77 = arith.addf %76, %75 : vector<8x256xf32>
    %78 = arith.divf %76, %77 : vector<8x256xf32>
    %79 = arith.mulf %70, %50 : vector<8x256xf32>
    %80 = arith.mulf %64, %72 : vector<8x256xf32>
    %81 = arith.addf %79, %80 : vector<8x256xf32>
    %82 = math.tanh %81 : vector<8x256xf32>
    %83 = arith.mulf %78, %82 : vector<8x256xf32>
    %84 = vector.broadcast %c1_i32 : i32 to vector<8x1xi32>
    %85 = arith.cmpi slt, %84, %7 : vector<8x1xi32>
    %86 = vector.shape_cast %85 : vector<8x1xi1> to vector<8x1xi1>
    %87 = vector.broadcast %86 : vector<8x1xi1> to vector<8x256xi1>
    %88 = arith.select %87, %83, %47 : vector<8x256xi1>, vector<8x256xf32>
    %89 = vector.shape_cast %85 : vector<8x1xi1> to vector<8x1xi1>
    %90 = vector.broadcast %89 : vector<8x1xi1> to vector<8x256xi1>
    %91 = arith.select %90, %81, %50 : vector<8x256xi1>, vector<8x256xf32>
    %c2_i32 = arith.constant 2 : i32
    %c8_i32_26 = arith.constant 8 : i32
    %92 = arith.muli %c2_i32, %c8_i32_26 : i32
    %93 = tpu.assume_multiple %92, 8 : i32
    %94 = arith.index_cast %93 : i32 to index
    %c0_27 = arith.constant 0 : index
    %95 = vector.load %arg7[%94, %c0_27] : memref<64x1024xf32, #tpu.memory_space<vmem>>, vector<8x1024xf32>
    %96 = arith.truncf %88 : vector<8x256xf32> to vector<8x256xbf16>
    %c0_28 = arith.constant 0 : index
    %c0_29 = arith.constant 0 : index
    %97 = vector.load %arg3[%c0_28, %c0_29] : memref<256x1024xbf16, #tpu.memory_space<vmem>>, vector<256x1024xbf16>
    %cst_30 = arith.constant dense<0.000000e+00> : vector<8x1024xf32>
    %98 = tpu.matmul %96, %97, %cst_30 {dimension_numbers = #tpu.dot_dimension_numbers<[1], [0], [0], [1], [0, 0, 1, 1], [], []>} : vector<8x256xbf16>, vector<256x1024xbf16>, vector<8x1024xf32> -> vector<8x1024xf32>
    %99 = arith.addf %95, %98 : vector<8x1024xf32>
    %100 = vector.extract_strided_slice %99 {offsets = [0, 0], sizes = [8, 256], strides = [1, 1]} : vector<8x1024xf32> to vector<8x256xf32>
    %101 = arith.negf %100 : vector<8x256xf32>
    %102 = math.exp %101 : vector<8x256xf32>
    %cst_31 = arith.constant 1.000000e+00 : f32
    %103 = vector.broadcast %cst_31 : f32 to vector<8x256xf32>
    %104 = arith.addf %103, %102 : vector<8x256xf32>
    %105 = arith.divf %103, %104 : vector<8x256xf32>
    %106 = vector.extract_strided_slice %99 {offsets = [0, 256], sizes = [8, 256], strides = [1, 1]} : vector<8x1024xf32> to vector<8x256xf32>
    %107 = arith.negf %106 : vector<8x256xf32>
    %108 = math.exp %107 : vector<8x256xf32>
    %cst_32 = arith.constant 1.000000e+00 : f32
    %109 = vector.broadcast %cst_32 : f32 to vector<8x256xf32>
    %110 = arith.addf %109, %108 : vector<8x256xf32>
    %111 = arith.divf %109, %110 : vector<8x256xf32>
    %112 = vector.extract_strided_slice %99 {offsets = [0, 512], sizes = [8, 256], strides = [1, 1]} : vector<8x1024xf32> to vector<8x256xf32>
    %113 = math.tanh %112 : vector<8x256xf32>
    %114 = vector.extract_strided_slice %99 {offsets = [0, 768], sizes = [8, 256], strides = [1, 1]} : vector<8x1024xf32> to vector<8x256xf32>
    %115 = arith.negf %114 : vector<8x256xf32>
    %116 = math.exp %115 : vector<8x256xf32>
    %cst_33 = arith.constant 1.000000e+00 : f32
    %117 = vector.broadcast %cst_33 : f32 to vector<8x256xf32>
    %118 = arith.addf %117, %116 : vector<8x256xf32>
    %119 = arith.divf %117, %118 : vector<8x256xf32>
    %120 = arith.mulf %111, %91 : vector<8x256xf32>
    %121 = arith.mulf %105, %113 : vector<8x256xf32>
    %122 = arith.addf %120, %121 : vector<8x256xf32>
    %123 = math.tanh %122 : vector<8x256xf32>
    %124 = arith.mulf %119, %123 : vector<8x256xf32>
    %125 = vector.broadcast %c2_i32 : i32 to vector<8x1xi32>
    %126 = arith.cmpi slt, %125, %7 : vector<8x1xi32>
    %127 = vector.shape_cast %126 : vector<8x1xi1> to vector<8x1xi1>
    %128 = vector.broadcast %127 : vector<8x1xi1> to vector<8x256xi1>
    %129 = arith.select %128, %124, %88 : vector<8x256xi1>, vector<8x256xf32>
    %130 = vector.shape_cast %126 : vector<8x1xi1> to vector<8x1xi1>
    %131 = vector.broadcast %130 : vector<8x1xi1> to vector<8x256xi1>
    %132 = arith.select %131, %122, %91 : vector<8x256xi1>, vector<8x256xf32>
    %c3_i32 = arith.constant 3 : i32
    %c8_i32_34 = arith.constant 8 : i32
    %133 = arith.muli %c3_i32, %c8_i32_34 : i32
    %134 = tpu.assume_multiple %133, 8 : i32
    %135 = arith.index_cast %134 : i32 to index
    %c0_35 = arith.constant 0 : index
    %136 = vector.load %arg7[%135, %c0_35] : memref<64x1024xf32, #tpu.memory_space<vmem>>, vector<8x1024xf32>
    %137 = arith.truncf %129 : vector<8x256xf32> to vector<8x256xbf16>
    %c0_36 = arith.constant 0 : index
    %c0_37 = arith.constant 0 : index
    %138 = vector.load %arg3[%c0_36, %c0_37] : memref<256x1024xbf16, #tpu.memory_space<vmem>>, vector<256x1024xbf16>
    %cst_38 = arith.constant dense<0.000000e+00> : vector<8x1024xf32>
    %139 = tpu.matmul %137, %138, %cst_38 {dimension_numbers = #tpu.dot_dimension_numbers<[1], [0], [0], [1], [0, 0, 1, 1], [], []>} : vector<8x256xbf16>, vector<256x1024xbf16>, vector<8x1024xf32> -> vector<8x1024xf32>
    %140 = arith.addf %136, %139 : vector<8x1024xf32>
    %141 = vector.extract_strided_slice %140 {offsets = [0, 0], sizes = [8, 256], strides = [1, 1]} : vector<8x1024xf32> to vector<8x256xf32>
    %142 = arith.negf %141 : vector<8x256xf32>
    %143 = math.exp %142 : vector<8x256xf32>
    %cst_39 = arith.constant 1.000000e+00 : f32
    %144 = vector.broadcast %cst_39 : f32 to vector<8x256xf32>
    %145 = arith.addf %144, %143 : vector<8x256xf32>
    %146 = arith.divf %144, %145 : vector<8x256xf32>
    %147 = vector.extract_strided_slice %140 {offsets = [0, 256], sizes = [8, 256], strides = [1, 1]} : vector<8x1024xf32> to vector<8x256xf32>
    %148 = arith.negf %147 : vector<8x256xf32>
    %149 = math.exp %148 : vector<8x256xf32>
    %cst_40 = arith.constant 1.000000e+00 : f32
    %150 = vector.broadcast %cst_40 : f32 to vector<8x256xf32>
    %151 = arith.addf %150, %149 : vector<8x256xf32>
    %152 = arith.divf %150, %151 : vector<8x256xf32>
    %153 = vector.extract_strided_slice %140 {offsets = [0, 512], sizes = [8, 256], strides = [1, 1]} : vector<8x1024xf32> to vector<8x256xf32>
    %154 = math.tanh %153 : vector<8x256xf32>
    %155 = vector.extract_strided_slice %140 {offsets = [0, 768], sizes = [8, 256], strides = [1, 1]} : vector<8x1024xf32> to vector<8x256xf32>
    %156 = arith.negf %155 : vector<8x256xf32>
    %157 = math.exp %156 : vector<8x256xf32>
    %cst_41 = arith.constant 1.000000e+00 : f32
    %158 = vector.broadcast %cst_41 : f32 to vector<8x256xf32>
    %159 = arith.addf %158, %157 : vector<8x256xf32>
    %160 = arith.divf %158, %159 : vector<8x256xf32>
    %161 = arith.mulf %152, %132 : vector<8x256xf32>
    %162 = arith.mulf %146, %154 : vector<8x256xf32>
    %163 = arith.addf %161, %162 : vector<8x256xf32>
    %164 = math.tanh %163 : vector<8x256xf32>
    %165 = arith.mulf %160, %164 : vector<8x256xf32>
    %166 = vector.broadcast %c3_i32 : i32 to vector<8x1xi32>
    %167 = arith.cmpi slt, %166, %7 : vector<8x1xi32>
    %168 = vector.shape_cast %167 : vector<8x1xi1> to vector<8x1xi1>
    %169 = vector.broadcast %168 : vector<8x1xi1> to vector<8x256xi1>
    %170 = arith.select %169, %165, %129 : vector<8x256xi1>, vector<8x256xf32>
    %171 = vector.shape_cast %167 : vector<8x1xi1> to vector<8x1xi1>
    %172 = vector.broadcast %171 : vector<8x1xi1> to vector<8x256xi1>
    %173 = arith.select %172, %163, %132 : vector<8x256xi1>, vector<8x256xf32>
    %c4_i32 = arith.constant 4 : i32
    %c8_i32_42 = arith.constant 8 : i32
    %174 = arith.muli %c4_i32, %c8_i32_42 : i32
    %175 = tpu.assume_multiple %174, 8 : i32
    %176 = arith.index_cast %175 : i32 to index
    %c0_43 = arith.constant 0 : index
    %177 = vector.load %arg7[%176, %c0_43] : memref<64x1024xf32, #tpu.memory_space<vmem>>, vector<8x1024xf32>
    %178 = arith.truncf %170 : vector<8x256xf32> to vector<8x256xbf16>
    %c0_44 = arith.constant 0 : index
    %c0_45 = arith.constant 0 : index
    %179 = vector.load %arg3[%c0_44, %c0_45] : memref<256x1024xbf16, #tpu.memory_space<vmem>>, vector<256x1024xbf16>
    %cst_46 = arith.constant dense<0.000000e+00> : vector<8x1024xf32>
    %180 = tpu.matmul %178, %179, %cst_46 {dimension_numbers = #tpu.dot_dimension_numbers<[1], [0], [0], [1], [0, 0, 1, 1], [], []>} : vector<8x256xbf16>, vector<256x1024xbf16>, vector<8x1024xf32> -> vector<8x1024xf32>
    %181 = arith.addf %177, %180 : vector<8x1024xf32>
    %182 = vector.extract_strided_slice %181 {offsets = [0, 0], sizes = [8, 256], strides = [1, 1]} : vector<8x1024xf32> to vector<8x256xf32>
    %183 = arith.negf %182 : vector<8x256xf32>
    %184 = math.exp %183 : vector<8x256xf32>
    %cst_47 = arith.constant 1.000000e+00 : f32
    %185 = vector.broadcast %cst_47 : f32 to vector<8x256xf32>
    %186 = arith.addf %185, %184 : vector<8x256xf32>
    %187 = arith.divf %185, %186 : vector<8x256xf32>
    %188 = vector.extract_strided_slice %181 {offsets = [0, 256], sizes = [8, 256], strides = [1, 1]} : vector<8x1024xf32> to vector<8x256xf32>
    %189 = arith.negf %188 : vector<8x256xf32>
    %190 = math.exp %189 : vector<8x256xf32>
    %cst_48 = arith.constant 1.000000e+00 : f32
    %191 = vector.broadcast %cst_48 : f32 to vector<8x256xf32>
    %192 = arith.addf %191, %190 : vector<8x256xf32>
    %193 = arith.divf %191, %192 : vector<8x256xf32>
    %194 = vector.extract_strided_slice %181 {offsets = [0, 512], sizes = [8, 256], strides = [1, 1]} : vector<8x1024xf32> to vector<8x256xf32>
    %195 = math.tanh %194 : vector<8x256xf32>
    %196 = vector.extract_strided_slice %181 {offsets = [0, 768], sizes = [8, 256], strides = [1, 1]} : vector<8x1024xf32> to vector<8x256xf32>
    %197 = arith.negf %196 : vector<8x256xf32>
    %198 = math.exp %197 : vector<8x256xf32>
    %cst_49 = arith.constant 1.000000e+00 : f32
    %199 = vector.broadcast %cst_49 : f32 to vector<8x256xf32>
    %200 = arith.addf %199, %198 : vector<8x256xf32>
    %201 = arith.divf %199, %200 : vector<8x256xf32>
    %202 = arith.mulf %193, %173 : vector<8x256xf32>
    %203 = arith.mulf %187, %195 : vector<8x256xf32>
    %204 = arith.addf %202, %203 : vector<8x256xf32>
    %205 = math.tanh %204 : vector<8x256xf32>
    %206 = arith.mulf %201, %205 : vector<8x256xf32>
    %207 = vector.broadcast %c4_i32 : i32 to vector<8x1xi32>
    %208 = arith.cmpi slt, %207, %7 : vector<8x1xi32>
    %209 = vector.shape_cast %208 : vector<8x1xi1> to vector<8x1xi1>
    %210 = vector.broadcast %209 : vector<8x1xi1> to vector<8x256xi1>
    %211 = arith.select %210, %206, %170 : vector<8x256xi1>, vector<8x256xf32>
    %212 = vector.shape_cast %208 : vector<8x1xi1> to vector<8x1xi1>
    %213 = vector.broadcast %212 : vector<8x1xi1> to vector<8x256xi1>
    %214 = arith.select %213, %204, %173 : vector<8x256xi1>, vector<8x256xf32>
    %c5_i32 = arith.constant 5 : i32
    %c8_i32_50 = arith.constant 8 : i32
    %215 = arith.muli %c5_i32, %c8_i32_50 : i32
    %216 = tpu.assume_multiple %215, 8 : i32
    %217 = arith.index_cast %216 : i32 to index
    %c0_51 = arith.constant 0 : index
    %218 = vector.load %arg7[%217, %c0_51] : memref<64x1024xf32, #tpu.memory_space<vmem>>, vector<8x1024xf32>
    %219 = arith.truncf %211 : vector<8x256xf32> to vector<8x256xbf16>
    %c0_52 = arith.constant 0 : index
    %c0_53 = arith.constant 0 : index
    %220 = vector.load %arg3[%c0_52, %c0_53] : memref<256x1024xbf16, #tpu.memory_space<vmem>>, vector<256x1024xbf16>
    %cst_54 = arith.constant dense<0.000000e+00> : vector<8x1024xf32>
    %221 = tpu.matmul %219, %220, %cst_54 {dimension_numbers = #tpu.dot_dimension_numbers<[1], [0], [0], [1], [0, 0, 1, 1], [], []>} : vector<8x256xbf16>, vector<256x1024xbf16>, vector<8x1024xf32> -> vector<8x1024xf32>
    %222 = arith.addf %218, %221 : vector<8x1024xf32>
    %223 = vector.extract_strided_slice %222 {offsets = [0, 0], sizes = [8, 256], strides = [1, 1]} : vector<8x1024xf32> to vector<8x256xf32>
    %224 = arith.negf %223 : vector<8x256xf32>
    %225 = math.exp %224 : vector<8x256xf32>
    %cst_55 = arith.constant 1.000000e+00 : f32
    %226 = vector.broadcast %cst_55 : f32 to vector<8x256xf32>
    %227 = arith.addf %226, %225 : vector<8x256xf32>
    %228 = arith.divf %226, %227 : vector<8x256xf32>
    %229 = vector.extract_strided_slice %222 {offsets = [0, 256], sizes = [8, 256], strides = [1, 1]} : vector<8x1024xf32> to vector<8x256xf32>
    %230 = arith.negf %229 : vector<8x256xf32>
    %231 = math.exp %230 : vector<8x256xf32>
    %cst_56 = arith.constant 1.000000e+00 : f32
    %232 = vector.broadcast %cst_56 : f32 to vector<8x256xf32>
    %233 = arith.addf %232, %231 : vector<8x256xf32>
    %234 = arith.divf %232, %233 : vector<8x256xf32>
    %235 = vector.extract_strided_slice %222 {offsets = [0, 512], sizes = [8, 256], strides = [1, 1]} : vector<8x1024xf32> to vector<8x256xf32>
    %236 = math.tanh %235 : vector<8x256xf32>
    %237 = vector.extract_strided_slice %222 {offsets = [0, 768], sizes = [8, 256], strides = [1, 1]} : vector<8x1024xf32> to vector<8x256xf32>
    %238 = arith.negf %237 : vector<8x256xf32>
    %239 = math.exp %238 : vector<8x256xf32>
    %cst_57 = arith.constant 1.000000e+00 : f32
    %240 = vector.broadcast %cst_57 : f32 to vector<8x256xf32>
    %241 = arith.addf %240, %239 : vector<8x256xf32>
    %242 = arith.divf %240, %241 : vector<8x256xf32>
    %243 = arith.mulf %234, %214 : vector<8x256xf32>
    %244 = arith.mulf %228, %236 : vector<8x256xf32>
    %245 = arith.addf %243, %244 : vector<8x256xf32>
    %246 = math.tanh %245 : vector<8x256xf32>
    %247 = arith.mulf %242, %246 : vector<8x256xf32>
    %248 = vector.broadcast %c5_i32 : i32 to vector<8x1xi32>
    %249 = arith.cmpi slt, %248, %7 : vector<8x1xi32>
    %250 = vector.shape_cast %249 : vector<8x1xi1> to vector<8x1xi1>
    %251 = vector.broadcast %250 : vector<8x1xi1> to vector<8x256xi1>
    %252 = arith.select %251, %247, %211 : vector<8x256xi1>, vector<8x256xf32>
    %253 = vector.shape_cast %249 : vector<8x1xi1> to vector<8x1xi1>
    %254 = vector.broadcast %253 : vector<8x1xi1> to vector<8x256xi1>
    %255 = arith.select %254, %245, %214 : vector<8x256xi1>, vector<8x256xf32>
    %c6_i32 = arith.constant 6 : i32
    %c8_i32_58 = arith.constant 8 : i32
    %256 = arith.muli %c6_i32, %c8_i32_58 : i32
    %257 = tpu.assume_multiple %256, 8 : i32
    %258 = arith.index_cast %257 : i32 to index
    %c0_59 = arith.constant 0 : index
    %259 = vector.load %arg7[%258, %c0_59] : memref<64x1024xf32, #tpu.memory_space<vmem>>, vector<8x1024xf32>
    %260 = arith.truncf %252 : vector<8x256xf32> to vector<8x256xbf16>
    %c0_60 = arith.constant 0 : index
    %c0_61 = arith.constant 0 : index
    %261 = vector.load %arg3[%c0_60, %c0_61] : memref<256x1024xbf16, #tpu.memory_space<vmem>>, vector<256x1024xbf16>
    %cst_62 = arith.constant dense<0.000000e+00> : vector<8x1024xf32>
    %262 = tpu.matmul %260, %261, %cst_62 {dimension_numbers = #tpu.dot_dimension_numbers<[1], [0], [0], [1], [0, 0, 1, 1], [], []>} : vector<8x256xbf16>, vector<256x1024xbf16>, vector<8x1024xf32> -> vector<8x1024xf32>
    %263 = arith.addf %259, %262 : vector<8x1024xf32>
    %264 = vector.extract_strided_slice %263 {offsets = [0, 0], sizes = [8, 256], strides = [1, 1]} : vector<8x1024xf32> to vector<8x256xf32>
    %265 = arith.negf %264 : vector<8x256xf32>
    %266 = math.exp %265 : vector<8x256xf32>
    %cst_63 = arith.constant 1.000000e+00 : f32
    %267 = vector.broadcast %cst_63 : f32 to vector<8x256xf32>
    %268 = arith.addf %267, %266 : vector<8x256xf32>
    %269 = arith.divf %267, %268 : vector<8x256xf32>
    %270 = vector.extract_strided_slice %263 {offsets = [0, 256], sizes = [8, 256], strides = [1, 1]} : vector<8x1024xf32> to vector<8x256xf32>
    %271 = arith.negf %270 : vector<8x256xf32>
    %272 = math.exp %271 : vector<8x256xf32>
    %cst_64 = arith.constant 1.000000e+00 : f32
    %273 = vector.broadcast %cst_64 : f32 to vector<8x256xf32>
    %274 = arith.addf %273, %272 : vector<8x256xf32>
    %275 = arith.divf %273, %274 : vector<8x256xf32>
    %276 = vector.extract_strided_slice %263 {offsets = [0, 512], sizes = [8, 256], strides = [1, 1]} : vector<8x1024xf32> to vector<8x256xf32>
    %277 = math.tanh %276 : vector<8x256xf32>
    %278 = vector.extract_strided_slice %263 {offsets = [0, 768], sizes = [8, 256], strides = [1, 1]} : vector<8x1024xf32> to vector<8x256xf32>
    %279 = arith.negf %278 : vector<8x256xf32>
    %280 = math.exp %279 : vector<8x256xf32>
    %cst_65 = arith.constant 1.000000e+00 : f32
    %281 = vector.broadcast %cst_65 : f32 to vector<8x256xf32>
    %282 = arith.addf %281, %280 : vector<8x256xf32>
    %283 = arith.divf %281, %282 : vector<8x256xf32>
    %284 = arith.mulf %275, %255 : vector<8x256xf32>
    %285 = arith.mulf %269, %277 : vector<8x256xf32>
    %286 = arith.addf %284, %285 : vector<8x256xf32>
    %287 = math.tanh %286 : vector<8x256xf32>
    %288 = arith.mulf %283, %287 : vector<8x256xf32>
    %289 = vector.broadcast %c6_i32 : i32 to vector<8x1xi32>
    %290 = arith.cmpi slt, %289, %7 : vector<8x1xi32>
    %291 = vector.shape_cast %290 : vector<8x1xi1> to vector<8x1xi1>
    %292 = vector.broadcast %291 : vector<8x1xi1> to vector<8x256xi1>
    %293 = arith.select %292, %288, %252 : vector<8x256xi1>, vector<8x256xf32>
    %294 = vector.shape_cast %290 : vector<8x1xi1> to vector<8x1xi1>
    %295 = vector.broadcast %294 : vector<8x1xi1> to vector<8x256xi1>
    %296 = arith.select %295, %286, %255 : vector<8x256xi1>, vector<8x256xf32>
    %c7_i32 = arith.constant 7 : i32
    %c8_i32_66 = arith.constant 8 : i32
    %297 = arith.muli %c7_i32, %c8_i32_66 : i32
    %298 = tpu.assume_multiple %297, 8 : i32
    %299 = arith.index_cast %298 : i32 to index
    %c0_67 = arith.constant 0 : index
    %300 = vector.load %arg7[%299, %c0_67] : memref<64x1024xf32, #tpu.memory_space<vmem>>, vector<8x1024xf32>
    %301 = arith.truncf %293 : vector<8x256xf32> to vector<8x256xbf16>
    %c0_68 = arith.constant 0 : index
    %c0_69 = arith.constant 0 : index
    %302 = vector.load %arg3[%c0_68, %c0_69] : memref<256x1024xbf16, #tpu.memory_space<vmem>>, vector<256x1024xbf16>
    %cst_70 = arith.constant dense<0.000000e+00> : vector<8x1024xf32>
    %303 = tpu.matmul %301, %302, %cst_70 {dimension_numbers = #tpu.dot_dimension_numbers<[1], [0], [0], [1], [0, 0, 1, 1], [], []>} : vector<8x256xbf16>, vector<256x1024xbf16>, vector<8x1024xf32> -> vector<8x1024xf32>
    %304 = arith.addf %300, %303 : vector<8x1024xf32>
    %305 = vector.extract_strided_slice %304 {offsets = [0, 0], sizes = [8, 256], strides = [1, 1]} : vector<8x1024xf32> to vector<8x256xf32>
    %306 = arith.negf %305 : vector<8x256xf32>
    %307 = math.exp %306 : vector<8x256xf32>
    %cst_71 = arith.constant 1.000000e+00 : f32
    %308 = vector.broadcast %cst_71 : f32 to vector<8x256xf32>
    %309 = arith.addf %308, %307 : vector<8x256xf32>
    %310 = arith.divf %308, %309 : vector<8x256xf32>
    %311 = vector.extract_strided_slice %304 {offsets = [0, 256], sizes = [8, 256], strides = [1, 1]} : vector<8x1024xf32> to vector<8x256xf32>
    %312 = arith.negf %311 : vector<8x256xf32>
    %313 = math.exp %312 : vector<8x256xf32>
    %cst_72 = arith.constant 1.000000e+00 : f32
    %314 = vector.broadcast %cst_72 : f32 to vector<8x256xf32>
    %315 = arith.addf %314, %313 : vector<8x256xf32>
    %316 = arith.divf %314, %315 : vector<8x256xf32>
    %317 = vector.extract_strided_slice %304 {offsets = [0, 512], sizes = [8, 256], strides = [1, 1]} : vector<8x1024xf32> to vector<8x256xf32>
    %318 = math.tanh %317 : vector<8x256xf32>
    %319 = vector.extract_strided_slice %304 {offsets = [0, 768], sizes = [8, 256], strides = [1, 1]} : vector<8x1024xf32> to vector<8x256xf32>
    %320 = arith.negf %319 : vector<8x256xf32>
    %321 = math.exp %320 : vector<8x256xf32>
    %cst_73 = arith.constant 1.000000e+00 : f32
    %322 = vector.broadcast %cst_73 : f32 to vector<8x256xf32>
    %323 = arith.addf %322, %321 : vector<8x256xf32>
    %324 = arith.divf %322, %323 : vector<8x256xf32>
    %325 = arith.mulf %316, %296 : vector<8x256xf32>
    %326 = arith.mulf %310, %318 : vector<8x256xf32>
    %327 = arith.addf %325, %326 : vector<8x256xf32>
    %328 = math.tanh %327 : vector<8x256xf32>
    %329 = arith.mulf %324, %328 : vector<8x256xf32>
    %330 = vector.broadcast %c7_i32 : i32 to vector<8x1xi32>
    %331 = arith.cmpi slt, %330, %7 : vector<8x1xi32>
    %332 = vector.shape_cast %331 : vector<8x1xi1> to vector<8x1xi1>
    %333 = vector.broadcast %332 : vector<8x1xi1> to vector<8x256xi1>
    %334 = arith.select %333, %329, %293 : vector<8x256xi1>, vector<8x256xf32>
    %335 = vector.shape_cast %331 : vector<8x1xi1> to vector<8x1xi1>
    %336 = vector.broadcast %335 : vector<8x1xi1> to vector<8x256xi1>
    %337 = arith.select %336, %327, %296 : vector<8x256xi1>, vector<8x256xf32>
    %c8_i32_74 = arith.constant 8 : i32
    %c0_75 = arith.constant 0 : index
    %c0_76 = arith.constant 0 : index
    %338 = vector.load %arg5[%c0_75, %c0_76] : memref<8x256xf32, #tpu.memory_space<vmem>>, vector<8x256xf32>
    tpu.vector_store %arg5[%c0_75, %c0_76], %334 {strides = array<i32>} : memref<8x256xf32, #tpu.memory_space<vmem>>, vector<8x256xf32>,
    %c0_77 = arith.constant 0 : index
    %c0_78 = arith.constant 0 : index
    %339 = vector.load %arg6[%c0_77, %c0_78] : memref<8x256xf32, #tpu.memory_space<vmem>>, vector<8x256xf32>
    tpu.vector_store %arg6[%c0_77, %c0_78], %337 {strides = array<i32>} : memref<8x256xf32, #tpu.memory_space<vmem>>, vector<8x256xf32>,
    return
  }
}

</mosaic_0001>

<llo_original>
// kernel: simple_encoder_lstm_forward.1
$region0: #{simple_encoder_lstm_forward.1}
  #allocation0 [shape = 'u32[]', space=smem, size = 0x4, offset = 0x4, fixed_abs, tag = 'smem constant byte address 0x4 - core index']
  #allocation1 [shape = 'u32[144,128]{1,0:T(1,128)}', space=vmem, size = 0x12000, scoped, tag = 'internal scratch']
  #allocation2 [shape = 'f32[64,1024]{1,0:T(8,128)}', space=vmem, size = 0x40000, scoped, tag = 'scratch operand']
  %s0 = inlined_call_operand.vmem [shape: s32[8,1], index: 0, kind: input, shape index: {}]
  %s1 = inlined_call_operand.vmem [shape: bf16[64,256], index: 1, kind: input, shape index: {}]
  %s2 = inlined_call_operand.vmem [shape: bf16[256,1024], index: 2, kind: input, shape index: {}]
  %s3 = inlined_call_operand.vmem [shape: bf16[256,1024], index: 3, kind: input, shape index: {}]
  %s4 = inlined_call_operand.vmem [shape: f32[1,1024], index: 4, kind: input, shape index: {}]
  %s5 = inlined_call_operand.vmem [shape: f32[8,256], index: 5, kind: output, shape index: {0}]
  %s6 = inlined_call_operand.vmem [shape: f32[8,256], index: 6, kind: output, shape index: {1}]
  %7 = xla_tuple %s5, %s6
  %s8 = sld [smem:[#allocation0]]
  $region38: #{simple_encoder_lstm_forward.1} parent=0
    _
  %s10 = ssub.s32 1, %s8
  %s11 = scalar_select 0, %s10, %s8
  // Predicated region
  $region2: #{simple_encoder_lstm_forward.1} parent=0 // pred_check
    _
  $region3: #{simple_encoder_lstm_forward.1} parent=0 // pred_check_branch
    %13 = sbr.rel (0) target = $region5
  $region4: #{simple_encoder_lstm_forward.1} parent=0 // pred_region
    _
  $region5: #{simple_encoder_lstm_forward.1} parent=0 // pred_fallthru
    _
  // Predicated region
  $region6: #{simple_encoder_lstm_forward.1} parent=0 // pred_check
    _
  $region7: #{simple_encoder_lstm_forward.1} parent=0 // pred_check_branch
    %15 = sbr.rel (0) target = $region9
  $region8: #{simple_encoder_lstm_forward.1} parent=0 // pred_region
    _
  $region9: #{simple_encoder_lstm_forward.1} parent=0 // pred_fallthru
    _
  // Predicated region
  $region10: #{simple_encoder_lstm_forward.1} parent=0 // pred_check
    _
  $region11: #{simple_encoder_lstm_forward.1} parent=0 // pred_check_branch
    %17 = sbr.rel (0) target = $region13
  $region12: #{simple_encoder_lstm_forward.1} parent=0 // pred_region
    _
  $region13: #{simple_encoder_lstm_forward.1} parent=0 // pred_fallthru
    _
  // Predicated region
  $region14: #{simple_encoder_lstm_forward.1} parent=0 // pred_check
    _
  $region15: #{simple_encoder_lstm_forward.1} parent=0 // pred_check_branch
    %19 = sbr.rel (0) target = $region17
  $region16: #{simple_encoder_lstm_forward.1} parent=0 // pred_region
    _
  $region17: #{simple_encoder_lstm_forward.1} parent=0 // pred_fallthru
    _
  // Predicated region
  $region18: #{simple_encoder_lstm_forward.1} parent=0 // pred_check
    _
  $region19: #{simple_encoder_lstm_forward.1} parent=0 // pred_check_branch
    %21 = sbr.rel (0) target = $region21
  $region20: #{simple_encoder_lstm_forward.1} parent=0 // pred_region
    _
  $region21: #{simple_encoder_lstm_forward.1} parent=0 // pred_fallthru
    _
  %v23 = vld [vmem:[%s1] sm:$0xff]
  %v24 = vld [vmem:[%s1 + $0x8] sm:$0xff]
  %v25 = vld [vmem:[%s1 + $0x10] sm:$0xff]
  %v26 = vld [vmem:[%s1 + $0x18] sm:$0xff]
  %v27 = vld [vmem:[%s1 + $0x20] sm:$0xff]
  %v28 = vld [vmem:[%s1 + $0x28] sm:$0xff]
  %v29 = vld [vmem:[%s1 + $0x30] sm:$0xff]
  %v30 = vld [vmem:[%s1 + $0x38] sm:$0xff]
  %v31 = vld [vmem:[%s2] sm:$0xff]
  %v32 = vld [vmem:[%s2 + $0x8] sm:$0xff]
  %v33 = vld [vmem:[%s2 + $0x10] sm:$0xff]
  %v34 = vld [vmem:[%s2 + $0x18] sm:$0xff]
  %v35 = vld [vmem:[%s2 + $0x20] sm:$0xff]
  %v36 = vld [vmem:[%s2 + $0x28] sm:$0xff]
  %v37 = vld [vmem:[%s2 + $0x30] sm:$0xff]
  %v38 = vld [vmem:[%s2 + $0x38] sm:$0xff]
  %v39 = vld [vmem:[%s2 + $0x40] sm:$0xff]
  %v40 = vld [vmem:[%s2 + $0x48] sm:$0xff]
  %v41 = vld [vmem:[%s2 + $0x50] sm:$0xff]
  %v42 = vld [vmem:[%s2 + $0x58] sm:$0xff]
  %v43 = vld [vmem:[%s2 + $0x60] sm:$0xff]
  %v44 = vld [vmem:[%s2 + $0x68] sm:$0xff]
  %v45 = vld [vmem:[%s2 + $0x70] sm:$0xff]
  %v46 = vld [vmem:[%s2 + $0x78] sm:$0xff]
  %v47 = vld [vmem:[%s2 + $0x80] sm:$0xff]
  %v48 = vld [vmem:[%s2 + $0x88] sm:$0xff]
  %v49 = vld [vmem:[%s2 + $0x90] sm:$0xff]
  %v50 = vld [vmem:[%s2 + $0x98] sm:$0xff]
  %v51 = vld [vmem:[%s2 + $0xa0] sm:$0xff]
  %v52 = vld [vmem:[%s2 + $0xa8] sm:$0xff]
  %v53 = vld [vmem:[%s2 + $0xb0] sm:$0xff]
  %v54 = vld [vmem:[%s2 + $0xb8] sm:$0xff]
  %v55 = vld [vmem:[%s2 + $0xc0] sm:$0xff]
  %v56 = vld [vmem:[%s2 + $0xc8] sm:$0xff]
  %v57 = vld [vmem:[%s2 + $0xd0] sm:$0xff]
  %v58 = vld [vmem:[%s2 + $0xd8] sm:$0xff]
  %v59 = vld [vmem:[%s2 + $0xe0] sm:$0xff]
  %v60 = vld [vmem:[%s2 + $0xe8] sm:$0xff]
  %v61 = vld [vmem:[%s2 + $0xf0] sm:$0xff]
  %v62 = vld [vmem:[%s2 + $0xf8] sm:$0xff]
  %v63 = vld [vmem:[%s2 + $0x100] sm:$0xff]
  %v64 = vld [vmem:[%s2 + $0x108] sm:$0xff]
  %v65 = vld [vmem:[%s2 + $0x110] sm:$0xff]
  %v66 = vld [vmem:[%s2 + $0x118] sm:$0xff]
  %v67 = vld [vmem:[%s2 + $0x120] sm:$0xff]
  %v68 = vld [vmem:[%s2 + $0x128] sm:$0xff]
  %v69 = vld [vmem:[%s2 + $0x130] sm:$0xff]
  %v70 = vld [vmem:[%s2 + $0x138] sm:$0xff]
  %v71 = vld [vmem:[%s2 + $0x140] sm:$0xff]
  %v72 = vld [vmem:[%s2 + $0x148] sm:$0xff]
  %v73 = vld [vmem:[%s2 + $0x150] sm:$0xff]
  %v74 = vld [vmem:[%s2 + $0x158] sm:$0xff]
  %v75 = vld [vmem:[%s2 + $0x160] sm:$0xff]
  %v76 = vld [vmem:[%s2 + $0x168] sm:$0xff]
  %v77 = vld [vmem:[%s2 + $0x170] sm:$0xff]
  %v78 = vld [vmem:[%s2 + $0x178] sm:$0xff]
  %v79 = vld [vmem:[%s2 + $0x180] sm:$0xff]
  %v80 = vld [vmem:[%s2 + $0x188] sm:$0xff]
  %v81 = vld [vmem:[%s2 + $0x190] sm:$0xff]
  %v82 = vld [vmem:[%s2 + $0x198] sm:$0xff]
  %v83 = vld [vmem:[%s2 + $0x1a0] sm:$0xff]
  %v84 = vld [vmem:[%s2 + $0x1a8] sm:$0xff]
  %v85 = vld [vmem:[%s2 + $0x1b0] sm:$0xff]
  %v86 = vld [vmem:[%s2 + $0x1b8] sm:$0xff]
  %v87 = vld [vmem:[%s2 + $0x1c0] sm:$0xff]
  %v88 = vld [vmem:[%s2 + $0x1c8] sm:$0xff]
  %v89 = vld [vmem:[%s2 + $0x1d0] sm:$0xff]
  %v90 = vld [vmem:[%s2 + $0x1d8] sm:$0xff]
  %v91 = vld [vmem:[%s2 + $0x1e0] sm:$0xff]
  %v92 = vld [vmem:[%s2 + $0x1e8] sm:$0xff]
  %v93 = vld [vmem:[%s2 + $0x1f0] sm:$0xff]
  %v94 = vld [vmem:[%s2 + $0x1f8] sm:$0xff]
  %v95 = vld [vmem:[%s2 + $0x200] sm:$0xff]
  %v96 = vld [vmem:[%s2 + $0x208] sm:$0xff]
  %v97 = vld [vmem:[%s2 + $0x210] sm:$0xff]
  %v98 = vld [vmem:[%s2 + $0x218] sm:$0xff]
  %v99 = vld [vmem:[%s2 + $0x220] sm:$0xff]
  %v100 = vld [vmem:[%s2 + $0x228] sm:$0xff]
  %v101 = vld [vmem:[%s2 + $0x230] sm:$0xff]
  %v102 = vld [vmem:[%s2 + $0x238] sm:$0xff]
  %v103 = vld [vmem:[%s2 + $0x240] sm:$0xff]
  %v104 = vld [vmem:[%s2 + $0x248] sm:$0xff]
  %v105 = vld [vmem:[%s2 + $0x250] sm:$0xff]
  %v106 = vld [vmem:[%s2 + $0x258] sm:$0xff]
  %v107 = vld [vmem:[%s2 + $0x260] sm:$0xff]
  %v108 = vld [vmem:[%s2 + $0x268] sm:$0xff]
  %v109 = vld [vmem:[%s2 + $0x270] sm:$0xff]
  %v110 = vld [vmem:[%s2 + $0x278] sm:$0xff]
  %v111 = vld [vmem:[%s2 + $0x280] sm:$0xff]
  %v112 = vld [vmem:[%s2 + $0x288] sm:$0xff]
  %v113 = vld [vmem:[%s2 + $0x290] sm:$0xff]
  %v114 = vld [vmem:[%s2 + $0x298] sm:$0xff]
  %v115 = vld [vmem:[%s2 + $0x2a0] sm:$0xff]
  %v116 = vld [vmem:[%s2 + $0x2a8] sm:$0xff]
  %v117 = vld [vmem:[%s2 + $0x2b0] sm:$0xff]
  %v118 = vld [vmem:[%s2 + $0x2b8] sm:$0xff]
  %v119 = vld [vmem:[%s2 + $0x2c0] sm:$0xff]
  %v120 = vld [vmem:[%s2 + $0x2c8] sm:$0xff]
  %v121 = vld [vmem:[%s2 + $0x2d0] sm:$0xff]
  %v122 = vld [vmem:[%s2 + $0x2d8] sm:$0xff]
  %v123 = vld [vmem:[%s2 + $0x2e0] sm:$0xff]
  %v124 = vld [vmem:[%s2 + $0x2e8] sm:$0xff]
  %v125 = vld [vmem:[%s2 + $0x2f0] sm:$0xff]
  %v126 = vld [vmem:[%s2 + $0x2f8] sm:$0xff]
  %v127 = vld [vmem:[%s2 + $0x300] sm:$0xff]
  %v128 = vld [vmem:[%s2 + $0x308] sm:$0xff]
  %v129 = vld [vmem:[%s2 + $0x310] sm:$0xff]
  %v130 = vld [vmem:[%s2 + $0x318] sm:$0xff]
  %v131 = vld [vmem:[%s2 + $0x320] sm:$0xff]
  %v132 = vld [vmem:[%s2 + $0x328] sm:$0xff]
  %v133 = vld [vmem:[%s2 + $0x330] sm:$0xff]
  %v134 = vld [vmem:[%s2 + $0x338] sm:$0xff]
  %v135 = vld [vmem:[%s2 + $0x340] sm:$0xff]
  %v136 = vld [vmem:[%s2 + $0x348] sm:$0xff]
  %v137 = vld [vmem:[%s2 + $0x350] sm:$0xff]
  %v138 = vld [vmem:[%s2 + $0x358] sm:$0xff]
  %v139 = vld [vmem:[%s2 + $0x360] sm:$0xff]
  %v140 = vld [vmem:[%s2 + $0x368] sm:$0xff]
  %v141 = vld [vmem:[%s2 + $0x370] sm:$0xff]
  %v142 = vld [vmem:[%s2 + $0x378] sm:$0xff]
  %v143 = vld [vmem:[%s2 + $0x380] sm:$0xff]
  %v144 = vld [vmem:[%s2 + $0x388] sm:$0xff]
  %v145 = vld [vmem:[%s2 + $0x390] sm:$0xff]
  %v146 = vld [vmem:[%s2 + $0x398] sm:$0xff]
  %v147 = vld [vmem:[%s2 + $0x3a0] sm:$0xff]
  %v148 = vld [vmem:[%s2 + $0x3a8] sm:$0xff]
  %v149 = vld [vmem:[%s2 + $0x3b0] sm:$0xff]
  %v150 = vld [vmem:[%s2 + $0x3b8] sm:$0xff]
  %v151 = vld [vmem:[%s2 + $0x3c0] sm:$0xff]
  %v152 = vld [vmem:[%s2 + $0x3c8] sm:$0xff]
  %v153 = vld [vmem:[%s2 + $0x3d0] sm:$0xff]
  %v154 = vld [vmem:[%s2 + $0x3d8] sm:$0xff]
  %v155 = vld [vmem:[%s2 + $0x3e0] sm:$0xff]
  %v156 = vld [vmem:[%s2 + $0x3e8] sm:$0xff]
  %v157 = vld [vmem:[%s2 + $0x3f0] sm:$0xff]
  %v158 = vld [vmem:[%s2 + $0x3f8] sm:$0xff]
  %v159 = vld [vmem:[%s4] sm:$0xff]
  %v161 = vlaneseq
  %v162 = vshrl.u32 %v161, 7
  %v163 = vsub.s32 0, %v162
  %v164 = vrot.slane %v159, %v163
  %v165 = vlaneseq
  %v166 = vshrl.u32 %v165, 7
  %v167 = vsub.s32 1, %v166
  %v168 = vrot.slane %v159, %v167
  %v169 = vlaneseq
  %v170 = vshrl.u32 %v169, 7
  %v171 = vsub.s32 2, %v170
  %v172 = vrot.slane %v159, %v171
  %v173 = vlaneseq
  %v174 = vshrl.u32 %v173, 7
  %v175 = vsub.s32 3, %v174
  %v176 = vrot.slane %v159, %v175
  %v177 = vlaneseq
  %v178 = vshrl.u32 %v177, 7
  %v179 = vsub.s32 4, %v178
  %v180 = vrot.slane %v159, %v179
  %v181 = vlaneseq
  %v182 = vshrl.u32 %v181, 7
  %v183 = vsub.s32 5, %v182
  %v184 = vrot.slane %v159, %v183
  %v185 = vlaneseq
  %v186 = vshrl.u32 %v185, 7
  %v187 = vsub.s32 6, %v186
  %v188 = vrot.slane %v159, %v187
  %v189 = vlaneseq
  %v190 = vshrl.u32 %v189, 7
  %v191 = vsub.s32 7, %v190
  %v192 = vrot.slane %v159, %v191
  %v209 = vunpack.c.l.b16 %v23
  %v210 = vunpack.c.h.b16 %v23
  %v211 = vunpack.c.l.b16 %v24
  %v212 = vunpack.c.h.b16 %v24
  %v213 = vunpack.c.l.b16 %v25
  %v214 = vunpack.c.h.b16 %v25
  %v215 = vunpack.c.l.b16 %v26
  %v216 = vunpack.c.h.b16 %v26
  %v217 = vunpack.c.l.b16 %v27
  %v218 = vunpack.c.h.b16 %v27
  %v219 = vunpack.c.l.b16 %v28
  %v220 = vunpack.c.h.b16 %v28
  %v221 = vunpack.c.l.b16 %v29
  %v222 = vunpack.c.h.b16 %v29
  %v223 = vunpack.c.l.b16 %v30
  %v224 = vunpack.c.h.b16 %v30
  %v225 = vpack.c.b16 %v211, %v209
  %v226 = vpack.c.b16 %v212, %v210
  %v227 = vpack.c.b16 %v215, %v213
  %v228 = vpack.c.b16 %v216, %v214
  %v229 = vpack.c.b16 %v219, %v217
  %v230 = vpack.c.b16 %v220, %v218
  %v231 = vpack.c.b16 %v223, %v221
  %v232 = vpack.c.b16 %v224, %v222
  %v369 = vunpack.c.l.b16 %v31
  %v370 = vunpack.c.h.b16 %v31
  %v371 = vunpack.c.l.b16 %v32
  %v372 = vunpack.c.h.b16 %v32
  %v373 = vunpack.c.l.b16 %v33
  %v374 = vunpack.c.h.b16 %v33
  %v375 = vunpack.c.l.b16 %v34
  %v376 = vunpack.c.h.b16 %v34
  %v377 = vunpack.c.l.b16 %v35
  %v378 = vunpack.c.h.b16 %v35
  %v379 = vunpack.c.l.b16 %v36
  %v380 = vunpack.c.h.b16 %v36
  %v381 = vunpack.c.l.b16 %v37
  %v382 = vunpack.c.h.b16 %v37
  %v383 = vunpack.c.l.b16 %v38
  %v384 = vunpack.c.h.b16 %v38
  %v385 = vunpack.c.l.b16 %v39
  %v386 = vunpack.c.h.b16 %v39
  %v387 = vunpack.c.l.b16 %v40
  %v388 = vunpack.c.h.b16 %v40
  %v389 = vunpack.c.l.b16 %v41
  %v390 = vunpack.c.h.b16 %v41
  %v391 = vunpack.c.l.b16 %v42
  %v392 = vunpack.c.h.b16 %v42
  %v393 = vunpack.c.l.b16 %v43
  %v394 = vunpack.c.h.b16 %v43
  %v395 = vunpack.c.l.b16 %v44
  %v396 = vunpack.c.h.b16 %v44
  %v397 = vunpack.c.l.b16 %v45
  %v398 = vunpack.c.h.b16 %v45
  %v399 = vunpack.c.l.b16 %v46
  %v400 = vunpack.c.h.b16 %v46
  %v401 = vunpack.c.l.b16 %v47
  %v402 = vunpack.c.h.b16 %v47
  %v403 = vunpack.c.l.b16 %v48
  %v404 = vunpack.c.h.b16 %v48
  %v405 = vunpack.c.l.b16 %v49
  %v406 = vunpack.c.h.b16 %v49
  %v407 = vunpack.c.l.b16 %v50
  %v408 = vunpack.c.h.b16 %v50
  %v409 = vunpack.c.l.b16 %v51
  %v410 = vunpack.c.h.b16 %v51
  %v411 = vunpack.c.l.b16 %v52
  %v412 = vunpack.c.h.b16 %v52
  %v413 = vunpack.c.l.b16 %v53
  %v414 = vunpack.c.h.b16 %v53
  %v415 = vunpack.c.l.b16 %v54
  %v416 = vunpack.c.h.b16 %v54
  %v417 = vunpack.c.l.b16 %v55
  %v418 = vunpack.c.h.b16 %v55
  %v419 = vunpack.c.l.b16 %v56
  %v420 = vunpack.c.h.b16 %v56
  %v421 = vunpack.c.l.b16 %v57
  %v422 = vunpack.c.h.b16 %v57
  %v423 = vunpack.c.l.b16 %v58
  %v424 = vunpack.c.h.b16 %v58
  %v425 = vunpack.c.l.b16 %v59
  %v426 = vunpack.c.h.b16 %v59
  %v427 = vunpack.c.l.b16 %v60
  %v428 = vunpack.c.h.b16 %v60
  %v429 = vunpack.c.l.b16 %v61
  %v430 = vunpack.c.h.b16 %v61
  %v431 = vunpack.c.l.b16 %v62
  %v432 = vunpack.c.h.b16 %v62
  %v433 = vunpack.c.l.b16 %v63
  %v434 = vunpack.c.h.b16 %v63
  %v435 = vunpack.c.l.b16 %v64
  %v436 = vunpack.c.h.b16 %v64
  %v437 = vunpack.c.l.b16 %v65
  %v438 = vunpack.c.h.b16 %v65
  %v439 = vunpack.c.l.b16 %v66
  %v440 = vunpack.c.h.b16 %v66
  %v441 = vunpack.c.l.b16 %v67
  %v442 = vunpack.c.h.b16 %v67
  %v443 = vunpack.c.l.b16 %v68
  %v444 = vunpack.c.h.b16 %v68
  %v445 = vunpack.c.l.b16 %v69
  %v446 = vunpack.c.h.b16 %v69
  %v447 = vunpack.c.l.b16 %v70
  %v448 = vunpack.c.h.b16 %v70
  %v449 = vunpack.c.l.b16 %v71
  %v450 = vunpack.c.h.b16 %v71
  %v451 = vunpack.c.l.b16 %v72
  %v452 = vunpack.c.h.b16 %v72
  %v453 = vunpack.c.l.b16 %v73
  %v454 = vunpack.c.h.b16 %v73
  %v455 = vunpack.c.l.b16 %v74
  %v456 = vunpack.c.h.b16 %v74
  %v457 = vunpack.c.l.b16 %v75
  %v458 = vunpack.c.h.b16 %v75
  %v459 = vunpack.c.l.b16 %v76
  %v460 = vunpack.c.h.b16 %v76
  %v461 = vunpack.c.l.b16 %v77
  %v462 = vunpack.c.h.b16 %v77
  %v463 = vunpack.c.l.b16 %v78
  %v464 = vunpack.c.h.b16 %v78
  %v465 = vunpack.c.l.b16 %v79
  %v466 = vunpack.c.h.b16 %v79
  %v467 = vunpack.c.l.b16 %v80
  %v468 = vunpack.c.h.b16 %v80
  %v469 = vunpack.c.l.b16 %v81
  %v470 = vunpack.c.h.b16 %v81
  %v471 = vunpack.c.l.b16 %v82
  %v472 = vunpack.c.h.b16 %v82
  %v473 = vunpack.c.l.b16 %v83
  %v474 = vunpack.c.h.b16 %v83
  %v475 = vunpack.c.l.b16 %v84
  %v476 = vunpack.c.h.b16 %v84
  %v477 = vunpack.c.l.b16 %v85
  %v478 = vunpack.c.h.b16 %v85
  %v479 = vunpack.c.l.b16 %v86
  %v480 = vunpack.c.h.b16 %v86
  %v481 = vunpack.c.l.b16 %v87
  %v482 = vunpack.c.h.b16 %v87
  %v483 = vunpack.c.l.b16 %v88
  %v484 = vunpack.c.h.b16 %v88
  %v485 = vunpack.c.l.b16 %v89
  %v486 = vunpack.c.h.b16 %v89
  %v487 = vunpack.c.l.b16 %v90
  %v488 = vunpack.c.h.b16 %v90
  %v489 = vunpack.c.l.b16 %v91
  %v490 = vunpack.c.h.b16 %v91
  %v491 = vunpack.c.l.b16 %v92
  %v492 = vunpack.c.h.b16 %v92
  %v493 = vunpack.c.l.b16 %v93
  %v494 = vunpack.c.h.b16 %v93
  %v495 = vunpack.c.l.b16 %v94
  %v496 = vunpack.c.h.b16 %v94
  %v497 = vunpack.c.l.b16 %v95
  %v498 = vunpack.c.h.b16 %v95
  %v499 = vunpack.c.l.b16 %v96
  %v500 = vunpack.c.h.b16 %v96
  %v501 = vunpack.c.l.b16 %v97
  %v502 = vunpack.c.h.b16 %v97
  %v503 = vunpack.c.l.b16 %v98
  %v504 = vunpack.c.h.b16 %v98
  %v505 = vunpack.c.l.b16 %v99
  %v506 = vunpack.c.h.b16 %v99
  %v507 = vunpack.c.l.b16 %v100
  %v508 = vunpack.c.h.b16 %v100
  %v509 = vunpack.c.l.b16 %v101
  %v510 = vunpack.c.h.b16 %v101
  %v511 = vunpack.c.l.b16 %v102
  %v512 = vunpack.c.h.b16 %v102
  %v513 = vunpack.c.l.b16 %v103
  %v514 = vunpack.c.h.b16 %v103
  %v515 = vunpack.c.l.b16 %v104
  %v516 = vunpack.c.h.b16 %v104
  %v517 = vunpack.c.l.b16 %v105
  %v518 = vunpack.c.h.b16 %v105
  %v519 = vunpack.c.l.b16 %v106
  %v520 = vunpack.c.h.b16 %v106
  %v521 = vunpack.c.l.b16 %v107
  %v522 = vunpack.c.h.b16 %v107
  %v523 = vunpack.c.l.b16 %v108
  %v524 = vunpack.c.h.b16 %v108
  %v525 = vunpack.c.l.b16 %v109
  %v526 = vunpack.c.h.b16 %v109
  %v527 = vunpack.c.l.b16 %v110
  %v528 = vunpack.c.h.b16 %v110
  %v529 = vunpack.c.l.b16 %v111
  %v530 = vunpack.c.h.b16 %v111
  %v531 = vunpack.c.l.b16 %v112
  %v532 = vunpack.c.h.b16 %v112
  %v533 = vunpack.c.l.b16 %v113
  %v534 = vunpack.c.h.b16 %v113
  %v535 = vunpack.c.l.b16 %v114
  %v536 = vunpack.c.h.b16 %v114
  %v537 = vunpack.c.l.b16 %v115
  %v538 = vunpack.c.h.b16 %v115
  %v539 = vunpack.c.l.b16 %v116
  %v540 = vunpack.c.h.b16 %v116
  %v541 = vunpack.c.l.b16 %v117
  %v542 = vunpack.c.h.b16 %v117
  %v543 = vunpack.c.l.b16 %v118
  %v544 = vunpack.c.h.b16 %v118
  %v545 = vunpack.c.l.b16 %v119
  %v546 = vunpack.c.h.b16 %v119
  %v547 = vunpack.c.l.b16 %v120
  %v548 = vunpack.c.h.b16 %v120
  %v549 = vunpack.c.l.b16 %v121
  %v550 = vunpack.c.h.b16 %v121
  %v551 = vunpack.c.l.b16 %v122
  %v552 = vunpack.c.h.b16 %v122
  %v553 = vunpack.c.l.b16 %v123
  %v554 = vunpack.c.h.b16 %v123
  %v555 = vunpack.c.l.b16 %v124
  %v556 = vunpack.c.h.b16 %v124
  %v557 = vunpack.c.l.b16 %v125
  %v558 = vunpack.c.h.b16 %v125
  %v559 = vunpack.c.l.b16 %v126
  %v560 = vunpack.c.h.b16 %v126
  %v561 = vunpack.c.l.b16 %v127
  %v562 = vunpack.c.h.b16 %v127
  %v563 = vunpack.c.l.b16 %v128
  %v564 = vunpack.c.h.b16 %v128
  %v565 = vunpack.c.l.b16 %v129
  %v566 = vunpack.c.h.b16 %v129
  %v567 = vunpack.c.l.b16 %v130
  %v568 = vunpack.c.h.b16 %v130
  %v569 = vunpack.c.l.b16 %v131
  %v570 = vunpack.c.h.b16 %v131
  %v571 = vunpack.c.l.b16 %v132
  %v572 = vunpack.c.h.b16 %v132
  %v573 = vunpack.c.l.b16 %v133
  %v574 = vunpack.c.h.b16 %v133
  %v575 = vunpack.c.l.b16 %v134
  %v576 = vunpack.c.h.b16 %v134
  %v577 = vunpack.c.l.b16 %v135
  %v578 = vunpack.c.h.b16 %v135
  %v579 = vunpack.c.l.b16 %v136
  %v580 = vunpack.c.h.b16 %v136
  %v581 = vunpack.c.l.b16 %v137
  %v582 = vunpack.c.h.b16 %v137
  %v583 = vunpack.c.l.b16 %v138
  %v584 = vunpack.c.h.b16 %v138
  %v585 = vunpack.c.l.b16 %v139
  %v586 = vunpack.c.h.b16 %v139
  %v587 = vunpack.c.l.b16 %v140
  %v588 = vunpack.c.h.b16 %v140
  %v589 = vunpack.c.l.b16 %v141
  %v590 = vunpack.c.h.b16 %v141
  %v591 = vunpack.c.l.b16 %v142
  %v592 = vunpack.c.h.b16 %v142
  %v593 = vunpack.c.l.b16 %v143
  %v594 = vunpack.c.h.b16 %v143
  %v595 = vunpack.c.l.b16 %v144
  %v596 = vunpack.c.h.b16 %v144
  %v597 = vunpack.c.l.b16 %v145
  %v598 = vunpack.c.h.b16 %v145
  %v599 = vunpack.c.l.b16 %v146
  %v600 = vunpack.c.h.b16 %v146
  %v601 = vunpack.c.l.b16 %v147
  %v602 = vunpack.c.h.b16 %v147
  %v603 = vunpack.c.l.b16 %v148
  %v604 = vunpack.c.h.b16 %v148
  %v605 = vunpack.c.l.b16 %v149
  %v606 = vunpack.c.h.b16 %v149
  %v607 = vunpack.c.l.b16 %v150
  %v608 = vunpack.c.h.b16 %v150
  %v609 = vunpack.c.l.b16 %v151
  %v610 = vunpack.c.h.b16 %v151
  %v611 = vunpack.c.l.b16 %v152
  %v612 = vunpack.c.h.b16 %v152
  %v613 = vunpack.c.l.b16 %v153
  %v614 = vunpack.c.h.b16 %v153
  %v615 = vunpack.c.l.b16 %v154
  %v616 = vunpack.c.h.b16 %v154
  %v617 = vunpack.c.l.b16 %v155
  %v618 = vunpack.c.h.b16 %v155
  %v619 = vunpack.c.l.b16 %v156
  %v620 = vunpack.c.h.b16 %v156
  %v621 = vunpack.c.l.b16 %v157
  %v622 = vunpack.c.h.b16 %v157
  %v623 = vunpack.c.l.b16 %v158
  %v624 = vunpack.c.h.b16 %v158
  %v625 = vpack.c.b16 %v377, %v369
  %v626 = vpack.c.b16 %v378, %v370
  %v627 = vpack.c.b16 %v379, %v371
  %v628 = vpack.c.b16 %v380, %v372
  %v629 = vpack.c.b16 %v381, %v373
  %v630 = vpack.c.b16 %v382, %v374
  %v631 = vpack.c.b16 %v383, %v375
  %v632 = vpack.c.b16 %v384, %v376
  %v633 = vpack.c.b16 %v393, %v385
  %v634 = vpack.c.b16 %v394, %v386
  %v635 = vpack.c.b16 %v395, %v387
  %v636 = vpack.c.b16 %v396, %v388
  %v637 = vpack.c.b16 %v397, %v389
  %v638 = vpack.c.b16 %v398, %v390
  %v639 = vpack.c.b16 %v399, %v391
  %v640 = vpack.c.b16 %v400, %v392
  %v641 = vpack.c.b16 %v409, %v401
  %v642 = vpack.c.b16 %v410, %v402
  %v643 = vpack.c.b16 %v411, %v403
  %v644 = vpack.c.b16 %v412, %v404
  %v645 = vpack.c.b16 %v413, %v405
  %v646 = vpack.c.b16 %v414, %v406
  %v647 = vpack.c.b16 %v415, %v407
  %v648 = vpack.c.b16 %v416, %v408
  %v649 = vpack.c.b16 %v425, %v417
  %v650 = vpack.c.b16 %v426, %v418
  %v651 = vpack.c.b16 %v427, %v419
  %v652 = vpack.c.b16 %v428, %v420
  %v653 = vpack.c.b16 %v429, %v421
  %v654 = vpack.c.b16 %v430, %v422
  %v655 = vpack.c.b16 %v431, %v423
  %v656 = vpack.c.b16 %v432, %v424
  %v657 = vpack.c.b16 %v441, %v433
  %v658 = vpack.c.b16 %v442, %v434
  %v659 = vpack.c.b16 %v443, %v435
  %v660 = vpack.c.b16 %v444, %v436
  %v661 = vpack.c.b16 %v445, %v437
  %v662 = vpack.c.b16 %v446, %v438
  %v663 = vpack.c.b16 %v447, %v439
  %v664 = vpack.c.b16 %v448, %v440
  %v665 = vpack.c.b16 %v457, %v449
  %v666 = vpack.c.b16 %v458, %v450
  %v667 = vpack.c.b16 %v459, %v451
  %v668 = vpack.c.b16 %v460, %v452
  %v669 = vpack.c.b16 %v461, %v453
  %v670 = vpack.c.b16 %v462, %v454
  %v671 = vpack.c.b16 %v463, %v455
  %v672 = vpack.c.b16 %v464, %v456
  %v673 = vpack.c.b16 %v473, %v465
  %v674 = vpack.c.b16 %v474, %v466
  %v675 = vpack.c.b16 %v475, %v467
  %v676 = vpack.c.b16 %v476, %v468
  %v677 = vpack.c.b16 %v477, %v469
  %v678 = vpack.c.b16 %v478, %v470
  %v679 = vpack.c.b16 %v479, %v471
  %v680 = vpack.c.b16 %v480, %v472
  %v681 = vpack.c.b16 %v489, %v481
  %v682 = vpack.c.b16 %v490, %v482
  %v683 = vpack.c.b16 %v491, %v483
  %v684 = vpack.c.b16 %v492, %v484
  %v685 = vpack.c.b16 %v493, %v485
  %v686 = vpack.c.b16 %v494, %v486
  %v687 = vpack.c.b16 %v495, %v487
  %v688 = vpack.c.b16 %v496, %v488
  %v689 = vpack.c.b16 %v505, %v497
  %v690 = vpack.c.b16 %v506, %v498
  %v691 = vpack.c.b16 %v507, %v499
  %v692 = vpack.c.b16 %v508, %v500
  %v693 = vpack.c.b16 %v509, %v501
  %v694 = vpack.c.b16 %v510, %v502
  %v695 = vpack.c.b16 %v511, %v503
  %v696 = vpack.c.b16 %v512, %v504
  %v697 = vpack.c.b16 %v521, %v513
  %v698 = vpack.c.b16 %v522, %v514
  %v699 = vpack.c.b16 %v523, %v515
  %v700 = vpack.c.b16 %v524, %v516
  %v701 = vpack.c.b16 %v525, %v517
  %v702 = vpack.c.b16 %v526, %v518
  %v703 = vpack.c.b16 %v527, %v519
  %v704 = vpack.c.b16 %v528, %v520
  %v705 = vpack.c.b16 %v537, %v529
  %v706 = vpack.c.b16 %v538, %v530
  %v707 = vpack.c.b16 %v539, %v531
  %v708 = vpack.c.b16 %v540, %v532
  %v709 = vpack.c.b16 %v541, %v533
  %v710 = vpack.c.b16 %v542, %v534
  %v711 = vpack.c.b16 %v543, %v535
  %v712 = vpack.c.b16 %v544, %v536
  %v713 = vpack.c.b16 %v553, %v545
  %v714 = vpack.c.b16 %v554, %v546
  %v715 = vpack.c.b16 %v555, %v547
  %v716 = vpack.c.b16 %v556, %v548
  %v717 = vpack.c.b16 %v557, %v549
  %v718 = vpack.c.b16 %v558, %v550
  %v719 = vpack.c.b16 %v559, %v551
  %v720 = vpack.c.b16 %v560, %v552
  %v721 = vpack.c.b16 %v569, %v561
  %v722 = vpack.c.b16 %v570, %v562
  %v723 = vpack.c.b16 %v571, %v563
  %v724 = vpack.c.b16 %v572, %v564
  %v725 = vpack.c.b16 %v573, %v565
  %v726 = vpack.c.b16 %v574, %v566
  %v727 = vpack.c.b16 %v575, %v567
  %v728 = vpack.c.b16 %v576, %v568
  %v729 = vpack.c.b16 %v585, %v577
  %v730 = vpack.c.b16 %v586, %v578
  %v731 = vpack.c.b16 %v587, %v579
  %v732 = vpack.c.b16 %v588, %v580
  %v733 = vpack.c.b16 %v589, %v581
  %v734 = vpack.c.b16 %v590, %v582
  %v735 = vpack.c.b16 %v591, %v583
  %v736 = vpack.c.b16 %v592, %v584
  %v737 = vpack.c.b16 %v601, %v593
  %v738 = vpack.c.b16 %v602, %v594
  %v739 = vpack.c.b16 %v603, %v595
  %v740 = vpack.c.b16 %v604, %v596
  %v741 = vpack.c.b16 %v605, %v597
  %v742 = vpack.c.b16 %v606, %v598
  %v743 = vpack.c.b16 %v607, %v599
  %v744 = vpack.c.b16 %v608, %v600
  %v745 = vpack.c.b16 %v617, %v609
  %v746 = vpack.c.b16 %v618, %v610
  %v747 = vpack.c.b16 %v619, %v611
  %v748 = vpack.c.b16 %v620, %v612
  %v749 = vpack.c.b16 %v621, %v613
  %v750 = vpack.c.b16 %v622, %v614
  %v751 = vpack.c.b16 %v623, %v615
  %v752 = vpack.c.b16 %v624, %v616
  %881 = vmatprep.subr.bf16.mxu0 %v682
  %882 = vmatpush1.bf16.msra.mxu0 %v681
  %883 = vmatprep.subr.bf16.mxu0 %v674
  %884 = vmatpush1.bf16.msra.mxu0 %v673
  %885 = vmatprep.subr.bf16.mxu0 %v666
  %886 = vmatpush1.bf16.msra.mxu0 %v665
  %887 = vmatprep.subr.bf16.mxu0 %v658
  %888 = vmatpush1.bf16.msra.mxu0 %v657
  %889 = vmatprep.subr.bf16.mxu0 %v650
  %890 = vmatpush1.bf16.msra.mxu0 %v649
  %891 = vmatprep.subr.bf16.mxu0 %v642
  %892 = vmatpush1.bf16.msra.mxu0 %v641
  %893 = vmatprep.subr.bf16.mxu0 %v634
  %894 = vmatpush1.bf16.msra.mxu0 %v633
  %895 = vmatprep.subr.bf16.mxu0 %v626
  %896 = vmatpush1.bf16.msra.mxu0 %v625
  %897 = vmatprep.subr.bf16.mxu0 %v746
  %898 = vmatpush2.bf16.msra.mxu0 %v745
  %899 = vmatprep.subr.bf16.mxu0 %v738
  %900 = vmatpush2.bf16.msra.mxu0 %v737
  %901 = vmatprep.subr.bf16.mxu0 %v730
  %902 = vmatpush2.bf16.msra.mxu0 %v729
  %903 = vmatprep.subr.bf16.mxu0 %v722
  %904 = vmatpush2.bf16.msra.mxu0 %v721
  %905 = vmatprep.subr.bf16.mxu0 %v714
  %906 = vmatpush2.bf16.msra.mxu0 %v713
  %907 = vmatprep.subr.bf16.mxu0 %v706
  %908 = vmatpush2.bf16.msra.mxu0 %v705
  %909 = vmatprep.subr.bf16.mxu0 %v698
  %910 = vmatpush2.bf16.msra.mxu0 %v697
  %911 = vmatprep.subr.bf16.mxu0 %v690
  %912 = vmatpush2.bf16.msra.mxu0 %v689
  %913 = vmatprep.mubr.bf16.mxu0 %v226
  %914 = vmatmul.mubr.bf16.gmra.mxu0 %v225
  %v915 = vpop.f32.mrf.mxu0
  %v916 = vadd.f32 %v164, %v915
  %v917 = vpop.f32.mrf.mxu0
  %v918 = vadd.f32 %v168, %v917
  %v919 = vpop.f32.mrf.mxu0
  %v920 = vadd.f32 %v164, %v919
  %v921 = vpop.f32.mrf.mxu0
  %v922 = vadd.f32 %v168, %v921
  %923 = vmatprep.mubr.bf16.mxu0 %v228
  %924 = vmatmul.mubr.bf16.gmra.mxu0 %v227
  %v925 = vpop.f32.mrf.mxu0
  %v926 = vadd.f32 %v164, %v925
  %v927 = vpop.f32.mrf.mxu0
  %v928 = vadd.f32 %v168, %v927
  %v929 = vpop.f32.mrf.mxu0
  %v930 = vadd.f32 %v164, %v929
  %v931 = vpop.f32.mrf.mxu0
  %v932 = vadd.f32 %v168, %v931
  %933 = vmatprep.mubr.bf16.mxu0 %v230
  %934 = vmatmul.mubr.bf16.gmra.mxu0 %v229
  %v935 = vpop.f32.mrf.mxu0
  %v936 = vadd.f32 %v164, %v935
  %v937 = vpop.f32.mrf.mxu0
  %v938 = vadd.f32 %v168, %v937
  %v939 = vpop.f32.mrf.mxu0
  %v940 = vadd.f32 %v164, %v939
  %v941 = vpop.f32.mrf.mxu0
  %v942 = vadd.f32 %v168, %v941
  %943 = vmatprep.mubr.bf16.mxu0 %v232
  %944 = vmatmul.mubr.bf16.gmra.mxu0 %v231
  %v945 = vpop.f32.mrf.mxu0
  %v946 = vadd.f32 %v164, %v945
  %v947 = vpop.f32.mrf.mxu0
  %v948 = vadd.f32 %v168, %v947
  %v949 = vpop.f32.mrf.mxu0
  %v950 = vadd.f32 %v164, %v949
  %v951 = vpop.f32.mrf.mxu0
  %v952 = vadd.f32 %v168, %v951
  %953 = vdwg.mxu0
  %954 = vmatprep.subr.bf16.mxu0 %v684
  %955 = vmatpush1.bf16.msra.mxu0 %v683
  %956 = vmatprep.subr.bf16.mxu0 %v676
  %957 = vmatpush1.bf16.msra.mxu0 %v675
  %958 = vmatprep.subr.bf16.mxu0 %v668
  %959 = vmatpush1.bf16.msra.mxu0 %v667
  %960 = vmatprep.subr.bf16.mxu0 %v660
  %961 = vmatpush1.bf16.msra.mxu0 %v659
  %962 = vmatprep.subr.bf16.mxu0 %v652
  %963 = vmatpush1.bf16.msra.mxu0 %v651
  %964 = vmatprep.subr.bf16.mxu0 %v644
  %965 = vmatpush1.bf16.msra.mxu0 %v643
  %966 = vmatprep.subr.bf16.mxu0 %v636
  %967 = vmatpush1.bf16.msra.mxu0 %v635
  %968 = vmatprep.subr.bf16.mxu0 %v628
  %969 = vmatpush1.bf16.msra.mxu0 %v627
  %970 = vmatprep.subr.bf16.mxu0 %v748
  %971 = vmatpush2.bf16.msra.mxu0 %v747
  %972 = vmatprep.subr.bf16.mxu0 %v740
  %973 = vmatpush2.bf16.msra.mxu0 %v739
  %974 = vmatprep.subr.bf16.mxu0 %v732
  %975 = vmatpush2.bf16.msra.mxu0 %v731
  %976 = vmatprep.subr.bf16.mxu0 %v724
  %977 = vmatpush2.bf16.msra.mxu0 %v723
  %978 = vmatprep.subr.bf16.mxu0 %v716
  %979 = vmatpush2.bf16.msra.mxu0 %v715
  %980 = vmatprep.subr.bf16.mxu0 %v708
  %981 = vmatpush2.bf16.msra.mxu0 %v707
  %982 = vmatprep.subr.bf16.mxu0 %v700
  %983 = vmatpush2.bf16.msra.mxu0 %v699
  %984 = vmatprep.subr.bf16.mxu0 %v692
  %985 = vmatpush2.bf16.msra.mxu0 %v691
  %986 = vmatprep.mubr.bf16.mxu0 %v226
  %987 = vmatmul.mubr.bf16.gmra.mxu0 %v225
  %v988 = vpop.f32.mrf.mxu0
  %v989 = vadd.f32 %v172, %v988
  %v990 = vpop.f32.mrf.mxu0
  %v991 = vadd.f32 %v176, %v990
  %v992 = vpop.f32.mrf.mxu0
  %v993 = vadd.f32 %v172, %v992
  %v994 = vpop.f32.mrf.mxu0
  %v995 = vadd.f32 %v176, %v994
  %996 = vmatprep.mubr.bf16.mxu0 %v228
  %997 = vmatmul.mubr.bf16.gmra.mxu0 %v227
  %v998 = vpop.f32.mrf.mxu0
  %v999 = vadd.f32 %v172, %v998
  %v1000 = vpop.f32.mrf.mxu0
  %v1001 = vadd.f32 %v176, %v1000
  %v1002 = vpop.f32.mrf.mxu0
  %v1003 = vadd.f32 %v172, %v1002
  %v1004 = vpop.f32.mrf.mxu0
  %v1005 = vadd.f32 %v176, %v1004
  %1006 = vmatprep.mubr.bf16.mxu0 %v230
  %1007 = vmatmul.mubr.bf16.gmra.mxu0 %v229
  %v1008 = vpop.f32.mrf.mxu0
  %v1009 = vadd.f32 %v172, %v1008
  %v1010 = vpop.f32.mrf.mxu0
  %v1011 = vadd.f32 %v176, %v1010
  %v1012 = vpop.f32.mrf.mxu0
  %v1013 = vadd.f32 %v172, %v1012
  %v1014 = vpop.f32.mrf.mxu0
  %v1015 = vadd.f32 %v176, %v1014
  %1016 = vmatprep.mubr.bf16.mxu0 %v232
  %1017 = vmatmul.mubr.bf16.gmra.mxu0 %v231
  %v1018 = vpop.f32.mrf.mxu0
  %v1019 = vadd.f32 %v172, %v1018
  %v1020 = vpop.f32.mrf.mxu0
  %v1021 = vadd.f32 %v176, %v1020
  %v1022 = vpop.f32.mrf.mxu0
  %v1023 = vadd.f32 %v172, %v1022
  %v1024 = vpop.f32.mrf.mxu0
  %v1025 = vadd.f32 %v176, %v1024
  %1026 = vdwg.mxu0
  %1027 = vmatprep.subr.bf16.mxu0 %v686
  %1028 = vmatpush1.bf16.msra.mxu0 %v685
  %1029 = vmatprep.subr.bf16.mxu0 %v678
  %1030 = vmatpush1.bf16.msra.mxu0 %v677
  %1031 = vmatprep.subr.bf16.mxu0 %v670
  %1032 = vmatpush1.bf16.msra.mxu0 %v669
  %1033 = vmatprep.subr.bf16.mxu0 %v662
  %1034 = vmatpush1.bf16.msra.mxu0 %v661
  %1035 = vmatprep.subr.bf16.mxu0 %v654
  %1036 = vmatpush1.bf16.msra.mxu0 %v653
  %1037 = vmatprep.subr.bf16.mxu0 %v646
  %1038 = vmatpush1.bf16.msra.mxu0 %v645
  %1039 = vmatprep.subr.bf16.mxu0 %v638
  %1040 = vmatpush1.bf16.msra.mxu0 %v637
  %1041 = vmatprep.subr.bf16.mxu0 %v630
  %1042 = vmatpush1.bf16.msra.mxu0 %v629
  %1043 = vmatprep.subr.bf16.mxu0 %v750
  %1044 = vmatpush2.bf16.msra.mxu0 %v749
  %1045 = vmatprep.subr.bf16.mxu0 %v742
  %1046 = vmatpush2.bf16.msra.mxu0 %v741
  %1047 = vmatprep.subr.bf16.mxu0 %v734
  %1048 = vmatpush2.bf16.msra.mxu0 %v733
  %1049 = vmatprep.subr.bf16.mxu0 %v726
  %1050 = vmatpush2.bf16.msra.mxu0 %v725
  %1051 = vmatprep.subr.bf16.mxu0 %v718
  %1052 = vmatpush2.bf16.msra.mxu0 %v717
  %1053 = vmatprep.subr.bf16.mxu0 %v710
  %1054 = vmatpush2.bf16.msra.mxu0 %v709
  %1055 = vmatprep.subr.bf16.mxu0 %v702
  %1056 = vmatpush2.bf16.msra.mxu0 %v701
  %1057 = vmatprep.subr.bf16.mxu0 %v694
  %1058 = vmatpush2.bf16.msra.mxu0 %v693
  %1059 = vmatprep.mubr.bf16.mxu0 %v226
  %1060 = vmatmul.mubr.bf16.gmra.mxu0 %v225
  %v1061 = vpop.f32.mrf.mxu0
  %v1062 = vadd.f32 %v180, %v1061
  %v1063 = vpop.f32.mrf.mxu0
  %v1064 = vadd.f32 %v184, %v1063
  %v1065 = vpop.f32.mrf.mxu0
  %v1066 = vadd.f32 %v180, %v1065
  %v1067 = vpop.f32.mrf.mxu0
  %v1068 = vadd.f32 %v184, %v1067
  %1069 = vmatprep.mubr.bf16.mxu0 %v228
  %1070 = vmatmul.mubr.bf16.gmra.mxu0 %v227
  %v1071 = vpop.f32.mrf.mxu0
  %v1072 = vadd.f32 %v180, %v1071
  %v1073 = vpop.f32.mrf.mxu0
  %v1074 = vadd.f32 %v184, %v1073
  %v1075 = vpop.f32.mrf.mxu0
  %v1076 = vadd.f32 %v180, %v1075
  %v1077 = vpop.f32.mrf.mxu0
  %v1078 = vadd.f32 %v184, %v1077
  %1079 = vmatprep.mubr.bf16.mxu0 %v230
  %1080 = vmatmul.mubr.bf16.gmra.mxu0 %v229
  %v1081 = vpop.f32.mrf.mxu0
  %v1082 = vadd.f32 %v180, %v1081
  %v1083 = vpop.f32.mrf.mxu0
  %v1084 = vadd.f32 %v184, %v1083
  %v1085 = vpop.f32.mrf.mxu0
  %v1086 = vadd.f32 %v180, %v1085
  %v1087 = vpop.f32.mrf.mxu0
  %v1088 = vadd.f32 %v184, %v1087
  %1089 = vmatprep.mubr.bf16.mxu0 %v232
  %1090 = vmatmul.mubr.bf16.gmra.mxu0 %v231
  %v1091 = vpop.f32.mrf.mxu0
  %v1092 = vadd.f32 %v180, %v1091
  %v1093 = vpop.f32.mrf.mxu0
  %v1094 = vadd.f32 %v184, %v1093
  %v1095 = vpop.f32.mrf.mxu0
  %v1096 = vadd.f32 %v180, %v1095
  %v1097 = vpop.f32.mrf.mxu0
  %v1098 = vadd.f32 %v184, %v1097
  %1099 = vdwg.mxu0
  %1100 = vmatprep.subr.bf16.mxu0 %v688
  %1101 = vmatpush1.bf16.msra.mxu0 %v687
  %1102 = vmatprep.subr.bf16.mxu0 %v680
  %1103 = vmatpush1.bf16.msra.mxu0 %v679
  %1104 = vmatprep.subr.bf16.mxu0 %v672
  %1105 = vmatpush1.bf16.msra.mxu0 %v671
  %1106 = vmatprep.subr.bf16.mxu0 %v664
  %1107 = vmatpush1.bf16.msra.mxu0 %v663
  %1108 = vmatprep.subr.bf16.mxu0 %v656
  %1109 = vmatpush1.bf16.msra.mxu0 %v655
  %1110 = vmatprep.subr.bf16.mxu0 %v648
  %1111 = vmatpush1.bf16.msra.mxu0 %v647
  %1112 = vmatprep.subr.bf16.mxu0 %v640
  %1113 = vmatpush1.bf16.msra.mxu0 %v639
  %1114 = vmatprep.subr.bf16.mxu0 %v632
  %1115 = vmatpush1.bf16.msra.mxu0 %v631
  %1116 = vmatprep.subr.bf16.mxu0 %v752
  %1117 = vmatpush2.bf16.msra.mxu0 %v751
  %1118 = vmatprep.subr.bf16.mxu0 %v744
  %1119 = vmatpush2.bf16.msra.mxu0 %v743
  %1120 = vmatprep.subr.bf16.mxu0 %v736
  %1121 = vmatpush2.bf16.msra.mxu0 %v735
  %1122 = vmatprep.subr.bf16.mxu0 %v728
  %1123 = vmatpush2.bf16.msra.mxu0 %v727
  %1124 = vmatprep.subr.bf16.mxu0 %v720
  %1125 = vmatpush2.bf16.msra.mxu0 %v719
  %1126 = vmatprep.subr.bf16.mxu0 %v712
  %1127 = vmatpush2.bf16.msra.mxu0 %v711
  %1128 = vmatprep.subr.bf16.mxu0 %v704
  %1129 = vmatpush2.bf16.msra.mxu0 %v703
  %1130 = vmatprep.subr.bf16.mxu0 %v696
  %1131 = vmatpush2.bf16.msra.mxu0 %v695
  %1132 = vmatprep.mubr.bf16.mxu0 %v226
  %1133 = vmatmul.mubr.bf16.gmra.mxu0 %v225
  %v1134 = vpop.f32.mrf.mxu0
  %v1135 = vadd.f32 %v188, %v1134
  %v1136 = vpop.f32.mrf.mxu0
  %v1137 = vadd.f32 %v192, %v1136
  %v1138 = vpop.f32.mrf.mxu0
  %v1139 = vadd.f32 %v188, %v1138
  %v1140 = vpop.f32.mrf.mxu0
  %v1141 = vadd.f32 %v192, %v1140
  %1142 = vmatprep.mubr.bf16.mxu0 %v228
  %1143 = vmatmul.mubr.bf16.gmra.mxu0 %v227
  %v1144 = vpop.f32.mrf.mxu0
  %v1145 = vadd.f32 %v188, %v1144
  %v1146 = vpop.f32.mrf.mxu0
  %v1147 = vadd.f32 %v192, %v1146
  %v1148 = vpop.f32.mrf.mxu0
  %v1149 = vadd.f32 %v188, %v1148
  %v1150 = vpop.f32.mrf.mxu0
  %v1151 = vadd.f32 %v192, %v1150
  %1152 = vmatprep.mubr.bf16.mxu0 %v230
  %1153 = vmatmul.mubr.bf16.gmra.mxu0 %v229
  %v1154 = vpop.f32.mrf.mxu0
  %v1155 = vadd.f32 %v188, %v1154
  %v1156 = vpop.f32.mrf.mxu0
  %v1157 = vadd.f32 %v192, %v1156
  %v1158 = vpop.f32.mrf.mxu0
  %v1159 = vadd.f32 %v188, %v1158
  %v1160 = vpop.f32.mrf.mxu0
  %v1161 = vadd.f32 %v192, %v1160
  %1162 = vmatprep.mubr.bf16.mxu0 %v232
  %1163 = vmatmul.mubr.bf16.gmra.mxu0 %v231
  %v1164 = vpop.f32.mrf.mxu0
  %v1165 = vadd.f32 %v188, %v1164
  %v1166 = vpop.f32.mrf.mxu0
  %v1167 = vadd.f32 %v192, %v1166
  %v1168 = vpop.f32.mrf.mxu0
  %v1169 = vadd.f32 %v188, %v1168
  %v1170 = vpop.f32.mrf.mxu0
  %v1171 = vadd.f32 %v192, %v1170
  %1172 = vdwg.mxu0
  %1173 = vst [vmem:[#allocation2] sm:$0xff] %v916
  %1174 = vst [vmem:[#allocation2 + $0x8] sm:$0xff] %v918
  %1175 = vst [vmem:[#allocation2 + $0x10] sm:$0xff] %v989
  %1176 = vst [vmem:[#allocation2 + $0x18] sm:$0xff] %v991
  %1177 = vst [vmem:[#allocation2 + $0x20] sm:$0xff] %v1062
  %1178 = vst [vmem:[#allocation2 + $0x28] sm:$0xff] %v1064
  %1179 = vst [vmem:[#allocation2 + $0x30] sm:$0xff] %v1135
  %1180 = vst [vmem:[#allocation2 + $0x38] sm:$0xff] %v1137
  %1181 = vst [vmem:[#allocation2 + $0x40] sm:$0xff] %v920
  %1182 = vst [vmem:[#allocation2 + $0x48] sm:$0xff] %v922
  %1183 = vst [vmem:[#allocation2 + $0x50] sm:$0xff] %v993
  %1184 = vst [vmem:[#allocation2 + $0x58] sm:$0xff] %v995
  %1185 = vst [vmem:[#allocation2 + $0x60] sm:$0xff] %v1066
  %1186 = vst [vmem:[#allocation2 + $0x68] sm:$0xff] %v1068
  %1187 = vst [vmem:[#allocation2 + $0x70] sm:$0xff] %v1139
  %1188 = vst [vmem:[#allocation2 + $0x78] sm:$0xff] %v1141
  %1189 = vst [vmem:[#allocation2 + $0x80] sm:$0xff] %v926
  %1190 = vst [vmem:[#allocation2 + $0x88] sm:$0xff] %v928
  %1191 = vst [vmem:[#allocation2 + $0x90] sm:$0xff] %v999
  %1192 = vst [vmem:[#allocation2 + $0x98] sm:$0xff] %v1001
  %1193 = vst [vmem:[#allocation2 + $0xa0] sm:$0xff] %v1072
  %1194 = vst [vmem:[#allocation2 + $0xa8] sm:$0xff] %v1074
  %1195 = vst [vmem:[#allocation2 + $0xb0] sm:$0xff] %v1145
  %1196 = vst [vmem:[#allocation2 + $0xb8] sm:$0xff] %v1147
  %1197 = vst [vmem:[#allocation2 + $0xc0] sm:$0xff] %v930
  %1198 = vst [vmem:[#allocation2 + $0xc8] sm:$0xff] %v932
  %1199 = vst [vmem:[#allocation2 + $0xd0] sm:$0xff] %v1003
  %1200 = vst [vmem:[#allocation2 + $0xd8] sm:$0xff] %v1005
  %1201 = vst [vmem:[#allocation2 + $0xe0] sm:$0xff] %v1076
  %1202 = vst [vmem:[#allocation2 + $0xe8] sm:$0xff] %v1078
  %1203 = vst [vmem:[#allocation2 + $0xf0] sm:$0xff] %v1149
  %1204 = vst [vmem:[#allocation2 + $0xf8] sm:$0xff] %v1151
  %1205 = vst [vmem:[#allocation2 + $0x100] sm:$0xff] %v936
  %1206 = vst [vmem:[#allocation2 + $0x108] sm:$0xff] %v938
  %1207 = vst [vmem:[#allocation2 + $0x110] sm:$0xff] %v1009
  %1208 = vst [vmem:[#allocation2 + $0x118] sm:$0xff] %v1011
  %1209 = vst [vmem:[#allocation2 + $0x120] sm:$0xff] %v1082
  %1210 = vst [vmem:[#allocation2 + $0x128] sm:$0xff] %v1084
  %1211 = vst [vmem:[#allocation2 + $0x130] sm:$0xff] %v1155
  %1212 = vst [vmem:[#allocation2 + $0x138] sm:$0xff] %v1157
  %1213 = vst [vmem:[#allocation2 + $0x140] sm:$0xff] %v940
  %1214 = vst [vmem:[#allocation2 + $0x148] sm:$0xff] %v942
  %1215 = vst [vmem:[#allocation2 + $0x150] sm:$0xff] %v1013
  %1216 = vst [vmem:[#allocation2 + $0x158] sm:$0xff] %v1015
  %1217 = vst [vmem:[#allocation2 + $0x160] sm:$0xff] %v1086
  %1218 = vst [vmem:[#allocation2 + $0x168] sm:$0xff] %v1088
  %1219 = vst [vmem:[#allocation2 + $0x170] sm:$0xff] %v1159
  %1220 = vst [vmem:[#allocation2 + $0x178] sm:$0xff] %v1161
  %1221 = vst [vmem:[#allocation2 + $0x180] sm:$0xff] %v946
  %1222 = vst [vmem:[#allocation2 + $0x188] sm:$0xff] %v948
  %1223 = vst [vmem:[#allocation2 + $0x190] sm:$0xff] %v1019
  %1224 = vst [vmem:[#allocation2 + $0x198] sm:$0xff] %v1021
  %1225 = vst [vmem:[#allocation2 + $0x1a0] sm:$0xff] %v1092
  %1226 = vst [vmem:[#allocation2 + $0x1a8] sm:$0xff] %v1094
  %1227 = vst [vmem:[#allocation2 + $0x1b0] sm:$0xff] %v1165
  %1228 = vst [vmem:[#allocation2 + $0x1b8] sm:$0xff] %v1167
  %1229 = vst [vmem:[#allocation2 + $0x1c0] sm:$0xff] %v950
  %1230 = vst [vmem:[#allocation2 + $0x1c8] sm:$0xff] %v952
  %1231 = vst [vmem:[#allocation2 + $0x1d0] sm:$0xff] %v1023
  %1232 = vst [vmem:[#allocation2 + $0x1d8] sm:$0xff] %v1025
  %1233 = vst [vmem:[#allocation2 + $0x1e0] sm:$0xff] %v1096
  %1234 = vst [vmem:[#allocation2 + $0x1e8] sm:$0xff] %v1098
  %1235 = vst [vmem:[#allocation2 + $0x1f0] sm:$0xff] %v1169
  %1236 = vst [vmem:[#allocation2 + $0x1f8] sm:$0xff] %v1171
  %v1237 = vld [vmem:[%s0] sm:$0xff]
  %s1238 = smul.u32 0, 8
  %s1239 = smul.addr %s1238, 8
  %s1240 = scalar_lea.vmem [#allocation2], %s1239
  %v1241 = vld [vmem:[%s1240] sm:$0xff]
  %v1242 = vld [vmem:[%s1240 + $0x8] sm:$0xff]
  %v1243 = vld [vmem:[%s1240 + $0x10] sm:$0xff]
  %v1244 = vld [vmem:[%s1240 + $0x18] sm:$0xff]
  %v1245 = vld [vmem:[%s1240 + $0x20] sm:$0xff]
  %v1246 = vld [vmem:[%s1240 + $0x28] sm:$0xff]
  %v1247 = vld [vmem:[%s1240 + $0x30] sm:$0xff]
  %v1248 = vld [vmem:[%s1240 + $0x38] sm:$0xff]
  %v1249 = vld [vmem:[%s3] sm:$0xff]
  %v1250 = vld [vmem:[%s3 + $0x8] sm:$0xff]
  %v1251 = vld [vmem:[%s3 + $0x10] sm:$0xff]
  %v1252 = vld [vmem:[%s3 + $0x18] sm:$0xff]
  %v1253 = vld [vmem:[%s3 + $0x20] sm:$0xff]
  %v1254 = vld [vmem:[%s3 + $0x28] sm:$0xff]
  %v1255 = vld [vmem:[%s3 + $0x30] sm:$0xff]
  %v1256 = vld [vmem:[%s3 + $0x38] sm:$0xff]
  %v1257 = vld [vmem:[%s3 + $0x40] sm:$0xff]
  %v1258 = vld [vmem:[%s3 + $0x48] sm:$0xff]
  %v1259 = vld [vmem:[%s3 + $0x50] sm:$0xff]
  %v1260 = vld [vmem:[%s3 + $0x58] sm:$0xff]
  %v1261 = vld [vmem:[%s3 + $0x60] sm:$0xff]
  %v1262 = vld [vmem:[%s3 + $0x68] sm:$0xff]
  %v1263 = vld [vmem:[%s3 + $0x70] sm:$0xff]
  %v1264 = vld [vmem:[%s3 + $0x78] sm:$0xff]
  %v1265 = vld [vmem:[%s3 + $0x80] sm:$0xff]
  %v1266 = vld [vmem:[%s3 + $0x88] sm:$0xff]
  %v1267 = vld [vmem:[%s3 + $0x90] sm:$0xff]
  %v1268 = vld [vmem:[%s3 + $0x98] sm:$0xff]
  %v1269 = vld [vmem:[%s3 + $0xa0] sm:$0xff]
  %v1270 = vld [vmem:[%s3 + $0xa8] sm:$0xff]
  %v1271 = vld [vmem:[%s3 + $0xb0] sm:$0xff]
  %v1272 = vld [vmem:[%s3 + $0xb8] sm:$0xff]
  %v1273 = vld [vmem:[%s3 + $0xc0] sm:$0xff]
  %v1274 = vld [vmem:[%s3 + $0xc8] sm:$0xff]
  %v1275 = vld [vmem:[%s3 + $0xd0] sm:$0xff]
  %v1276 = vld [vmem:[%s3 + $0xd8] sm:$0xff]
  %v1277 = vld [vmem:[%s3 + $0xe0] sm:$0xff]
  %v1278 = vld [vmem:[%s3 + $0xe8] sm:$0xff]
  %v1279 = vld [vmem:[%s3 + $0xf0] sm:$0xff]
  %v1280 = vld [vmem:[%s3 + $0xf8] sm:$0xff]
  %v1281 = vld [vmem:[%s3 + $0x100] sm:$0xff]
  %v1282 = vld [vmem:[%s3 + $0x108] sm:$0xff]
  %v1283 = vld [vmem:[%s3 + $0x110] sm:$0xff]
  %v1284 = vld [vmem:[%s3 + $0x118] sm:$0xff]
  %v1285 = vld [vmem:[%s3 + $0x120] sm:$0xff]
  %v1286 = vld [vmem:[%s3 + $0x128] sm:$0xff]
  %v1287 = vld [vmem:[%s3 + $0x130] sm:$0xff]
  %v1288 = vld [vmem:[%s3 + $0x138] sm:$0xff]
  %v1289 = vld [vmem:[%s3 + $0x140] sm:$0xff]
  %v1290 = vld [vmem:[%s3 + $0x148] sm:$0xff]
  %v1291 = vld [vmem:[%s3 + $0x150] sm:$0xff]
  %v1292 = vld [vmem:[%s3 + $0x158] sm:$0xff]
  %v1293 = vld [vmem:[%s3 + $0x160] sm:$0xff]
  %v1294 = vld [vmem:[%s3 + $0x168] sm:$0xff]
  %v1295 = vld [vmem:[%s3 + $0x170] sm:$0xff]
  %v1296 = vld [vmem:[%s3 + $0x178] sm:$0xff]
  %v1297 = vld [vmem:[%s3 + $0x180] sm:$0xff]
  %v1298 = vld [vmem:[%s3 + $0x188] sm:$0xff]
  %v1299 = vld [vmem:[%s3 + $0x190] sm:$0xff]
  %v1300 = vld [vmem:[%s3 + $0x198] sm:$0xff]
  %v1301 = vld [vmem:[%s3 + $0x1a0] sm:$0xff]
  %v1302 = vld [vmem:[%s3 + $0x1a8] sm:$0xff]
  %v1303 = vld [vmem:[%s3 + $0x1b0] sm:$0xff]
  %v1304 = vld [vmem:[%s3 + $0x1b8] sm:$0xff]
  %v1305 = vld [vmem:[%s3 + $0x1c0] sm:$0xff]
  %v1306 = vld [vmem:[%s3 + $0x1c8] sm:$0xff]
  %v1307 = vld [vmem:[%s3 + $0x1d0] sm:$0xff]
  %v1308 = vld [vmem:[%s3 + $0x1d8] sm:$0xff]
  %v1309 = vld [vmem:[%s3 + $0x1e0] sm:$0xff]
  %v1310 = vld [vmem:[%s3 + $0x1e8] sm:$0xff]
  %v1311 = vld [vmem:[%s3 + $0x1f0] sm:$0xff]
  %v1312 = vld [vmem:[%s3 + $0x1f8] sm:$0xff]
  %v1313 = vld [vmem:[%s3 + $0x200] sm:$0xff]
  %v1314 = vld [vmem:[%s3 + $0x208] sm:$0xff]
  %v1315 = vld [vmem:[%s3 + $0x210] sm:$0xff]
  %v1316 = vld [vmem:[%s3 + $0x218] sm:$0xff]
  %v1317 = vld [vmem:[%s3 + $0x220] sm:$0xff]
  %v1318 = vld [vmem:[%s3 + $0x228] sm:$0xff]
  %v1319 = vld [vmem:[%s3 + $0x230] sm:$0xff]
  %v1320 = vld [vmem:[%s3 + $0x238] sm:$0xff]
  %v1321 = vld [vmem:[%s3 + $0x240] sm:$0xff]
  %v1322 = vld [vmem:[%s3 + $0x248] sm:$0xff]
  %v1323 = vld [vmem:[%s3 + $0x250] sm:$0xff]
  %v1324 = vld [vmem:[%s3 + $0x258] sm:$0xff]
  %v1325 = vld [vmem:[%s3 + $0x260] sm:$0xff]
  %v1326 = vld [vmem:[%s3 + $0x268] sm:$0xff]
  %v1327 = vld [vmem:[%s3 + $0x270] sm:$0xff]
  %v1328 = vld [vmem:[%s3 + $0x278] sm:$0xff]
  %v1329 = vld [vmem:[%s3 + $0x280] sm:$0xff]
  %v1330 = vld [vmem:[%s3 + $0x288] sm:$0xff]
  %v1331 = vld [vmem:[%s3 + $0x290] sm:$0xff]
  %v1332 = vld [vmem:[%s3 + $0x298] sm:$0xff]
  %v1333 = vld [vmem:[%s3 + $0x2a0] sm:$0xff]
  %v1334 = vld [vmem:[%s3 + $0x2a8] sm:$0xff]
  %v1335 = vld [vmem:[%s3 + $0x2b0] sm:$0xff]
  %v1336 = vld [vmem:[%s3 + $0x2b8] sm:$0xff]
  %v1337 = vld [vmem:[%s3 + $0x2c0] sm:$0xff]
  %v1338 = vld [vmem:[%s3 + $0x2c8] sm:$0xff]
  %v1339 = vld [vmem:[%s3 + $0x2d0] sm:$0xff]
  %v1340 = vld [vmem:[%s3 + $0x2d8] sm:$0xff]
  %v1341 = vld [vmem:[%s3 + $0x2e0] sm:$0xff]
  %v1342 = vld [vmem:[%s3 + $0x2e8] sm:$0xff]
  %v1343 = vld [vmem:[%s3 + $0x2f0] sm:$0xff]
  %v1344 = vld [vmem:[%s3 + $0x2f8] sm:$0xff]
  %v1345 = vld [vmem:[%s3 + $0x300] sm:$0xff]
  %v1346 = vld [vmem:[%s3 + $0x308] sm:$0xff]
  %v1347 = vld [vmem:[%s3 + $0x310] sm:$0xff]
  %v1348 = vld [vmem:[%s3 + $0x318] sm:$0xff]
  %v1349 = vld [vmem:[%s3 + $0x320] sm:$0xff]
  %v1350 = vld [vmem:[%s3 + $0x328] sm:$0xff]
  %v1351 = vld [vmem:[%s3 + $0x330] sm:$0xff]
  %v1352 = vld [vmem:[%s3 + $0x338] sm:$0xff]
  %v1353 = vld [vmem:[%s3 + $0x340] sm:$0xff]
  %v1354 = vld [vmem:[%s3 + $0x348] sm:$0xff]
  %v1355 = vld [vmem:[%s3 + $0x350] sm:$0xff]
  %v1356 = vld [vmem:[%s3 + $0x358] sm:$0xff]
  %v1357 = vld [vmem:[%s3 + $0x360] sm:$0xff]
  %v1358 = vld [vmem:[%s3 + $0x368] sm:$0xff]
  %v1359 = vld [vmem:[%s3 + $0x370] sm:$0xff]
  %v1360 = vld [vmem:[%s3 + $0x378] sm:$0xff]
  %v1361 = vld [vmem:[%s3 + $0x380] sm:$0xff]
  %v1362 = vld [vmem:[%s3 + $0x388] sm:$0xff]
  %v1363 = vld [vmem:[%s3 + $0x390] sm:$0xff]
  %v1364 = vld [vmem:[%s3 + $0x398] sm:$0xff]
  %v1365 = vld [vmem:[%s3 + $0x3a0] sm:$0xff]
  %v1366 = vld [vmem:[%s3 + $0x3a8] sm:$0xff]
  %v1367 = vld [vmem:[%s3 + $0x3b0] sm:$0xff]
  %v1368 = vld [vmem:[%s3 + $0x3b8] sm:$0xff]
  %v1369 = vld [vmem:[%s3 + $0x3c0] sm:$0xff]
  %v1370 = vld [vmem:[%s3 + $0x3c8] sm:$0xff]
  %v1371 = vld [vmem:[%s3 + $0x3d0] sm:$0xff]
  %v1372 = vld [vmem:[%s3 + $0x3d8] sm:$0xff]
  %v1373 = vld [vmem:[%s3 + $0x3e0] sm:$0xff]
  %v1374 = vld [vmem:[%s3 + $0x3e8] sm:$0xff]
  %v1375 = vld [vmem:[%s3 + $0x3f0] sm:$0xff]
  %v1376 = vld [vmem:[%s3 + $0x3f8] sm:$0xff]
  %v1505 = vunpack.c.l.b16 %v1249
  %v1506 = vunpack.c.h.b16 %v1249
  %v1507 = vunpack.c.l.b16 %v1250
  %v1508 = vunpack.c.h.b16 %v1250
  %v1509 = vunpack.c.l.b16 %v1251
  %v1510 = vunpack.c.h.b16 %v1251
  %v1511 = vunpack.c.l.b16 %v1252
  %v1512 = vunpack.c.h.b16 %v1252
  %v1513 = vunpack.c.l.b16 %v1253
  %v1514 = vunpack.c.h.b16 %v1253
  %v1515 = vunpack.c.l.b16 %v1254
  %v1516 = vunpack.c.h.b16 %v1254
  %v1517 = vunpack.c.l.b16 %v1255
  %v1518 = vunpack.c.h.b16 %v1255
  %v1519 = vunpack.c.l.b16 %v1256
  %v1520 = vunpack.c.h.b16 %v1256
  %v1521 = vunpack.c.l.b16 %v1257
  %v1522 = vunpack.c.h.b16 %v1257
  %v1523 = vunpack.c.l.b16 %v1258
  %v1524 = vunpack.c.h.b16 %v1258
  %v1525 = vunpack.c.l.b16 %v1259
  %v1526 = vunpack.c.h.b16 %v1259
  %v1527 = vunpack.c.l.b16 %v1260
  %v1528 = vunpack.c.h.b16 %v1260
  %v1529 = vunpack.c.l.b16 %v1261
  %v1530 = vunpack.c.h.b16 %v1261
  %v1531 = vunpack.c.l.b16 %v1262
  %v1532 = vunpack.c.h.b16 %v1262
  %v1533 = vunpack.c.l.b16 %v1263
  %v1534 = vunpack.c.h.b16 %v1263
  %v1535 = vunpack.c.l.b16 %v1264
  %v1536 = vunpack.c.h.b16 %v1264
  %v1537 = vunpack.c.l.b16 %v1265
  %v1538 = vunpack.c.h.b16 %v1265
  %v1539 = vunpack.c.l.b16 %v1266
  %v1540 = vunpack.c.h.b16 %v1266
  %v1541 = vunpack.c.l.b16 %v1267
  %v1542 = vunpack.c.h.b16 %v1267
  %v1543 = vunpack.c.l.b16 %v1268
  %v1544 = vunpack.c.h.b16 %v1268
  %v1545 = vunpack.c.l.b16 %v1269
  %v1546 = vunpack.c.h.b16 %v1269
  %v1547 = vunpack.c.l.b16 %v1270
  %v1548 = vunpack.c.h.b16 %v1270
  %v1549 = vunpack.c.l.b16 %v1271
  %v1550 = vunpack.c.h.b16 %v1271
  %v1551 = vunpack.c.l.b16 %v1272
  %v1552 = vunpack.c.h.b16 %v1272
  %v1553 = vunpack.c.l.b16 %v1273
  %v1554 = vunpack.c.h.b16 %v1273
  %v1555 = vunpack.c.l.b16 %v1274
  %v1556 = vunpack.c.h.b16 %v1274
  %v1557 = vunpack.c.l.b16 %v1275
  %v1558 = vunpack.c.h.b16 %v1275
  %v1559 = vunpack.c.l.b16 %v1276
  %v1560 = vunpack.c.h.b16 %v1276
  %v1561 = vunpack.c.l.b16 %v1277
  %v1562 = vunpack.c.h.b16 %v1277
  %v1563 = vunpack.c.l.b16 %v1278
  %v1564 = vunpack.c.h.b16 %v1278
  %v1565 = vunpack.c.l.b16 %v1279
  %v1566 = vunpack.c.h.b16 %v1279
  %v1567 = vunpack.c.l.b16 %v1280
  %v1568 = vunpack.c.h.b16 %v1280
  %v1569 = vunpack.c.l.b16 %v1281
  %v1570 = vunpack.c.h.b16 %v1281
  %v1571 = vunpack.c.l.b16 %v1282
  %v1572 = vunpack.c.h.b16 %v1282
  %v1573 = vunpack.c.l.b16 %v1283
  %v1574 = vunpack.c.h.b16 %v1283
  %v1575 = vunpack.c.l.b16 %v1284
  %v1576 = vunpack.c.h.b16 %v1284
  %v1577 = vunpack.c.l.b16 %v1285
  %v1578 = vunpack.c.h.b16 %v1285
  %v1579 = vunpack.c.l.b16 %v1286
  %v1580 = vunpack.c.h.b16 %v1286
  %v1581 = vunpack.c.l.b16 %v1287
  %v1582 = vunpack.c.h.b16 %v1287
  %v1583 = vunpack.c.l.b16 %v1288
  %v1584 = vunpack.c.h.b16 %v1288
  %v1585 = vunpack.c.l.b16 %v1289
  %v1586 = vunpack.c.h.b16 %v1289
  %v1587 = vunpack.c.l.b16 %v1290
  %v1588 = vunpack.c.h.b16 %v1290
  %v1589 = vunpack.c.l.b16 %v1291
  %v1590 = vunpack.c.h.b16 %v1291
  %v1591 = vunpack.c.l.b16 %v1292
  %v1592 = vunpack.c.h.b16 %v1292
  %v1593 = vunpack.c.l.b16 %v1293
  %v1594 = vunpack.c.h.b16 %v1293
  %v1595 = vunpack.c.l.b16 %v1294
  %v1596 = vunpack.c.h.b16 %v1294
  %v1597 = vunpack.c.l.b16 %v1295
  %v1598 = vunpack.c.h.b16 %v1295
  %v1599 = vunpack.c.l.b16 %v1296
  %v1600 = vunpack.c.h.b16 %v1296
  %v1601 = vunpack.c.l.b16 %v1297
  %v1602 = vunpack.c.h.b16 %v1297
  %v1603 = vunpack.c.l.b16 %v1298
  %v1604 = vunpack.c.h.b16 %v1298
  %v1605 = vunpack.c.l.b16 %v1299
  %v1606 = vunpack.c.h.b16 %v1299
  %v1607 = vunpack.c.l.b16 %v1300
  %v1608 = vunpack.c.h.b16 %v1300
  %v1609 = vunpack.c.l.b16 %v1301
  %v1610 = vunpack.c.h.b16 %v1301
  %v1611 = vunpack.c.l.b16 %v1302
  %v1612 = vunpack.c.h.b16 %v1302
  %v1613 = vunpack.c.l.b16 %v1303
  %v1614 = vunpack.c.h.b16 %v1303
  %v1615 = vunpack.c.l.b16 %v1304
  %v1616 = vunpack.c.h.b16 %v1304
  %v1617 = vunpack.c.l.b16 %v1305
  %v1618 = vunpack.c.h.b16 %v1305
  %v1619 = vunpack.c.l.b16 %v1306
  %v1620 = vunpack.c.h.b16 %v1306
  %v1621 = vunpack.c.l.b16 %v1307
  %v1622 = vunpack.c.h.b16 %v1307
  %v1623 = vunpack.c.l.b16 %v1308
  %v1624 = vunpack.c.h.b16 %v1308
  %v1625 = vunpack.c.l.b16 %v1309
  %v1626 = vunpack.c.h.b16 %v1309
  %v1627 = vunpack.c.l.b16 %v1310
  %v1628 = vunpack.c.h.b16 %v1310
  %v1629 = vunpack.c.l.b16 %v1311
  %v1630 = vunpack.c.h.b16 %v1311
  %v1631 = vunpack.c.l.b16 %v1312
  %v1632 = vunpack.c.h.b16 %v1312
  %v1633 = vunpack.c.l.b16 %v1313
  %v1634 = vunpack.c.h.b16 %v1313
  %v1635 = vunpack.c.l.b16 %v1314
  %v1636 = vunpack.c.h.b16 %v1314
  %v1637 = vunpack.c.l.b16 %v1315
  %v1638 = vunpack.c.h.b16 %v1315
  %v1639 = vunpack.c.l.b16 %v1316
  %v1640 = vunpack.c.h.b16 %v1316
  %v1641 = vunpack.c.l.b16 %v1317
  %v1642 = vunpack.c.h.b16 %v1317
  %v1643 = vunpack.c.l.b16 %v1318
  %v1644 = vunpack.c.h.b16 %v1318
  %v1645 = vunpack.c.l.b16 %v1319
  %v1646 = vunpack.c.h.b16 %v1319
  %v1647 = vunpack.c.l.b16 %v1320
  %v1648 = vunpack.c.h.b16 %v1320
  %v1649 = vunpack.c.l.b16 %v1321
  %v1650 = vunpack.c.h.b16 %v1321
  %v1651 = vunpack.c.l.b16 %v1322
  %v1652 = vunpack.c.h.b16 %v1322
  %v1653 = vunpack.c.l.b16 %v1323
  %v1654 = vunpack.c.h.b16 %v1323
  %v1655 = vunpack.c.l.b16 %v1324
  %v1656 = vunpack.c.h.b16 %v1324
  %v1657 = vunpack.c.l.b16 %v1325
  %v1658 = vunpack.c.h.b16 %v1325
  %v1659 = vunpack.c.l.b16 %v1326
  %v1660 = vunpack.c.h.b16 %v1326
  %v1661 = vunpack.c.l.b16 %v1327
  %v1662 = vunpack.c.h.b16 %v1327
  %v1663 = vunpack.c.l.b16 %v1328
  %v1664 = vunpack.c.h.b16 %v1328
  %v1665 = vunpack.c.l.b16 %v1329
  %v1666 = vunpack.c.h.b16 %v1329
  %v1667 = vunpack.c.l.b16 %v1330
  %v1668 = vunpack.c.h.b16 %v1330
  %v1669 = vunpack.c.l.b16 %v1331
  %v1670 = vunpack.c.h.b16 %v1331
  %v1671 = vunpack.c.l.b16 %v1332
  %v1672 = vunpack.c.h.b16 %v1332
  %v1673 = vunpack.c.l.b16 %v1333
  %v1674 = vunpack.c.h.b16 %v1333
  %v1675 = vunpack.c.l.b16 %v1334
  %v1676 = vunpack.c.h.b16 %v1334
  %v1677 = vunpack.c.l.b16 %v1335
  %v1678 = vunpack.c.h.b16 %v1335
  %v1679 = vunpack.c.l.b16 %v1336
  %v1680 = vunpack.c.h.b16 %v1336
  %v1681 = vunpack.c.l.b16 %v1337
  %v1682 = vunpack.c.h.b16 %v1337
  %v1683 = vunpack.c.l.b16 %v1338
  %v1684 = vunpack.c.h.b16 %v1338
  %v1685 = vunpack.c.l.b16 %v1339
  %v1686 = vunpack.c.h.b16 %v1339
  %v1687 = vunpack.c.l.b16 %v1340
  %v1688 = vunpack.c.h.b16 %v1340
  %v1689 = vunpack.c.l.b16 %v1341
  %v1690 = vunpack.c.h.b16 %v1341
  %v1691 = vunpack.c.l.b16 %v1342
  %v1692 = vunpack.c.h.b16 %v1342
  %v1693 = vunpack.c.l.b16 %v1343
  %v1694 = vunpack.c.h.b16 %v1343
  %v1695 = vunpack.c.l.b16 %v1344
  %v1696 = vunpack.c.h.b16 %v1344
  %v1697 = vunpack.c.l.b16 %v1345
  %v1698 = vunpack.c.h.b16 %v1345
  %v1699 = vunpack.c.l.b16 %v1346
  %v1700 = vunpack.c.h.b16 %v1346
  %v1701 = vunpack.c.l.b16 %v1347
  %v1702 = vunpack.c.h.b16 %v1347
  %v1703 = vunpack.c.l.b16 %v1348
  %v1704 = vunpack.c.h.b16 %v1348
  %v1705 = vunpack.c.l.b16 %v1349
  %v1706 = vunpack.c.h.b16 %v1349
  %v1707 = vunpack.c.l.b16 %v1350
  %v1708 = vunpack.c.h.b16 %v1350
  %v1709 = vunpack.c.l.b16 %v1351
  %v1710 = vunpack.c.h.b16 %v1351
  %v1711 = vunpack.c.l.b16 %v1352
  %v1712 = vunpack.c.h.b16 %v1352
  %v1713 = vunpack.c.l.b16 %v1353
  %v1714 = vunpack.c.h.b16 %v1353
  %v1715 = vunpack.c.l.b16 %v1354
  %v1716 = vunpack.c.h.b16 %v1354
  %v1717 = vunpack.c.l.b16 %v1355
  %v1718 = vunpack.c.h.b16 %v1355
  %v1719 = vunpack.c.l.b16 %v1356
  %v1720 = vunpack.c.h.b16 %v1356
  %v1721 = vunpack.c.l.b16 %v1357
  %v1722 = vunpack.c.h.b16 %v1357
  %v1723 = vunpack.c.l.b16 %v1358
  %v1724 = vunpack.c.h.b16 %v1358
  %v1725 = vunpack.c.l.b16 %v1359
  %v1726 = vunpack.c.h.b16 %v1359
  %v1727 = vunpack.c.l.b16 %v1360
  %v1728 = vunpack.c.h.b16 %v1360
  %v1729 = vunpack.c.l.b16 %v1361
  %v1730 = vunpack.c.h.b16 %v1361
  %v1731 = vunpack.c.l.b16 %v1362
  %v1732 = vunpack.c.h.b16 %v1362
  %v1733 = vunpack.c.l.b16 %v1363
  %v1734 = vunpack.c.h.b16 %v1363
  %v1735 = vunpack.c.l.b16 %v1364
  %v1736 = vunpack.c.h.b16 %v1364
  %v1737 = vunpack.c.l.b16 %v1365
  %v1738 = vunpack.c.h.b16 %v1365
  %v1739 = vunpack.c.l.b16 %v1366
  %v1740 = vunpack.c.h.b16 %v1366
  %v1741 = vunpack.c.l.b16 %v1367
  %v1742 = vunpack.c.h.b16 %v1367
  %v1743 = vunpack.c.l.b16 %v1368
  %v1744 = vunpack.c.h.b16 %v1368
  %v1745 = vunpack.c.l.b16 %v1369
  %v1746 = vunpack.c.h.b16 %v1369
  %v1747 = vunpack.c.l.b16 %v1370
  %v1748 = vunpack.c.h.b16 %v1370
  %v1749 = vunpack.c.l.b16 %v1371
  %v1750 = vunpack.c.h.b16 %v1371
  %v1751 = vunpack.c.l.b16 %v1372
  %v1752 = vunpack.c.h.b16 %v1372
  %v1753 = vunpack.c.l.b16 %v1373
  %v1754 = vunpack.c.h.b16 %v1373
  %v1755 = vunpack.c.l.b16 %v1374
  %v1756 = vunpack.c.h.b16 %v1374
  %v1757 = vunpack.c.l.b16 %v1375
  %v1758 = vunpack.c.h.b16 %v1375
  %v1759 = vunpack.c.l.b16 %v1376
  %v1760 = vunpack.c.h.b16 %v1376
  %v1761 = vpack.c.b16 %v1513, %v1505
  %v1762 = vpack.c.b16 %v1514, %v1506
  %v1763 = vpack.c.b16 %v1515, %v1507
  %v1764 = vpack.c.b16 %v1516, %v1508
  %v1765 = vpack.c.b16 %v1517, %v1509
  %v1766 = vpack.c.b16 %v1518, %v1510
  %v1767 = vpack.c.b16 %v1519, %v1511
  %v1768 = vpack.c.b16 %v1520, %v1512
  %v1769 = vpack.c.b16 %v1529, %v1521
  %v1770 = vpack.c.b16 %v1530, %v1522
  %v1771 = vpack.c.b16 %v1531, %v1523
  %v1772 = vpack.c.b16 %v1532, %v1524
  %v1773 = vpack.c.b16 %v1533, %v1525
  %v1774 = vpack.c.b16 %v1534, %v1526
  %v1775 = vpack.c.b16 %v1535, %v1527
  %v1776 = vpack.c.b16 %v1536, %v1528
  %v1777 = vpack.c.b16 %v1545, %v1537
  %v1778 = vpack.c.b16 %v1546, %v1538
  %v1779 = vpack.c.b16 %v1547, %v1539
  %v1780 = vpack.c.b16 %v1548, %v1540
  %v1781 = vpack.c.b16 %v1549, %v1541
  %v1782 = vpack.c.b16 %v1550, %v1542
  %v1783 = vpack.c.b16 %v1551, %v1543
  %v1784 = vpack.c.b16 %v1552, %v1544
  %v1785 = vpack.c.b16 %v1561, %v1553
  %v1786 = vpack.c.b16 %v1562, %v1554
  %v1787 = vpack.c.b16 %v1563, %v1555
  %v1788 = vpack.c.b16 %v1564, %v1556
  %v1789 = vpack.c.b16 %v1565, %v1557
  %v1790 = vpack.c.b16 %v1566, %v1558
  %v1791 = vpack.c.b16 %v1567, %v1559
  %v1792 = vpack.c.b16 %v1568, %v1560
  %v1793 = vpack.c.b16 %v1577, %v1569
  %v1794 = vpack.c.b16 %v1578, %v1570
  %v1795 = vpack.c.b16 %v1579, %v1571
  %v1796 = vpack.c.b16 %v1580, %v1572
  %v1797 = vpack.c.b16 %v1581, %v1573
  %v1798 = vpack.c.b16 %v1582, %v1574
  %v1799 = vpack.c.b16 %v1583, %v1575
  %v1800 = vpack.c.b16 %v1584, %v1576
  %v1801 = vpack.c.b16 %v1593, %v1585
  %v1802 = vpack.c.b16 %v1594, %v1586
  %v1803 = vpack.c.b16 %v1595, %v1587
  %v1804 = vpack.c.b16 %v1596, %v1588
  %v1805 = vpack.c.b16 %v1597, %v1589
  %v1806 = vpack.c.b16 %v1598, %v1590
  %v1807 = vpack.c.b16 %v1599, %v1591
  %v1808 = vpack.c.b16 %v1600, %v1592
  %v1809 = vpack.c.b16 %v1609, %v1601
  %v1810 = vpack.c.b16 %v1610, %v1602
  %v1811 = vpack.c.b16 %v1611, %v1603
  %v1812 = vpack.c.b16 %v1612, %v1604
  %v1813 = vpack.c.b16 %v1613, %v1605
  %v1814 = vpack.c.b16 %v1614, %v1606
  %v1815 = vpack.c.b16 %v1615, %v1607
  %v1816 = vpack.c.b16 %v1616, %v1608
  %v1817 = vpack.c.b16 %v1625, %v1617
  %v1818 = vpack.c.b16 %v1626, %v1618
  %v1819 = vpack.c.b16 %v1627, %v1619
  %v1820 = vpack.c.b16 %v1628, %v1620
  %v1821 = vpack.c.b16 %v1629, %v1621
  %v1822 = vpack.c.b16 %v1630, %v1622
  %v1823 = vpack.c.b16 %v1631, %v1623
  %v1824 = vpack.c.b16 %v1632, %v1624
  %v1825 = vpack.c.b16 %v1641, %v1633
  %v1826 = vpack.c.b16 %v1642, %v1634
  %v1827 = vpack.c.b16 %v1643, %v1635
  %v1828 = vpack.c.b16 %v1644, %v1636
  %v1829 = vpack.c.b16 %v1645, %v1637
  %v1830 = vpack.c.b16 %v1646, %v1638
  %v1831 = vpack.c.b16 %v1647, %v1639
  %v1832 = vpack.c.b16 %v1648, %v1640
  %v1833 = vpack.c.b16 %v1657, %v1649
  %v1834 = vpack.c.b16 %v1658, %v1650
  %v1835 = vpack.c.b16 %v1659, %v1651
  %v1836 = vpack.c.b16 %v1660, %v1652
  %v1837 = vpack.c.b16 %v1661, %v1653
  %v1838 = vpack.c.b16 %v1662, %v1654
  %v1839 = vpack.c.b16 %v1663, %v1655
  %v1840 = vpack.c.b16 %v1664, %v1656
  %v1841 = vpack.c.b16 %v1673, %v1665
  %v1842 = vpack.c.b16 %v1674, %v1666
  %v1843 = vpack.c.b16 %v1675, %v1667
  %v1844 = vpack.c.b16 %v1676, %v1668
  %v1845 = vpack.c.b16 %v1677, %v1669
  %v1846 = vpack.c.b16 %v1678, %v1670
  %v1847 = vpack.c.b16 %v1679, %v1671
  %v1848 = vpack.c.b16 %v1680, %v1672
  %v1849 = vpack.c.b16 %v1689, %v1681
  %v1850 = vpack.c.b16 %v1690, %v1682
  %v1851 = vpack.c.b16 %v1691, %v1683
  %v1852 = vpack.c.b16 %v1692, %v1684
  %v1853 = vpack.c.b16 %v1693, %v1685
  %v1854 = vpack.c.b16 %v1694, %v1686
  %v1855 = vpack.c.b16 %v1695, %v1687
  %v1856 = vpack.c.b16 %v1696, %v1688
  %v1857 = vpack.c.b16 %v1705, %v1697
  %v1858 = vpack.c.b16 %v1706, %v1698
  %v1859 = vpack.c.b16 %v1707, %v1699
  %v1860 = vpack.c.b16 %v1708, %v1700
  %v1861 = vpack.c.b16 %v1709, %v1701
  %v1862 = vpack.c.b16 %v1710, %v1702
  %v1863 = vpack.c.b16 %v1711, %v1703
  %v1864 = vpack.c.b16 %v1712, %v1704
  %v1865 = vpack.c.b16 %v1721, %v1713
  %v1866 = vpack.c.b16 %v1722, %v1714
  %v1867 = vpack.c.b16 %v1723, %v1715
  %v1868 = vpack.c.b16 %v1724, %v1716
  %v1869 = vpack.c.b16 %v1725, %v1717
  %v1870 = vpack.c.b16 %v1726, %v1718
  %v1871 = vpack.c.b16 %v1727, %v1719
  %v1872 = vpack.c.b16 %v1728, %v1720
  %v1873 = vpack.c.b16 %v1737, %v1729
  %v1874 = vpack.c.b16 %v1738, %v1730
  %v1875 = vpack.c.b16 %v1739, %v1731
  %v1876 = vpack.c.b16 %v1740, %v1732
  %v1877 = vpack.c.b16 %v1741, %v1733
  %v1878 = vpack.c.b16 %v1742, %v1734
  %v1879 = vpack.c.b16 %v1743, %v1735
  %v1880 = vpack.c.b16 %v1744, %v1736
  %v1881 = vpack.c.b16 %v1753, %v1745
  %v1882 = vpack.c.b16 %v1754, %v1746
  %v1883 = vpack.c.b16 %v1755, %v1747
  %v1884 = vpack.c.b16 %v1756, %v1748
  %v1885 = vpack.c.b16 %v1757, %v1749
  %v1886 = vpack.c.b16 %v1758, %v1750
  %v1887 = vpack.c.b16 %v1759, %v1751
  %v1888 = vpack.c.b16 %v1760, %v1752
  %2017 = vmatprep.subr.bf16.mxu0 %v1818
  %2018 = vmatpush1.bf16.msra.mxu0 %v1817
  %2019 = vmatprep.subr.bf16.mxu0 %v1810
  %2020 = vmatpush1.bf16.msra.mxu0 %v1809
  %2021 = vmatprep.subr.bf16.mxu0 %v1802
  %2022 = vmatpush1.bf16.msra.mxu0 %v1801
  %2023 = vmatprep.subr.bf16.mxu0 %v1794
  %2024 = vmatpush1.bf16.msra.mxu0 %v1793
  %2025 = vmatprep.subr.bf16.mxu0 %v1786
  %2026 = vmatpush1.bf16.msra.mxu0 %v1785
  %2027 = vmatprep.subr.bf16.mxu0 %v1778
  %2028 = vmatpush1.bf16.msra.mxu0 %v1777
  %2029 = vmatprep.subr.bf16.mxu0 %v1770
  %2030 = vmatpush1.bf16.msra.mxu0 %v1769
  %2031 = vmatprep.subr.bf16.mxu0 %v1762
  %2032 = vmatpush1.bf16.msra.mxu0 %v1761
  %2033 = vmatprep.subr.bf16.mxu0 %v1882
  %2034 = vmatpush2.bf16.msra.mxu0 %v1881
  %2035 = vmatprep.subr.bf16.mxu0 %v1874
  %2036 = vmatpush2.bf16.msra.mxu0 %v1873
  %2037 = vmatprep.subr.bf16.mxu0 %v1866
  %2038 = vmatpush2.bf16.msra.mxu0 %v1865
  %2039 = vmatprep.subr.bf16.mxu0 %v1858
  %2040 = vmatpush2.bf16.msra.mxu0 %v1857
  %2041 = vmatprep.subr.bf16.mxu0 %v1850
  %2042 = vmatpush2.bf16.msra.mxu0 %v1849
  %2043 = vmatprep.subr.bf16.mxu0 %v1842
  %2044 = vmatpush2.bf16.msra.mxu0 %v1841
  %2045 = vmatprep.subr.bf16.mxu0 %v1834
  %2046 = vmatpush2.bf16.msra.mxu0 %v1833
  %2047 = vmatprep.subr.bf16.mxu0 %v1826
  %2048 = vmatpush2.bf16.msra.mxu0 %v1825
  %2049 = vmatprep.mubr.bf16.mxu0 0
  %2050 = vmatmul.mubr.bf16.gmra.mxu0 0
  %v2051 = vpop.f32.mrf.mxu0
  %v2052 = vadd.f32 0.0, %v2051
  %v2053 = vpop.f32.mrf.mxu0
  %v2054 = vadd.f32 0.0, %v2053
  %v2055 = vpop.f32.mrf.mxu0
  %v2056 = vpop.f32.mrf.mxu0
  %2057 = vdwg.mxu0
  %2058 = vmatprep.subr.bf16.mxu0 %v1820
  %2059 = vmatpush1.bf16.msra.mxu0 %v1819
  %2060 = vmatprep.subr.bf16.mxu0 %v1812
  %2061 = vmatpush1.bf16.msra.mxu0 %v1811
  %2062 = vmatprep.subr.bf16.mxu0 %v1804
  %2063 = vmatpush1.bf16.msra.mxu0 %v1803
  %2064 = vmatprep.subr.bf16.mxu0 %v1796
  %2065 = vmatpush1.bf16.msra.mxu0 %v1795
  %2066 = vmatprep.subr.bf16.mxu0 %v1788
  %2067 = vmatpush1.bf16.msra.mxu0 %v1787
  %2068 = vmatprep.subr.bf16.mxu0 %v1780
  %2069 = vmatpush1.bf16.msra.mxu0 %v1779
  %2070 = vmatprep.subr.bf16.mxu0 %v1772
  %2071 = vmatpush1.bf16.msra.mxu0 %v1771
  %2072 = vmatprep.subr.bf16.mxu0 %v1764
  %2073 = vmatpush1.bf16.msra.mxu0 %v1763
  %2074 = vmatprep.subr.bf16.mxu0 %v1884
  %2075 = vmatpush2.bf16.msra.mxu0 %v1883
  %2076 = vmatprep.subr.bf16.mxu0 %v1876
  %2077 = vmatpush2.bf16.msra.mxu0 %v1875
  %2078 = vmatprep.subr.bf16.mxu0 %v1868
  %2079 = vmatpush2.bf16.msra.mxu0 %v1867
  %2080 = vmatprep.subr.bf16.mxu0 %v1860
  %2081 = vmatpush2.bf16.msra.mxu0 %v1859
  %2082 = vmatprep.subr.bf16.mxu0 %v1852
  %2083 = vmatpush2.bf16.msra.mxu0 %v1851
  %2084 = vmatprep.subr.bf16.mxu0 %v1844
  %2085 = vmatpush2.bf16.msra.mxu0 %v1843
  %2086 = vmatprep.subr.bf16.mxu0 %v1836
  %2087 = vmatpush2.bf16.msra.mxu0 %v1835
  %2088 = vmatprep.subr.bf16.mxu0 %v1828
  %2089 = vmatpush2.bf16.msra.mxu0 %v1827
  %2090 = vmatprep.mubr.bf16.mxu0 0
  %2091 = vmatmul.mubr.bf16.gmra.mxu0 0
  %v2092 = vpop.f32.mrf.mxu0
  %v2093 = vadd.f32 0.0, %v2092
  %v2094 = vpop.f32.mrf.mxu0
  %v2095 = vadd.f32 0.0, %v2094
  %v2096 = vpop.f32.mrf.mxu0
  %v2097 = vpop.f32.mrf.mxu0
  %2098 = vdwg.mxu0
  %2099 = vmatprep.subr.bf16.mxu0 %v1822
  %2100 = vmatpush1.bf16.msra.mxu0 %v1821
  %2101 = vmatprep.subr.bf16.mxu0 %v1814
  %2102 = vmatpush1.bf16.msra.mxu0 %v1813
  %2103 = vmatprep.subr.bf16.mxu0 %v1806
  %2104 = vmatpush1.bf16.msra.mxu0 %v1805
  %2105 = vmatprep.subr.bf16.mxu0 %v1798
  %2106 = vmatpush1.bf16.msra.mxu0 %v1797
  %2107 = vmatprep.subr.bf16.mxu0 %v1790
  %2108 = vmatpush1.bf16.msra.mxu0 %v1789
  %2109 = vmatprep.subr.bf16.mxu0 %v1782
  %2110 = vmatpush1.bf16.msra.mxu0 %v1781
  %2111 = vmatprep.subr.bf16.mxu0 %v1774
  %2112 = vmatpush1.bf16.msra.mxu0 %v1773
  %2113 = vmatprep.subr.bf16.mxu0 %v1766
  %2114 = vmatpush1.bf16.msra.mxu0 %v1765
  %2115 = vmatprep.subr.bf16.mxu0 %v1886
  %2116 = vmatpush2.bf16.msra.mxu0 %v1885
  %2117 = vmatprep.subr.bf16.mxu0 %v1878
  %2118 = vmatpush2.bf16.msra.mxu0 %v1877
  %2119 = vmatprep.subr.bf16.mxu0 %v1870
  %2120 = vmatpush2.bf16.msra.mxu0 %v1869
  %2121 = vmatprep.subr.bf16.mxu0 %v1862
  %2122 = vmatpush2.bf16.msra.mxu0 %v1861
  %2123 = vmatprep.subr.bf16.mxu0 %v1854
  %2124 = vmatpush2.bf16.msra.mxu0 %v1853
  %2125 = vmatprep.subr.bf16.mxu0 %v1846
  %2126 = vmatpush2.bf16.msra.mxu0 %v1845
  %2127 = vmatprep.subr.bf16.mxu0 %v1838
  %2128 = vmatpush2.bf16.msra.mxu0 %v1837
  %2129 = vmatprep.subr.bf16.mxu0 %v1830
  %2130 = vmatpush2.bf16.msra.mxu0 %v1829
  %2131 = vmatprep.mubr.bf16.mxu0 0
  %2132 = vmatmul.mubr.bf16.gmra.mxu0 0
  %v2133 = vpop.f32.mrf.mxu0
  %v2134 = vadd.f32 0.0, %v2133
  %v2135 = vpop.f32.mrf.mxu0
  %v2136 = vadd.f32 0.0, %v2135
  %v2137 = vpop.f32.mrf.mxu0
  %v2138 = vpop.f32.mrf.mxu0
  %2139 = vdwg.mxu0
  %2140 = vmatprep.subr.bf16.mxu0 %v1824
  %2141 = vmatpush1.bf16.msra.mxu0 %v1823
  %2142 = vmatprep.subr.bf16.mxu0 %v1816
  %2143 = vmatpush1.bf16.msra.mxu0 %v1815
  %2144 = vmatprep.subr.bf16.mxu0 %v1808
  %2145 = vmatpush1.bf16.msra.mxu0 %v1807
  %2146 = vmatprep.subr.bf16.mxu0 %v1800
  %2147 = vmatpush1.bf16.msra.mxu0 %v1799
  %2148 = vmatprep.subr.bf16.mxu0 %v1792
  %2149 = vmatpush1.bf16.msra.mxu0 %v1791
  %2150 = vmatprep.subr.bf16.mxu0 %v1784
  %2151 = vmatpush1.bf16.msra.mxu0 %v1783
  %2152 = vmatprep.subr.bf16.mxu0 %v1776
  %2153 = vmatpush1.bf16.msra.mxu0 %v1775
  %2154 = vmatprep.subr.bf16.mxu0 %v1768
  %2155 = vmatpush1.bf16.msra.mxu0 %v1767
  %2156 = vmatprep.subr.bf16.mxu0 %v1888
  %2157 = vmatpush2.bf16.msra.mxu0 %v1887
  %2158 = vmatprep.subr.bf16.mxu0 %v1880
  %2159 = vmatpush2.bf16.msra.mxu0 %v1879
  %2160 = vmatprep.subr.bf16.mxu0 %v1872
  %2161 = vmatpush2.bf16.msra.mxu0 %v1871
  %2162 = vmatprep.subr.bf16.mxu0 %v1864
  %2163 = vmatpush2.bf16.msra.mxu0 %v1863
  %2164 = vmatprep.subr.bf16.mxu0 %v1856
  %2165 = vmatpush2.bf16.msra.mxu0 %v1855
  %2166 = vmatprep.subr.bf16.mxu0 %v1848
  %2167 = vmatpush2.bf16.msra.mxu0 %v1847
  %2168 = vmatprep.subr.bf16.mxu0 %v1840
  %2169 = vmatpush2.bf16.msra.mxu0 %v1839
  %2170 = vmatprep.subr.bf16.mxu0 %v1832
  %2171 = vmatpush2.bf16.msra.mxu0 %v1831
  %2172 = vmatprep.mubr.bf16.mxu0 0
  %2173 = vmatmul.mubr.bf16.gmra.mxu0 0
  %v2174 = vpop.f32.mrf.mxu0
  %v2175 = vadd.f32 0.0, %v2174
  %v2176 = vpop.f32.mrf.mxu0
  %v2177 = vadd.f32 0.0, %v2176
  %v2178 = vpop.f32.mrf.mxu0
  %v2179 = vpop.f32.mrf.mxu0
  %2180 = vdwg.mxu0
  %v2181 = vadd.f32 %v1241, %v2052
  %v2182 = vadd.f32 %v1242, %v2054
  %v2183 = vadd.f32 %v1243, %v2093
  %v2184 = vadd.f32 %v1244, %v2095
  %v2185 = vadd.f32 %v1245, %v2134
  %v2186 = vadd.f32 %v1246, %v2136
  %v2187 = vadd.f32 %v1247, %v2175
  %v2188 = vadd.f32 %v1248, %v2177
  %v2189 = vxor.u32 %v2181, 2147483648
  %v2190 = vxor.u32 %v2182, 2147483648
  %v2191 = vmul.f32 %v2189, 1.442695
  %v2192 = vpow.pop %v2191
  %v2193 = vmul.f32 %v2190, 1.442695
  %v2194 = vpow.pop %v2193
  %v2195 = vadd.f32 %v2192, 1.0
  %v2196 = vadd.f32 %v2194, 1.0
  %v2197 = vrcp.pop %v2195
  %v2198 = vmul.f32 1.0, %v2197
  %v2199 = vrcp.pop %v2196
  %v2200 = vmul.f32 1.0, %v2199
  %v2201 = vxor.u32 %v2183, 2147483648
  %v2202 = vxor.u32 %v2184, 2147483648
  %v2203 = vmul.f32 %v2201, 1.442695
  %v2204 = vpow.pop %v2203
  %v2205 = vmul.f32 %v2202, 1.442695
  %v2206 = vpow.pop %v2205
  %v2207 = vadd.f32 %v2204, 1.0
  %v2208 = vadd.f32 %v2206, 1.0
  %v2209 = vrcp.pop %v2207
  %v2210 = vmul.f32 1.0, %v2209
  %v2211 = vrcp.pop %v2208
  %v2212 = vmul.f32 1.0, %v2211
  %v2213 = vtanh.pop %v2185
  %v2214 = vtanh.pop %v2186
  %v2215 = vxor.u32 %v2187, 2147483648
  %v2216 = vxor.u32 %v2188, 2147483648
  %v2217 = vmul.f32 %v2215, 1.442695
  %v2218 = vpow.pop %v2217
  %v2219 = vmul.f32 %v2216, 1.442695
  %v2220 = vpow.pop %v2219
  %v2221 = vadd.f32 %v2218, 1.0
  %v2222 = vadd.f32 %v2220, 1.0
  %v2223 = vrcp.pop %v2221
  %v2224 = vmul.f32 1.0, %v2223
  %v2225 = vrcp.pop %v2222
  %v2226 = vmul.f32 1.0, %v2225
  %v2227 = vmul.f32 %v2210, 0.0
  %v2228 = vmul.f32 %v2212, 0.0
  %v2229 = vmul.f32 %v2198, %v2213
  %v2230 = vmul.f32 %v2200, %v2214
  %v2231 = vadd.f32 %v2227, %v2229
  %v2232 = vadd.f32 %v2228, %v2230
  %v2233 = vtanh.pop %v2231
  %v2234 = vtanh.pop %v2232
  %v2235 = vmul.f32 %v2224, %v2233
  %v2236 = vmul.f32 %v2226, %v2234
  %vm2237 = vcmp.gt.s32.totalorder %v1237, 0
  %v2238 = vsel %vm2237, 1, 0
  %2239 = vset.pattern.permute.xlu0 0
  %2240 = vperm.xlu0 %2239, %v2238
  %v2241 = vpop.permute.xlu0 %2240
  %vm2242 = vcmp.eq.s32.totalorder %v2241, 1
  %v2243 = vsel %vm2242, %v2235, 0.0
  %v2244 = vsel %vm2242, %v2236, 0.0
  %v2245 = vsel %vm2242, %v2231, 0.0
  %v2246 = vsel %vm2242, %v2232, 0.0
  %s2247 = smul.u32 1, 8
  %s2248 = smul.addr %s2247, 8
  %s2249 = scalar_lea.vmem [#allocation2], %s2248
  %v2250 = vld [vmem:[%s2249] sm:$0xff]
  %v2251 = vld [vmem:[%s2249 + $0x8] sm:$0xff]
  %v2252 = vld [vmem:[%s2249 + $0x10] sm:$0xff]
  %v2253 = vld [vmem:[%s2249 + $0x18] sm:$0xff]
  %v2254 = vld [vmem:[%s2249 + $0x20] sm:$0xff]
  %v2255 = vld [vmem:[%s2249 + $0x28] sm:$0xff]
  %v2256 = vld [vmem:[%s2249 + $0x30] sm:$0xff]
  %v2257 = vld [vmem:[%s2249 + $0x38] sm:$0xff]
  %v2258 = vpack.c.bf16 %v2243, %v2243
  %v2259 = vpack.c.bf16 %v2244, %v2244
  %2260 = vmatprep.subr.bf16.mxu0 %v1818
  %2261 = vmatpush1.bf16.msra.mxu0 %v1817
  %2262 = vmatprep.subr.bf16.mxu0 %v1810
  %2263 = vmatpush1.bf16.msra.mxu0 %v1809
  %2264 = vmatprep.subr.bf16.mxu0 %v1802
  %2265 = vmatpush1.bf16.msra.mxu0 %v1801
  %2266 = vmatprep.subr.bf16.mxu0 %v1794
  %2267 = vmatpush1.bf16.msra.mxu0 %v1793
  %2268 = vmatprep.subr.bf16.mxu0 %v1786
  %2269 = vmatpush1.bf16.msra.mxu0 %v1785
  %2270 = vmatprep.subr.bf16.mxu0 %v1778
  %2271 = vmatpush1.bf16.msra.mxu0 %v1777
  %2272 = vmatprep.subr.bf16.mxu0 %v1770
  %2273 = vmatpush1.bf16.msra.mxu0 %v1769
  %2274 = vmatprep.subr.bf16.mxu0 %v1762
  %2275 = vmatpush1.bf16.msra.mxu0 %v1761
  %2276 = vmatprep.subr.bf16.mxu0 %v1882
  %2277 = vmatpush2.bf16.msra.mxu0 %v1881
  %2278 = vmatprep.subr.bf16.mxu0 %v1874
  %2279 = vmatpush2.bf16.msra.mxu0 %v1873
  %2280 = vmatprep.subr.bf16.mxu0 %v1866
  %2281 = vmatpush2.bf16.msra.mxu0 %v1865
  %2282 = vmatprep.subr.bf16.mxu0 %v1858
  %2283 = vmatpush2.bf16.msra.mxu0 %v1857
  %2284 = vmatprep.subr.bf16.mxu0 %v1850
  %2285 = vmatpush2.bf16.msra.mxu0 %v1849
  %2286 = vmatprep.subr.bf16.mxu0 %v1842
  %2287 = vmatpush2.bf16.msra.mxu0 %v1841
  %2288 = vmatprep.subr.bf16.mxu0 %v1834
  %2289 = vmatpush2.bf16.msra.mxu0 %v1833
  %2290 = vmatprep.subr.bf16.mxu0 %v1826
  %2291 = vmatpush2.bf16.msra.mxu0 %v1825
  %2292 = vmatprep.mubr.bf16.mxu0 %v2259
  %2293 = vmatmul.mubr.bf16.gmra.mxu0 %v2258
  %v2294 = vpop.f32.mrf.mxu0
  %v2295 = vadd.f32 0.0, %v2294
  %v2296 = vpop.f32.mrf.mxu0
  %v2297 = vadd.f32 0.0, %v2296
  %v2298 = vpop.f32.mrf.mxu0
  %v2299 = vpop.f32.mrf.mxu0
  %2300 = vdwg.mxu0
  %2301 = vmatprep.subr.bf16.mxu0 %v1820
  %2302 = vmatpush1.bf16.msra.mxu0 %v1819
  %2303 = vmatprep.subr.bf16.mxu0 %v1812
  %2304 = vmatpush1.bf16.msra.mxu0 %v1811
  %2305 = vmatprep.subr.bf16.mxu0 %v1804
  %2306 = vmatpush1.bf16.msra.mxu0 %v1803
  %2307 = vmatprep.subr.bf16.mxu0 %v1796
  %2308 = vmatpush1.bf16.msra.mxu0 %v1795
  %2309 = vmatprep.subr.bf16.mxu0 %v1788
  %2310 = vmatpush1.bf16.msra.mxu0 %v1787
  %2311 = vmatprep.subr.bf16.mxu0 %v1780
  %2312 = vmatpush1.bf16.msra.mxu0 %v1779
  %2313 = vmatprep.subr.bf16.mxu0 %v1772
  %2314 = vmatpush1.bf16.msra.mxu0 %v1771
  %2315 = vmatprep.subr.bf16.mxu0 %v1764
  %2316 = vmatpush1.bf16.msra.mxu0 %v1763
  %2317 = vmatprep.subr.bf16.mxu0 %v1884
  %2318 = vmatpush2.bf16.msra.mxu0 %v1883
  %2319 = vmatprep.subr.bf16.mxu0 %v1876
  %2320 = vmatpush2.bf16.msra.mxu0 %v1875
  %2321 = vmatprep.subr.bf16.mxu0 %v1868
  %2322 = vmatpush2.bf16.msra.mxu0 %v1867
  %2323 = vmatprep.subr.bf16.mxu0 %v1860
  %2324 = vmatpush2.bf16.msra.mxu0 %v1859
  %2325 = vmatprep.subr.bf16.mxu0 %v1852
  %2326 = vmatpush2.bf16.msra.mxu0 %v1851
  %2327 = vmatprep.subr.bf16.mxu0 %v1844
  %2328 = vmatpush2.bf16.msra.mxu0 %v1843
  %2329 = vmatprep.subr.bf16.mxu0 %v1836
  %2330 = vmatpush2.bf16.msra.mxu0 %v1835
  %2331 = vmatprep.subr.bf16.mxu0 %v1828
  %2332 = vmatpush2.bf16.msra.mxu0 %v1827
  %2333 = vmatprep.mubr.bf16.mxu0 %v2259
  %2334 = vmatmul.mubr.bf16.gmra.mxu0 %v2258
  %v2335 = vpop.f32.mrf.mxu0
  %v2336 = vadd.f32 0.0, %v2335
  %v2337 = vpop.f32.mrf.mxu0
  %v2338 = vadd.f32 0.0, %v2337
  %v2339 = vpop.f32.mrf.mxu0
  %v2340 = vpop.f32.mrf.mxu0
  %2341 = vdwg.mxu0
  %2342 = vmatprep.subr.bf16.mxu0 %v1822
  %2343 = vmatpush1.bf16.msra.mxu0 %v1821
  %2344 = vmatprep.subr.bf16.mxu0 %v1814
  %2345 = vmatpush1.bf16.msra.mxu0 %v1813
  %2346 = vmatprep.subr.bf16.mxu0 %v1806
  %2347 = vmatpush1.bf16.msra.mxu0 %v1805
  %2348 = vmatprep.subr.bf16.mxu0 %v1798
  %2349 = vmatpush1.bf16.msra.mxu0 %v1797
  %2350 = vmatprep.subr.bf16.mxu0 %v1790
  %2351 = vmatpush1.bf16.msra.mxu0 %v1789
  %2352 = vmatprep.subr.bf16.mxu0 %v1782
  %2353 = vmatpush1.bf16.msra.mxu0 %v1781
  %2354 = vmatprep.subr.bf16.mxu0 %v1774
  %2355 = vmatpush1.bf16.msra.mxu0 %v1773
  %2356 = vmatprep.subr.bf16.mxu0 %v1766
  %2357 = vmatpush1.bf16.msra.mxu0 %v1765
  %2358 = vmatprep.subr.bf16.mxu0 %v1886
  %2359 = vmatpush2.bf16.msra.mxu0 %v1885
  %2360 = vmatprep.subr.bf16.mxu0 %v1878
  %2361 = vmatpush2.bf16.msra.mxu0 %v1877
  %2362 = vmatprep.subr.bf16.mxu0 %v1870
  %2363 = vmatpush2.bf16.msra.mxu0 %v1869
  %2364 = vmatprep.subr.bf16.mxu0 %v1862
  %2365 = vmatpush2.bf16.msra.mxu0 %v1861
  %2366 = vmatprep.subr.bf16.mxu0 %v1854
  %2367 = vmatpush2.bf16.msra.mxu0 %v1853
  %2368 = vmatprep.subr.bf16.mxu0 %v1846
  %2369 = vmatpush2.bf16.msra.mxu0 %v1845
  %2370 = vmatprep.subr.bf16.mxu0 %v1838
  %2371 = vmatpush2.bf16.msra.mxu0 %v1837
  %2372 = vmatprep.subr.bf16.mxu0 %v1830
  %2373 = vmatpush2.bf16.msra.mxu0 %v1829
  %2374 = vmatprep.mubr.bf16.mxu0 %v2259
  %2375 = vmatmul.mubr.bf16.gmra.mxu0 %v2258
  %v2376 = vpop.f32.mrf.mxu0
  %v2377 = vadd.f32 0.0, %v2376
  %v2378 = vpop.f32.mrf.mxu0
  %v2379 = vadd.f32 0.0, %v2378
  %v2380 = vpop.f32.mrf.mxu0
  %v2381 = vpop.f32.mrf.mxu0
  %2382 = vdwg.mxu0
  %2383 = vmatprep.subr.bf16.mxu0 %v1824
  %2384 = vmatpush1.bf16.msra.mxu0 %v1823
  %2385 = vmatprep.subr.bf16.mxu0 %v1816
  %2386 = vmatpush1.bf16.msra.mxu0 %v1815
  %2387 = vmatprep.subr.bf16.mxu0 %v1808
  %2388 = vmatpush1.bf16.msra.mxu0 %v1807
  %2389 = vmatprep.subr.bf16.mxu0 %v1800
  %2390 = vmatpush1.bf16.msra.mxu0 %v1799
  %2391 = vmatprep.subr.bf16.mxu0 %v1792
  %2392 = vmatpush1.bf16.msra.mxu0 %v1791
  %2393 = vmatprep.subr.bf16.mxu0 %v1784
  %2394 = vmatpush1.bf16.msra.mxu0 %v1783
  %2395 = vmatprep.subr.bf16.mxu0 %v1776
  %2396 = vmatpush1.bf16.msra.mxu0 %v1775
  %2397 = vmatprep.subr.bf16.mxu0 %v1768
  %2398 = vmatpush1.bf16.msra.mxu0 %v1767
  %2399 = vmatprep.subr.bf16.mxu0 %v1888
  %2400 = vmatpush2.bf16.msra.mxu0 %v1887
  %2401 = vmatprep.subr.bf16.mxu0 %v1880
  %2402 = vmatpush2.bf16.msra.mxu0 %v1879
  %2403 = vmatprep.subr.bf16.mxu0 %v1872
  %2404 = vmatpush2.bf16.msra.mxu0 %v1871
  %2405 = vmatprep.subr.bf16.mxu0 %v1864
  %2406 = vmatpush2.bf16.msra.mxu0 %v1863
  %2407 = vmatprep.subr.bf16.mxu0 %v1856
  %2408 = vmatpush2.bf16.msra.mxu0 %v1855
  %2409 = vmatprep.subr.bf16.mxu0 %v1848
  %2410 = vmatpush2.bf16.msra.mxu0 %v1847
  %2411 = vmatprep.subr.bf16.mxu0 %v1840
  %2412 = vmatpush2.bf16.msra.mxu0 %v1839
  %2413 = vmatprep.subr.bf16.mxu0 %v1832
  %2414 = vmatpush2.bf16.msra.mxu0 %v1831
  %2415 = vmatprep.mubr.bf16.mxu0 %v2259
  %2416 = vmatmul.mubr.bf16.gmra.mxu0 %v2258
  %v2417 = vpop.f32.mrf.mxu0
  %v2418 = vadd.f32 0.0, %v2417
  %v2419 = vpop.f32.mrf.mxu0
  %v2420 = vadd.f32 0.0, %v2419
  %v2421 = vpop.f32.mrf.mxu0
  %v2422 = vpop.f32.mrf.mxu0
  %2423 = vdwg.mxu0
  %v2424 = vadd.f32 %v2250, %v2295
  %v2425 = vadd.f32 %v2251, %v2297
  %v2426 = vadd.f32 %v2252, %v2336
  %v2427 = vadd.f32 %v2253, %v2338
  %v2428 = vadd.f32 %v2254, %v2377
  %v2429 = vadd.f32 %v2255, %v2379
  %v2430 = vadd.f32 %v2256, %v2418
  %v2431 = vadd.f32 %v2257, %v2420
  %v2432 = vxor.u32 %v2424, 2147483648
  %v2433 = vxor.u32 %v2425, 2147483648
  %v2434 = vmul.f32 %v2432, 1.442695
  %v2435 = vpow.pop %v2434
  %v2436 = vmul.f32 %v2433, 1.442695
  %v2437 = vpow.pop %v2436
  %v2438 = vadd.f32 %v2435, 1.0
  %v2439 = vadd.f32 %v2437, 1.0
  %v2440 = vrcp.pop %v2438
  %v2441 = vmul.f32 1.0, %v2440
  %v2442 = vrcp.pop %v2439
  %v2443 = vmul.f32 1.0, %v2442
  %v2444 = vxor.u32 %v2426, 2147483648
  %v2445 = vxor.u32 %v2427, 2147483648
  %v2446 = vmul.f32 %v2444, 1.442695
  %v2447 = vpow.pop %v2446
  %v2448 = vmul.f32 %v2445, 1.442695
  %v2449 = vpow.pop %v2448
  %v2450 = vadd.f32 %v2447, 1.0
  %v2451 = vadd.f32 %v2449, 1.0
  %v2452 = vrcp.pop %v2450
  %v2453 = vmul.f32 1.0, %v2452
  %v2454 = vrcp.pop %v2451
  %v2455 = vmul.f32 1.0, %v2454
  %v2456 = vtanh.pop %v2428
  %v2457 = vtanh.pop %v2429
  %v2458 = vxor.u32 %v2430, 2147483648
  %v2459 = vxor.u32 %v2431, 2147483648
  %v2460 = vmul.f32 %v2458, 1.442695
  %v2461 = vpow.pop %v2460
  %v2462 = vmul.f32 %v2459, 1.442695
  %v2463 = vpow.pop %v2462
  %v2464 = vadd.f32 %v2461, 1.0
  %v2465 = vadd.f32 %v2463, 1.0
  %v2466 = vrcp.pop %v2464
  %v2467 = vmul.f32 1.0, %v2466
  %v2468 = vrcp.pop %v2465
  %v2469 = vmul.f32 1.0, %v2468
  %v2470 = vmul.f32 %v2453, %v2245
  %v2471 = vmul.f32 %v2455, %v2246
  %v2472 = vmul.f32 %v2441, %v2456
  %v2473 = vmul.f32 %v2443, %v2457
  %v2474 = vadd.f32 %v2470, %v2472
  %v2475 = vadd.f32 %v2471, %v2473
  %v2476 = vtanh.pop %v2474
  %v2477 = vtanh.pop %v2475
  %v2478 = vmul.f32 %v2467, %v2476
  %v2479 = vmul.f32 %v2469, %v2477
  %vm2480 = vcmp.gt.s32.totalorder %v1237, 1
  %v2481 = vsel %vm2480, 1, 0
  %2482 = vset.pattern.permute.xlu0 0
  %2483 = vperm.xlu0 %2482, %v2481
  %v2484 = vpop.permute.xlu0 %2483
  %vm2485 = vcmp.eq.s32.totalorder %v2484, 1
  %v2486 = vsel %vm2485, %v2478, %v2243
  %v2487 = vsel %vm2485, %v2479, %v2244
  %v2488 = vsel %vm2485, %v2474, %v2245
  %v2489 = vsel %vm2485, %v2475, %v2246
  %s2490 = smul.u32 2, 8
  %s2491 = smul.addr %s2490, 8
  %s2492 = scalar_lea.vmem [#allocation2], %s2491
  %v2493 = vld [vmem:[%s2492] sm:$0xff]
  %v2494 = vld [vmem:[%s2492 + $0x8] sm:$0xff]
  %v2495 = vld [vmem:[%s2492 + $0x10] sm:$0xff]
  %v2496 = vld [vmem:[%s2492 + $0x18] sm:$0xff]
  %v2497 = vld [vmem:[%s2492 + $0x20] sm:$0xff]
  %v2498 = vld [vmem:[%s2492 + $0x28] sm:$0xff]
  %v2499 = vld [vmem:[%s2492 + $0x30] sm:$0xff]
  %v2500 = vld [vmem:[%s2492 + $0x38] sm:$0xff]
  %v2501 = vpack.c.bf16 %v2486, %v2486
  %v2502 = vpack.c.bf16 %v2487, %v2487
  %2503 = vmatprep.subr.bf16.mxu0 %v1818
  %2504 = vmatpush1.bf16.msra.mxu0 %v1817
  %2505 = vmatprep.subr.bf16.mxu0 %v1810
  %2506 = vmatpush1.bf16.msra.mxu0 %v1809
  %2507 = vmatprep.subr.bf16.mxu0 %v1802
  %2508 = vmatpush1.bf16.msra.mxu0 %v1801
  %2509 = vmatprep.subr.bf16.mxu0 %v1794
  %2510 = vmatpush1.bf16.msra.mxu0 %v1793
  %2511 = vmatprep.subr.bf16.mxu0 %v1786
  %2512 = vmatpush1.bf16.msra.mxu0 %v1785
  %2513 = vmatprep.subr.bf16.mxu0 %v1778
  %2514 = vmatpush1.bf16.msra.mxu0 %v1777
  %2515 = vmatprep.subr.bf16.mxu0 %v1770
  %2516 = vmatpush1.bf16.msra.mxu0 %v1769
  %2517 = vmatprep.subr.bf16.mxu0 %v1762
  %2518 = vmatpush1.bf16.msra.mxu0 %v1761
  %2519 = vmatprep.subr.bf16.mxu0 %v1882
  %2520 = vmatpush2.bf16.msra.mxu0 %v1881
  %2521 = vmatprep.subr.bf16.mxu0 %v1874
  %2522 = vmatpush2.bf16.msra.mxu0 %v1873
  %2523 = vmatprep.subr.bf16.mxu0 %v1866
  %2524 = vmatpush2.bf16.msra.mxu0 %v1865
  %2525 = vmatprep.subr.bf16.mxu0 %v1858
  %2526 = vmatpush2.bf16.msra.mxu0 %v1857
  %2527 = vmatprep.subr.bf16.mxu0 %v1850
  %2528 = vmatpush2.bf16.msra.mxu0 %v1849
  %2529 = vmatprep.subr.bf16.mxu0 %v1842
  %2530 = vmatpush2.bf16.msra.mxu0 %v1841
  %2531 = vmatprep.subr.bf16.mxu0 %v1834
  %2532 = vmatpush2.bf16.msra.mxu0 %v1833
  %2533 = vmatprep.subr.bf16.mxu0 %v1826
  %2534 = vmatpush2.bf16.msra.mxu0 %v1825
  %2535 = vmatprep.mubr.bf16.mxu0 %v2502
  %2536 = vmatmul.mubr.bf16.gmra.mxu0 %v2501
  %v2537 = vpop.f32.mrf.mxu0
  %v2538 = vadd.f32 0.0, %v2537
  %v2539 = vpop.f32.mrf.mxu0
  %v2540 = vadd.f32 0.0, %v2539
  %v2541 = vpop.f32.mrf.mxu0
  %v2542 = vpop.f32.mrf.mxu0
  %2543 = vdwg.mxu0
  %2544 = vmatprep.subr.bf16.mxu0 %v1820
  %2545 = vmatpush1.bf16.msra.mxu0 %v1819
  %2546 = vmatprep.subr.bf16.mxu0 %v1812
  %2547 = vmatpush1.bf16.msra.mxu0 %v1811
  %2548 = vmatprep.subr.bf16.mxu0 %v1804
  %2549 = vmatpush1.bf16.msra.mxu0 %v1803
  %2550 = vmatprep.subr.bf16.mxu0 %v1796
  %2551 = vmatpush1.bf16.msra.mxu0 %v1795
  %2552 = vmatprep.subr.bf16.mxu0 %v1788
  %2553 = vmatpush1.bf16.msra.mxu0 %v1787
  %2554 = vmatprep.subr.bf16.mxu0 %v1780
  %2555 = vmatpush1.bf16.msra.mxu0 %v1779
  %2556 = vmatprep.subr.bf16.mxu0 %v1772
  %2557 = vmatpush1.bf16.msra.mxu0 %v1771
  %2558 = vmatprep.subr.bf16.mxu0 %v1764
  %2559 = vmatpush1.bf16.msra.mxu0 %v1763
  %2560 = vmatprep.subr.bf16.mxu0 %v1884
  %2561 = vmatpush2.bf16.msra.mxu0 %v1883
  %2562 = vmatprep.subr.bf16.mxu0 %v1876
  %2563 = vmatpush2.bf16.msra.mxu0 %v1875
  %2564 = vmatprep.subr.bf16.mxu0 %v1868
  %2565 = vmatpush2.bf16.msra.mxu0 %v1867
  %2566 = vmatprep.subr.bf16.mxu0 %v1860
  %2567 = vmatpush2.bf16.msra.mxu0 %v1859
  %2568 = vmatprep.subr.bf16.mxu0 %v1852
  %2569 = vmatpush2.bf16.msra.mxu0 %v1851
  %2570 = vmatprep.subr.bf16.mxu0 %v1844
  %2571 = vmatpush2.bf16.msra.mxu0 %v1843
  %2572 = vmatprep.subr.bf16.mxu0 %v1836
  %2573 = vmatpush2.bf16.msra.mxu0 %v1835
  %2574 = vmatprep.subr.bf16.mxu0 %v1828
  %2575 = vmatpush2.bf16.msra.mxu0 %v1827
  %2576 = vmatprep.mubr.bf16.mxu0 %v2502
  %2577 = vmatmul.mubr.bf16.gmra.mxu0 %v2501
  %v2578 = vpop.f32.mrf.mxu0
  %v2579 = vadd.f32 0.0, %v2578
  %v2580 = vpop.f32.mrf.mxu0
  %v2581 = vadd.f32 0.0, %v2580
  %v2582 = vpop.f32.mrf.mxu0
  %v2583 = vpop.f32.mrf.mxu0
  %2584 = vdwg.mxu0
  %2585 = vmatprep.subr.bf16.mxu0 %v1822
  %2586 = vmatpush1.bf16.msra.mxu0 %v1821
  %2587 = vmatprep.subr.bf16.mxu0 %v1814
  %2588 = vmatpush1.bf16.msra.mxu0 %v1813
  %2589 = vmatprep.subr.bf16.mxu0 %v1806
  %2590 = vmatpush1.bf16.msra.mxu0 %v1805
  %2591 = vmatprep.subr.bf16.mxu0 %v1798
  %2592 = vmatpush1.bf16.msra.mxu0 %v1797
  %2593 = vmatprep.subr.bf16.mxu0 %v1790
  %2594 = vmatpush1.bf16.msra.mxu0 %v1789
  %2595 = vmatprep.subr.bf16.mxu0 %v1782
  %2596 = vmatpush1.bf16.msra.mxu0 %v1781
  %2597 = vmatprep.subr.bf16.mxu0 %v1774
  %2598 = vmatpush1.bf16.msra.mxu0 %v1773
  %2599 = vmatprep.subr.bf16.mxu0 %v1766
  %2600 = vmatpush1.bf16.msra.mxu0 %v1765
  %2601 = vmatprep.subr.bf16.mxu0 %v1886
  %2602 = vmatpush2.bf16.msra.mxu0 %v1885
  %2603 = vmatprep.subr.bf16.mxu0 %v1878
  %2604 = vmatpush2.bf16.msra.mxu0 %v1877
  %2605 = vmatprep.subr.bf16.mxu0 %v1870
  %2606 = vmatpush2.bf16.msra.mxu0 %v1869
  %2607 = vmatprep.subr.bf16.mxu0 %v1862
  %2608 = vmatpush2.bf16.msra.mxu0 %v1861
  %2609 = vmatprep.subr.bf16.mxu0 %v1854
  %2610 = vmatpush2.bf16.msra.mxu0 %v1853
  %2611 = vmatprep.subr.bf16.mxu0 %v1846
  %2612 = vmatpush2.bf16.msra.mxu0 %v1845
  %2613 = vmatprep.subr.bf16.mxu0 %v1838
  %2614 = vmatpush2.bf16.msra.mxu0 %v1837
  %2615 = vmatprep.subr.bf16.mxu0 %v1830
  %2616 = vmatpush2.bf16.msra.mxu0 %v1829
  %2617 = vmatprep.mubr.bf16.mxu0 %v2502
  %2618 = vmatmul.mubr.bf16.gmra.mxu0 %v2501
  %v2619 = vpop.f32.mrf.mxu0
  %v2620 = vadd.f32 0.0, %v2619
  %v2621 = vpop.f32.mrf.mxu0
  %v2622 = vadd.f32 0.0, %v2621
  %v2623 = vpop.f32.mrf.mxu0
  %v2624 = vpop.f32.mrf.mxu0
  %2625 = vdwg.mxu0
  %2626 = vmatprep.subr.bf16.mxu0 %v1824
  %2627 = vmatpush1.bf16.msra.mxu0 %v1823
  %2628 = vmatprep.subr.bf16.mxu0 %v1816
  %2629 = vmatpush1.bf16.msra.mxu0 %v1815
  %2630 = vmatprep.subr.bf16.mxu0 %v1808
  %2631 = vmatpush1.bf16.msra.mxu0 %v1807
  %2632 = vmatprep.subr.bf16.mxu0 %v1800
  %2633 = vmatpush1.bf16.msra.mxu0 %v1799
  %2634 = vmatprep.subr.bf16.mxu0 %v1792
  %2635 = vmatpush1.bf16.msra.mxu0 %v1791
  %2636 = vmatprep.subr.bf16.mxu0 %v1784
  %2637 = vmatpush1.bf16.msra.mxu0 %v1783
  %2638 = vmatprep.subr.bf16.mxu0 %v1776
  %2639 = vmatpush1.bf16.msra.mxu0 %v1775
  %2640 = vmatprep.subr.bf16.mxu0 %v1768
  %2641 = vmatpush1.bf16.msra.mxu0 %v1767
  %2642 = vmatprep.subr.bf16.mxu0 %v1888
  %2643 = vmatpush2.bf16.msra.mxu0 %v1887
  %2644 = vmatprep.subr.bf16.mxu0 %v1880
  %2645 = vmatpush2.bf16.msra.mxu0 %v1879
  %2646 = vmatprep.subr.bf16.mxu0 %v1872
  %2647 = vmatpush2.bf16.msra.mxu0 %v1871
  %2648 = vmatprep.subr.bf16.mxu0 %v1864
  %2649 = vmatpush2.bf16.msra.mxu0 %v1863
  %2650 = vmatprep.subr.bf16.mxu0 %v1856
  %2651 = vmatpush2.bf16.msra.mxu0 %v1855
  %2652 = vmatprep.subr.bf16.mxu0 %v1848
  %2653 = vmatpush2.bf16.msra.mxu0 %v1847
  %2654 = vmatprep.subr.bf16.mxu0 %v1840
  %2655 = vmatpush2.bf16.msra.mxu0 %v1839
  %2656 = vmatprep.subr.bf16.mxu0 %v1832
  %2657 = vmatpush2.bf16.msra.mxu0 %v1831
  %2658 = vmatprep.mubr.bf16.mxu0 %v2502
  %2659 = vmatmul.mubr.bf16.gmra.mxu0 %v2501
  %v2660 = vpop.f32.mrf.mxu0
  %v2661 = vadd.f32 0.0, %v2660
  %v2662 = vpop.f32.mrf.mxu0
  %v2663 = vadd.f32 0.0, %v2662
  %v2664 = vpop.f32.mrf.mxu0
  %v2665 = vpop.f32.mrf.mxu0
  %2666 = vdwg.mxu0
  %v2667 = vadd.f32 %v2493, %v2538
  %v2668 = vadd.f32 %v2494, %v2540
  %v2669 = vadd.f32 %v2495, %v2579
  %v2670 = vadd.f32 %v2496, %v2581
  %v2671 = vadd.f32 %v2497, %v2620
  %v2672 = vadd.f32 %v2498, %v2622
  %v2673 = vadd.f32 %v2499, %v2661
  %v2674 = vadd.f32 %v2500, %v2663
  %v2675 = vxor.u32 %v2667, 2147483648
  %v2676 = vxor.u32 %v2668, 2147483648
  %v2677 = vmul.f32 %v2675, 1.442695
  %v2678 = vpow.pop %v2677
  %v2679 = vmul.f32 %v2676, 1.442695
  %v2680 = vpow.pop %v2679
  %v2681 = vadd.f32 %v2678, 1.0
  %v2682 = vadd.f32 %v2680, 1.0
  %v2683 = vrcp.pop %v2681
  %v2684 = vmul.f32 1.0, %v2683
  %v2685 = vrcp.pop %v2682
  %v2686 = vmul.f32 1.0, %v2685
  %v2687 = vxor.u32 %v2669, 2147483648
  %v2688 = vxor.u32 %v2670, 2147483648
  %v2689 = vmul.f32 %v2687, 1.442695
  %v2690 = vpow.pop %v2689
  %v2691 = vmul.f32 %v2688, 1.442695
  %v2692 = vpow.pop %v2691
  %v2693 = vadd.f32 %v2690, 1.0
  %v2694 = vadd.f32 %v2692, 1.0
  %v2695 = vrcp.pop %v2693
  %v2696 = vmul.f32 1.0, %v2695
  %v2697 = vrcp.pop %v2694
  %v2698 = vmul.f32 1.0, %v2697
  %v2699 = vtanh.pop %v2671
  %v2700 = vtanh.pop %v2672
  %v2701 = vxor.u32 %v2673, 2147483648
  %v2702 = vxor.u32 %v2674, 2147483648
  %v2703 = vmul.f32 %v2701, 1.442695
  %v2704 = vpow.pop %v2703
  %v2705 = vmul.f32 %v2702, 1.442695
  %v2706 = vpow.pop %v2705
  %v2707 = vadd.f32 %v2704, 1.0
  %v2708 = vadd.f32 %v2706, 1.0
  %v2709 = vrcp.pop %v2707
  %v2710 = vmul.f32 1.0, %v2709
  %v2711 = vrcp.pop %v2708
  %v2712 = vmul.f32 1.0, %v2711
  %v2713 = vmul.f32 %v2696, %v2488
  %v2714 = vmul.f32 %v2698, %v2489
  %v2715 = vmul.f32 %v2684, %v2699
  %v2716 = vmul.f32 %v2686, %v2700
  %v2717 = vadd.f32 %v2713, %v2715
  %v2718 = vadd.f32 %v2714, %v2716
  %v2719 = vtanh.pop %v2717
  %v2720 = vtanh.pop %v2718
  %v2721 = vmul.f32 %v2710, %v2719
  %v2722 = vmul.f32 %v2712, %v2720
  %vm2723 = vcmp.gt.s32.totalorder %v1237, 2
  %v2724 = vsel %vm2723, 1, 0
  %2725 = vset.pattern.permute.xlu0 0
  %2726 = vperm.xlu0 %2725, %v2724
  %v2727 = vpop.permute.xlu0 %2726
  %vm2728 = vcmp.eq.s32.totalorder %v2727, 1
  %v2729 = vsel %vm2728, %v2721, %v2486
  %v2730 = vsel %vm2728, %v2722, %v2487
  %v2731 = vsel %vm2728, %v2717, %v2488
  %v2732 = vsel %vm2728, %v2718, %v2489
  %s2733 = smul.u32 3, 8
  %s2734 = smul.addr %s2733, 8
  %s2735 = scalar_lea.vmem [#allocation2], %s2734
  %v2736 = vld [vmem:[%s2735] sm:$0xff]
  %v2737 = vld [vmem:[%s2735 + $0x8] sm:$0xff]
  %v2738 = vld [vmem:[%s2735 + $0x10] sm:$0xff]
  %v2739 = vld [vmem:[%s2735 + $0x18] sm:$0xff]
  %v2740 = vld [vmem:[%s2735 + $0x20] sm:$0xff]
  %v2741 = vld [vmem:[%s2735 + $0x28] sm:$0xff]
  %v2742 = vld [vmem:[%s2735 + $0x30] sm:$0xff]
  %v2743 = vld [vmem:[%s2735 + $0x38] sm:$0xff]
  %v2744 = vpack.c.bf16 %v2729, %v2729
  %v2745 = vpack.c.bf16 %v2730, %v2730
  %2746 = vmatprep.subr.bf16.mxu0 %v1818
  %2747 = vmatpush1.bf16.msra.mxu0 %v1817
  %2748 = vmatprep.subr.bf16.mxu0 %v1810
  %2749 = vmatpush1.bf16.msra.mxu0 %v1809
  %2750 = vmatprep.subr.bf16.mxu0 %v1802
  %2751 = vmatpush1.bf16.msra.mxu0 %v1801
  %2752 = vmatprep.subr.bf16.mxu0 %v1794
  %2753 = vmatpush1.bf16.msra.mxu0 %v1793
  %2754 = vmatprep.subr.bf16.mxu0 %v1786
  %2755 = vmatpush1.bf16.msra.mxu0 %v1785
  %2756 = vmatprep.subr.bf16.mxu0 %v1778
  %2757 = vmatpush1.bf16.msra.mxu0 %v1777
  %2758 = vmatprep.subr.bf16.mxu0 %v1770
  %2759 = vmatpush1.bf16.msra.mxu0 %v1769
  %2760 = vmatprep.subr.bf16.mxu0 %v1762
  %2761 = vmatpush1.bf16.msra.mxu0 %v1761
  %2762 = vmatprep.subr.bf16.mxu0 %v1882
  %2763 = vmatpush2.bf16.msra.mxu0 %v1881
  %2764 = vmatprep.subr.bf16.mxu0 %v1874
  %2765 = vmatpush2.bf16.msra.mxu0 %v1873
  %2766 = vmatprep.subr.bf16.mxu0 %v1866
  %2767 = vmatpush2.bf16.msra.mxu0 %v1865
  %2768 = vmatprep.subr.bf16.mxu0 %v1858
  %2769 = vmatpush2.bf16.msra.mxu0 %v1857
  %2770 = vmatprep.subr.bf16.mxu0 %v1850
  %2771 = vmatpush2.bf16.msra.mxu0 %v1849
  %2772 = vmatprep.subr.bf16.mxu0 %v1842
  %2773 = vmatpush2.bf16.msra.mxu0 %v1841
  %2774 = vmatprep.subr.bf16.mxu0 %v1834
  %2775 = vmatpush2.bf16.msra.mxu0 %v1833
  %2776 = vmatprep.subr.bf16.mxu0 %v1826
  %2777 = vmatpush2.bf16.msra.mxu0 %v1825
  %2778 = vmatprep.mubr.bf16.mxu0 %v2745
  %2779 = vmatmul.mubr.bf16.gmra.mxu0 %v2744
  %v2780 = vpop.f32.mrf.mxu0
  %v2781 = vadd.f32 0.0, %v2780
  %v2782 = vpop.f32.mrf.mxu0
  %v2783 = vadd.f32 0.0, %v2782
  %v2784 = vpop.f32.mrf.mxu0
  %v2785 = vpop.f32.mrf.mxu0
  %2786 = vdwg.mxu0
  %2787 = vmatprep.subr.bf16.mxu0 %v1820
  %2788 = vmatpush1.bf16.msra.mxu0 %v1819
  %2789 = vmatprep.subr.bf16.mxu0 %v1812
  %2790 = vmatpush1.bf16.msra.mxu0 %v1811
  %2791 = vmatprep.subr.bf16.mxu0 %v1804
  %2792 = vmatpush1.bf16.msra.mxu0 %v1803
  %2793 = vmatprep.subr.bf16.mxu0 %v1796
  %2794 = vmatpush1.bf16.msra.mxu0 %v1795
  %2795 = vmatprep.subr.bf16.mxu0 %v1788
  %2796 = vmatpush1.bf16.msra.mxu0 %v1787
  %2797 = vmatprep.subr.bf16.mxu0 %v1780
  %2798 = vmatpush1.bf16.msra.mxu0 %v1779
  %2799 = vmatprep.subr.bf16.mxu0 %v1772
  %2800 = vmatpush1.bf16.msra.mxu0 %v1771
  %2801 = vmatprep.subr.bf16.mxu0 %v1764
  %2802 = vmatpush1.bf16.msra.mxu0 %v1763
  %2803 = vmatprep.subr.bf16.mxu0 %v1884
  %2804 = vmatpush2.bf16.msra.mxu0 %v1883
  %2805 = vmatprep.subr.bf16.mxu0 %v1876
  %2806 = vmatpush2.bf16.msra.mxu0 %v1875
  %2807 = vmatprep.subr.bf16.mxu0 %v1868
  %2808 = vmatpush2.bf16.msra.mxu0 %v1867
  %2809 = vmatprep.subr.bf16.mxu0 %v1860
  %2810 = vmatpush2.bf16.msra.mxu0 %v1859
  %2811 = vmatprep.subr.bf16.mxu0 %v1852
  %2812 = vmatpush2.bf16.msra.mxu0 %v1851
  %2813 = vmatprep.subr.bf16.mxu0 %v1844
  %2814 = vmatpush2.bf16.msra.mxu0 %v1843
  %2815 = vmatprep.subr.bf16.mxu0 %v1836
  %2816 = vmatpush2.bf16.msra.mxu0 %v1835
  %2817 = vmatprep.subr.bf16.mxu0 %v1828
  %2818 = vmatpush2.bf16.msra.mxu0 %v1827
  %2819 = vmatprep.mubr.bf16.mxu0 %v2745
  %2820 = vmatmul.mubr.bf16.gmra.mxu0 %v2744
  %v2821 = vpop.f32.mrf.mxu0
  %v2822 = vadd.f32 0.0, %v2821
  %v2823 = vpop.f32.mrf.mxu0
  %v2824 = vadd.f32 0.0, %v2823
  %v2825 = vpop.f32.mrf.mxu0
  %v2826 = vpop.f32.mrf.mxu0
  %2827 = vdwg.mxu0
  %2828 = vmatprep.subr.bf16.mxu0 %v1822
  %2829 = vmatpush1.bf16.msra.mxu0 %v1821
  %2830 = vmatprep.subr.bf16.mxu0 %v1814
  %2831 = vmatpush1.bf16.msra.mxu0 %v1813
  %2832 = vmatprep.subr.bf16.mxu0 %v1806
  %2833 = vmatpush1.bf16.msra.mxu0 %v1805
  %2834 = vmatprep.subr.bf16.mxu0 %v1798
  %2835 = vmatpush1.bf16.msra.mxu0 %v1797
  %2836 = vmatprep.subr.bf16.mxu0 %v1790
  %2837 = vmatpush1.bf16.msra.mxu0 %v1789
  %2838 = vmatprep.subr.bf16.mxu0 %v1782
  %2839 = vmatpush1.bf16.msra.mxu0 %v1781
  %2840 = vmatprep.subr.bf16.mxu0 %v1774
  %2841 = vmatpush1.bf16.msra.mxu0 %v1773
  %2842 = vmatprep.subr.bf16.mxu0 %v1766
  %2843 = vmatpush1.bf16.msra.mxu0 %v1765
  %2844 = vmatprep.subr.bf16.mxu0 %v1886
  %2845 = vmatpush2.bf16.msra.mxu0 %v1885
  %2846 = vmatprep.subr.bf16.mxu0 %v1878
  %2847 = vmatpush2.bf16.msra.mxu0 %v1877
  %2848 = vmatprep.subr.bf16.mxu0 %v1870
  %2849 = vmatpush2.bf16.msra.mxu0 %v1869
  %2850 = vmatprep.subr.bf16.mxu0 %v1862
  %2851 = vmatpush2.bf16.msra.mxu0 %v1861
  %2852 = vmatprep.subr.bf16.mxu0 %v1854
  %2853 = vmatpush2.bf16.msra.mxu0 %v1853
  %2854 = vmatprep.subr.bf16.mxu0 %v1846
  %2855 = vmatpush2.bf16.msra.mxu0 %v1845
  %2856 = vmatprep.subr.bf16.mxu0 %v1838
  %2857 = vmatpush2.bf16.msra.mxu0 %v1837
  %2858 = vmatprep.subr.bf16.mxu0 %v1830
  %2859 = vmatpush2.bf16.msra.mxu0 %v1829
  %2860 = vmatprep.mubr.bf16.mxu0 %v2745
  %2861 = vmatmul.mubr.bf16.gmra.mxu0 %v2744
  %v2862 = vpop.f32.mrf.mxu0
  %v2863 = vadd.f32 0.0, %v2862
  %v2864 = vpop.f32.mrf.mxu0
  %v2865 = vadd.f32 0.0, %v2864
  %v2866 = vpop.f32.mrf.mxu0
  %v2867 = vpop.f32.mrf.mxu0
  %2868 = vdwg.mxu0
  %2869 = vmatprep.subr.bf16.mxu0 %v1824
  %2870 = vmatpush1.bf16.msra.mxu0 %v1823
  %2871 = vmatprep.subr.bf16.mxu0 %v1816
  %2872 = vmatpush1.bf16.msra.mxu0 %v1815
  %2873 = vmatprep.subr.bf16.mxu0 %v1808
  %2874 = vmatpush1.bf16.msra.mxu0 %v1807
  %2875 = vmatprep.subr.bf16.mxu0 %v1800
  %2876 = vmatpush1.bf16.msra.mxu0 %v1799
  %2877 = vmatprep.subr.bf16.mxu0 %v1792
  %2878 = vmatpush1.bf16.msra.mxu0 %v1791
  %2879 = vmatprep.subr.bf16.mxu0 %v1784
  %2880 = vmatpush1.bf16.msra.mxu0 %v1783
  %2881 = vmatprep.subr.bf16.mxu0 %v1776
  %2882 = vmatpush1.bf16.msra.mxu0 %v1775
  %2883 = vmatprep.subr.bf16.mxu0 %v1768
  %2884 = vmatpush1.bf16.msra.mxu0 %v1767
  %2885 = vmatprep.subr.bf16.mxu0 %v1888
  %2886 = vmatpush2.bf16.msra.mxu0 %v1887
  %2887 = vmatprep.subr.bf16.mxu0 %v1880
  %2888 = vmatpush2.bf16.msra.mxu0 %v1879
  %2889 = vmatprep.subr.bf16.mxu0 %v1872
  %2890 = vmatpush2.bf16.msra.mxu0 %v1871
  %2891 = vmatprep.subr.bf16.mxu0 %v1864
  %2892 = vmatpush2.bf16.msra.mxu0 %v1863
  %2893 = vmatprep.subr.bf16.mxu0 %v1856
  %2894 = vmatpush2.bf16.msra.mxu0 %v1855
  %2895 = vmatprep.subr.bf16.mxu0 %v1848
  %2896 = vmatpush2.bf16.msra.mxu0 %v1847
  %2897 = vmatprep.subr.bf16.mxu0 %v1840
  %2898 = vmatpush2.bf16.msra.mxu0 %v1839
  %2899 = vmatprep.subr.bf16.mxu0 %v1832
  %2900 = vmatpush2.bf16.msra.mxu0 %v1831
  %2901 = vmatprep.mubr.bf16.mxu0 %v2745
  %2902 = vmatmul.mubr.bf16.gmra.mxu0 %v2744
  %v2903 = vpop.f32.mrf.mxu0
  %v2904 = vadd.f32 0.0, %v2903
  %v2905 = vpop.f32.mrf.mxu0
  %v2906 = vadd.f32 0.0, %v2905
  %v2907 = vpop.f32.mrf.mxu0
  %v2908 = vpop.f32.mrf.mxu0
  %2909 = vdwg.mxu0
  %v2910 = vadd.f32 %v2736, %v2781
  %v2911 = vadd.f32 %v2737, %v2783
  %v2912 = vadd.f32 %v2738, %v2822
  %v2913 = vadd.f32 %v2739, %v2824
  %v2914 = vadd.f32 %v2740, %v2863
  %v2915 = vadd.f32 %v2741, %v2865
  %v2916 = vadd.f32 %v2742, %v2904
  %v2917 = vadd.f32 %v2743, %v2906
  %v2918 = vxor.u32 %v2910, 2147483648
  %v2919 = vxor.u32 %v2911, 2147483648
  %v2920 = vmul.f32 %v2918, 1.442695
  %v2921 = vpow.pop %v2920
  %v2922 = vmul.f32 %v2919, 1.442695
  %v2923 = vpow.pop %v2922
  %v2924 = vadd.f32 %v2921, 1.0
  %v2925 = vadd.f32 %v2923, 1.0
  %v2926 = vrcp.pop %v2924
  %v2927 = vmul.f32 1.0, %v2926
  %v2928 = vrcp.pop %v2925
  %v2929 = vmul.f32 1.0, %v2928
  %v2930 = vxor.u32 %v2912, 2147483648
  %v2931 = vxor.u32 %v2913, 2147483648
  %v2932 = vmul.f32 %v2930, 1.442695
  %v2933 = vpow.pop %v2932
  %v2934 = vmul.f32 %v2931, 1.442695
  %v2935 = vpow.pop %v2934
  %v2936 = vadd.f32 %v2933, 1.0
  %v2937 = vadd.f32 %v2935, 1.0
  %v2938 = vrcp.pop %v2936
  %v2939 = vmul.f32 1.0, %v2938
  %v2940 = vrcp.pop %v2937
  %v2941 = vmul.f32 1.0, %v2940
  %v2942 = vtanh.pop %v2914
  %v2943 = vtanh.pop %v2915
  %v2944 = vxor.u32 %v2916, 2147483648
  %v2945 = vxor.u32 %v2917, 2147483648
  %v2946 = vmul.f32 %v2944, 1.442695
  %v2947 = vpow.pop %v2946
  %v2948 = vmul.f32 %v2945, 1.442695
  %v2949 = vpow.pop %v2948
  %v2950 = vadd.f32 %v2947, 1.0
  %v2951 = vadd.f32 %v2949, 1.0
  %v2952 = vrcp.pop %v2950
  %v2953 = vmul.f32 1.0, %v2952
  %v2954 = vrcp.pop %v2951
  %v2955 = vmul.f32 1.0, %v2954
  %v2956 = vmul.f32 %v2939, %v2731
  %v2957 = vmul.f32 %v2941, %v2732
  %v2958 = vmul.f32 %v2927, %v2942
  %v2959 = vmul.f32 %v2929, %v2943
  %v2960 = vadd.f32 %v2956, %v2958
  %v2961 = vadd.f32 %v2957, %v2959
  %v2962 = vtanh.pop %v2960
  %v2963 = vtanh.pop %v2961
  %v2964 = vmul.f32 %v2953, %v2962
  %v2965 = vmul.f32 %v2955, %v2963
  %vm2966 = vcmp.gt.s32.totalorder %v1237, 3
  %v2967 = vsel %vm2966, 1, 0
  %2968 = vset.pattern.permute.xlu0 0
  %2969 = vperm.xlu0 %2968, %v2967
  %v2970 = vpop.permute.xlu0 %2969
  %vm2971 = vcmp.eq.s32.totalorder %v2970, 1
  %v2972 = vsel %vm2971, %v2964, %v2729
  %v2973 = vsel %vm2971, %v2965, %v2730
  %v2974 = vsel %vm2971, %v2960, %v2731
  %v2975 = vsel %vm2971, %v2961, %v2732
  %s2976 = smul.u32 4, 8
  %s2977 = smul.addr %s2976, 8
  %s2978 = scalar_lea.vmem [#allocation2], %s2977
  %v2979 = vld [vmem:[%s2978] sm:$0xff]
  %v2980 = vld [vmem:[%s2978 + $0x8] sm:$0xff]
  %v2981 = vld [vmem:[%s2978 + $0x10] sm:$0xff]
  %v2982 = vld [vmem:[%s2978 + $0x18] sm:$0xff]
  %v2983 = vld [vmem:[%s2978 + $0x20] sm:$0xff]
  %v2984 = vld [vmem:[%s2978 + $0x28] sm:$0xff]
  %v2985 = vld [vmem:[%s2978 + $0x30] sm:$0xff]
  %v2986 = vld [vmem:[%s2978 + $0x38] sm:$0xff]
  %v2987 = vpack.c.bf16 %v2972, %v2972
  %v2988 = vpack.c.bf16 %v2973, %v2973
  %2989 = vmatprep.subr.bf16.mxu0 %v1818
  %2990 = vmatpush1.bf16.msra.mxu0 %v1817
  %2991 = vmatprep.subr.bf16.mxu0 %v1810
  %2992 = vmatpush1.bf16.msra.mxu0 %v1809
  %2993 = vmatprep.subr.bf16.mxu0 %v1802
  %2994 = vmatpush1.bf16.msra.mxu0 %v1801
  %2995 = vmatprep.subr.bf16.mxu0 %v1794
  %2996 = vmatpush1.bf16.msra.mxu0 %v1793
  %2997 = vmatprep.subr.bf16.mxu0 %v1786
  %2998 = vmatpush1.bf16.msra.mxu0 %v1785
  %2999 = vmatprep.subr.bf16.mxu0 %v1778
  %3000 = vmatpush1.bf16.msra.mxu0 %v1777
  %3001 = vmatprep.subr.bf16.mxu0 %v1770
  %3002 = vmatpush1.bf16.msra.mxu0 %v1769
  %3003 = vmatprep.subr.bf16.mxu0 %v1762
  %3004 = vmatpush1.bf16.msra.mxu0 %v1761
  %3005 = vmatprep.subr.bf16.mxu0 %v1882
  %3006 = vmatpush2.bf16.msra.mxu0 %v1881
  %3007 = vmatprep.subr.bf16.mxu0 %v1874
  %3008 = vmatpush2.bf16.msra.mxu0 %v1873
  %3009 = vmatprep.subr.bf16.mxu0 %v1866
  %3010 = vmatpush2.bf16.msra.mxu0 %v1865
  %3011 = vmatprep.subr.bf16.mxu0 %v1858
  %3012 = vmatpush2.bf16.msra.mxu0 %v1857
  %3013 = vmatprep.subr.bf16.mxu0 %v1850
  %3014 = vmatpush2.bf16.msra.mxu0 %v1849
  %3015 = vmatprep.subr.bf16.mxu0 %v1842
  %3016 = vmatpush2.bf16.msra.mxu0 %v1841
  %3017 = vmatprep.subr.bf16.mxu0 %v1834
  %3018 = vmatpush2.bf16.msra.mxu0 %v1833
  %3019 = vmatprep.subr.bf16.mxu0 %v1826
  %3020 = vmatpush2.bf16.msra.mxu0 %v1825
  %3021 = vmatprep.mubr.bf16.mxu0 %v2988
  %3022 = vmatmul.mubr.bf16.gmra.mxu0 %v2987
  %v3023 = vpop.f32.mrf.mxu0
  %v3024 = vadd.f32 0.0, %v3023
  %v3025 = vpop.f32.mrf.mxu0
  %v3026 = vadd.f32 0.0, %v3025
  %v3027 = vpop.f32.mrf.mxu0
  %v3028 = vpop.f32.mrf.mxu0
  %3029 = vdwg.mxu0
  %3030 = vmatprep.subr.bf16.mxu0 %v1820
  %3031 = vmatpush1.bf16.msra.mxu0 %v1819
  %3032 = vmatprep.subr.bf16.mxu0 %v1812
  %3033 = vmatpush1.bf16.msra.mxu0 %v1811
  %3034 = vmatprep.subr.bf16.mxu0 %v1804
  %3035 = vmatpush1.bf16.msra.mxu0 %v1803
  %3036 = vmatprep.subr.bf16.mxu0 %v1796
  %3037 = vmatpush1.bf16.msra.mxu0 %v1795
  %3038 = vmatprep.subr.bf16.mxu0 %v1788
  %3039 = vmatpush1.bf16.msra.mxu0 %v1787
  %3040 = vmatprep.subr.bf16.mxu0 %v1780
  %3041 = vmatpush1.bf16.msra.mxu0 %v1779
  %3042 = vmatprep.subr.bf16.mxu0 %v1772
  %3043 = vmatpush1.bf16.msra.mxu0 %v1771
  %3044 = vmatprep.subr.bf16.mxu0 %v1764
  %3045 = vmatpush1.bf16.msra.mxu0 %v1763
  %3046 = vmatprep.subr.bf16.mxu0 %v1884
  %3047 = vmatpush2.bf16.msra.mxu0 %v1883
  %3048 = vmatprep.subr.bf16.mxu0 %v1876
  %3049 = vmatpush2.bf16.msra.mxu0 %v1875
  %3050 = vmatprep.subr.bf16.mxu0 %v1868
  %3051 = vmatpush2.bf16.msra.mxu0 %v1867
  %3052 = vmatprep.subr.bf16.mxu0 %v1860
  %3053 = vmatpush2.bf16.msra.mxu0 %v1859
  %3054 = vmatprep.subr.bf16.mxu0 %v1852
  %3055 = vmatpush2.bf16.msra.mxu0 %v1851
  %3056 = vmatprep.subr.bf16.mxu0 %v1844
  %3057 = vmatpush2.bf16.msra.mxu0 %v1843
  %3058 = vmatprep.subr.bf16.mxu0 %v1836
  %3059 = vmatpush2.bf16.msra.mxu0 %v1835
  %3060 = vmatprep.subr.bf16.mxu0 %v1828
  %3061 = vmatpush2.bf16.msra.mxu0 %v1827
  %3062 = vmatprep.mubr.bf16.mxu0 %v2988
  %3063 = vmatmul.mubr.bf16.gmra.mxu0 %v2987
  %v3064 = vpop.f32.mrf.mxu0
  %v3065 = vadd.f32 0.0, %v3064
  %v3066 = vpop.f32.mrf.mxu0
  %v3067 = vadd.f32 0.0, %v3066
  %v3068 = vpop.f32.mrf.mxu0
  %v3069 = vpop.f32.mrf.mxu0
  %3070 = vdwg.mxu0
  %3071 = vmatprep.subr.bf16.mxu0 %v1822
  %3072 = vmatpush1.bf16.msra.mxu0 %v1821
  %3073 = vmatprep.subr.bf16.mxu0 %v1814
  %3074 = vmatpush1.bf16.msra.mxu0 %v1813
  %3075 = vmatprep.subr.bf16.mxu0 %v1806
  %3076 = vmatpush1.bf16.msra.mxu0 %v1805
  %3077 = vmatprep.subr.bf16.mxu0 %v1798
  %3078 = vmatpush1.bf16.msra.mxu0 %v1797
  %3079 = vmatprep.subr.bf16.mxu0 %v1790
  %3080 = vmatpush1.bf16.msra.mxu0 %v1789
  %3081 = vmatprep.subr.bf16.mxu0 %v1782
  %3082 = vmatpush1.bf16.msra.mxu0 %v1781
  %3083 = vmatprep.subr.bf16.mxu0 %v1774
  %3084 = vmatpush1.bf16.msra.mxu0 %v1773
  %3085 = vmatprep.subr.bf16.mxu0 %v1766
  %3086 = vmatpush1.bf16.msra.mxu0 %v1765
  %3087 = vmatprep.subr.bf16.mxu0 %v1886
  %3088 = vmatpush2.bf16.msra.mxu0 %v1885
  %3089 = vmatprep.subr.bf16.mxu0 %v1878
  %3090 = vmatpush2.bf16.msra.mxu0 %v1877
  %3091 = vmatprep.subr.bf16.mxu0 %v1870
  %3092 = vmatpush2.bf16.msra.mxu0 %v1869
  %3093 = vmatprep.subr.bf16.mxu0 %v1862
  %3094 = vmatpush2.bf16.msra.mxu0 %v1861
  %3095 = vmatprep.subr.bf16.mxu0 %v1854
  %3096 = vmatpush2.bf16.msra.mxu0 %v1853
  %3097 = vmatprep.subr.bf16.mxu0 %v1846
  %3098 = vmatpush2.bf16.msra.mxu0 %v1845
  %3099 = vmatprep.subr.bf16.mxu0 %v1838
  %3100 = vmatpush2.bf16.msra.mxu0 %v1837
  %3101 = vmatprep.subr.bf16.mxu0 %v1830
  %3102 = vmatpush2.bf16.msra.mxu0 %v1829
  %3103 = vmatprep.mubr.bf16.mxu0 %v2988
  %3104 = vmatmul.mubr.bf16.gmra.mxu0 %v2987
  %v3105 = vpop.f32.mrf.mxu0
  %v3106 = vadd.f32 0.0, %v3105
  %v3107 = vpop.f32.mrf.mxu0
  %v3108 = vadd.f32 0.0, %v3107
  %v3109 = vpop.f32.mrf.mxu0
  %v3110 = vpop.f32.mrf.mxu0
  %3111 = vdwg.mxu0
  %3112 = vmatprep.subr.bf16.mxu0 %v1824
  %3113 = vmatpush1.bf16.msra.mxu0 %v1823
  %3114 = vmatprep.subr.bf16.mxu0 %v1816
  %3115 = vmatpush1.bf16.msra.mxu0 %v1815
  %3116 = vmatprep.subr.bf16.mxu0 %v1808
  %3117 = vmatpush1.bf16.msra.mxu0 %v1807
  %3118 = vmatprep.subr.bf16.mxu0 %v1800
  %3119 = vmatpush1.bf16.msra.mxu0 %v1799
  %3120 = vmatprep.subr.bf16.mxu0 %v1792
  %3121 = vmatpush1.bf16.msra.mxu0 %v1791
  %3122 = vmatprep.subr.bf16.mxu0 %v1784
  %3123 = vmatpush1.bf16.msra.mxu0 %v1783
  %3124 = vmatprep.subr.bf16.mxu0 %v1776
  %3125 = vmatpush1.bf16.msra.mxu0 %v1775
  %3126 = vmatprep.subr.bf16.mxu0 %v1768
  %3127 = vmatpush1.bf16.msra.mxu0 %v1767
  %3128 = vmatprep.subr.bf16.mxu0 %v1888
  %3129 = vmatpush2.bf16.msra.mxu0 %v1887
  %3130 = vmatprep.subr.bf16.mxu0 %v1880
  %3131 = vmatpush2.bf16.msra.mxu0 %v1879
  %3132 = vmatprep.subr.bf16.mxu0 %v1872
  %3133 = vmatpush2.bf16.msra.mxu0 %v1871
  %3134 = vmatprep.subr.bf16.mxu0 %v1864
  %3135 = vmatpush2.bf16.msra.mxu0 %v1863
  %3136 = vmatprep.subr.bf16.mxu0 %v1856
  %3137 = vmatpush2.bf16.msra.mxu0 %v1855
  %3138 = vmatprep.subr.bf16.mxu0 %v1848
  %3139 = vmatpush2.bf16.msra.mxu0 %v1847
  %3140 = vmatprep.subr.bf16.mxu0 %v1840
  %3141 = vmatpush2.bf16.msra.mxu0 %v1839
  %3142 = vmatprep.subr.bf16.mxu0 %v1832
  %3143 = vmatpush2.bf16.msra.mxu0 %v1831
  %3144 = vmatprep.mubr.bf16.mxu0 %v2988
  %3145 = vmatmul.mubr.bf16.gmra.mxu0 %v2987
  %v3146 = vpop.f32.mrf.mxu0
  %v3147 = vadd.f32 0.0, %v3146
  %v3148 = vpop.f32.mrf.mxu0
  %v3149 = vadd.f32 0.0, %v3148
  %v3150 = vpop.f32.mrf.mxu0
  %v3151 = vpop.f32.mrf.mxu0
  %3152 = vdwg.mxu0
  %v3153 = vadd.f32 %v2979, %v3024
  %v3154 = vadd.f32 %v2980, %v3026
  %v3155 = vadd.f32 %v2981, %v3065
  %v3156 = vadd.f32 %v2982, %v3067
  %v3157 = vadd.f32 %v2983, %v3106
  %v3158 = vadd.f32 %v2984, %v3108
  %v3159 = vadd.f32 %v2985, %v3147
  %v3160 = vadd.f32 %v2986, %v3149
  %v3161 = vxor.u32 %v3153, 2147483648
  %v3162 = vxor.u32 %v3154, 2147483648
  %v3163 = vmul.f32 %v3161, 1.442695
  %v3164 = vpow.pop %v3163
  %v3165 = vmul.f32 %v3162, 1.442695
  %v3166 = vpow.pop %v3165
  %v3167 = vadd.f32 %v3164, 1.0
  %v3168 = vadd.f32 %v3166, 1.0
  %v3169 = vrcp.pop %v3167
  %v3170 = vmul.f32 1.0, %v3169
  %v3171 = vrcp.pop %v3168
  %v3172 = vmul.f32 1.0, %v3171
  %v3173 = vxor.u32 %v3155, 2147483648
  %v3174 = vxor.u32 %v3156, 2147483648
  %v3175 = vmul.f32 %v3173, 1.442695
  %v3176 = vpow.pop %v3175
  %v3177 = vmul.f32 %v3174, 1.442695
  %v3178 = vpow.pop %v3177
  %v3179 = vadd.f32 %v3176, 1.0
  %v3180 = vadd.f32 %v3178, 1.0
  %v3181 = vrcp.pop %v3179
  %v3182 = vmul.f32 1.0, %v3181
  %v3183 = vrcp.pop %v3180
  %v3184 = vmul.f32 1.0, %v3183
  %v3185 = vtanh.pop %v3157
  %v3186 = vtanh.pop %v3158
  %v3187 = vxor.u32 %v3159, 2147483648
  %v3188 = vxor.u32 %v3160, 2147483648
  %v3189 = vmul.f32 %v3187, 1.442695
  %v3190 = vpow.pop %v3189
  %v3191 = vmul.f32 %v3188, 1.442695
  %v3192 = vpow.pop %v3191
  %v3193 = vadd.f32 %v3190, 1.0
  %v3194 = vadd.f32 %v3192, 1.0
  %v3195 = vrcp.pop %v3193
  %v3196 = vmul.f32 1.0, %v3195
  %v3197 = vrcp.pop %v3194
  %v3198 = vmul.f32 1.0, %v3197
  %v3199 = vmul.f32 %v3182, %v2974
  %v3200 = vmul.f32 %v3184, %v2975
  %v3201 = vmul.f32 %v3170, %v3185
  %v3202 = vmul.f32 %v3172, %v3186
  %v3203 = vadd.f32 %v3199, %v3201
  %v3204 = vadd.f32 %v3200, %v3202
  %v3205 = vtanh.pop %v3203
  %v3206 = vtanh.pop %v3204
  %v3207 = vmul.f32 %v3196, %v3205
  %v3208 = vmul.f32 %v3198, %v3206
  %vm3209 = vcmp.gt.s32.totalorder %v1237, 4
  %v3210 = vsel %vm3209, 1, 0
  %3211 = vset.pattern.permute.xlu0 0
  %3212 = vperm.xlu0 %3211, %v3210
  %v3213 = vpop.permute.xlu0 %3212
  %vm3214 = vcmp.eq.s32.totalorder %v3213, 1
  %v3215 = vsel %vm3214, %v3207, %v2972
  %v3216 = vsel %vm3214, %v3208, %v2973
  %v3217 = vsel %vm3214, %v3203, %v2974
  %v3218 = vsel %vm3214, %v3204, %v2975
  %s3219 = smul.u32 5, 8
  %s3220 = smul.addr %s3219, 8
  %s3221 = scalar_lea.vmem [#allocation2], %s3220
  %v3222 = vld [vmem:[%s3221] sm:$0xff]
  %v3223 = vld [vmem:[%s3221 + $0x8] sm:$0xff]
  %v3224 = vld [vmem:[%s3221 + $0x10] sm:$0xff]
  %v3225 = vld [vmem:[%s3221 + $0x18] sm:$0xff]
  %v3226 = vld [vmem:[%s3221 + $0x20] sm:$0xff]
  %v3227 = vld [vmem:[%s3221 + $0x28] sm:$0xff]
  %v3228 = vld [vmem:[%s3221 + $0x30] sm:$0xff]
  %v3229 = vld [vmem:[%s3221 + $0x38] sm:$0xff]
  %v3230 = vpack.c.bf16 %v3215, %v3215
  %v3231 = vpack.c.bf16 %v3216, %v3216
  %3232 = vmatprep.subr.bf16.mxu0 %v1818
  %3233 = vmatpush1.bf16.msra.mxu0 %v1817
  %3234 = vmatprep.subr.bf16.mxu0 %v1810
  %3235 = vmatpush1.bf16.msra.mxu0 %v1809
  %3236 = vmatprep.subr.bf16.mxu0 %v1802
  %3237 = vmatpush1.bf16.msra.mxu0 %v1801
  %3238 = vmatprep.subr.bf16.mxu0 %v1794
  %3239 = vmatpush1.bf16.msra.mxu0 %v1793
  %3240 = vmatprep.subr.bf16.mxu0 %v1786
  %3241 = vmatpush1.bf16.msra.mxu0 %v1785
  %3242 = vmatprep.subr.bf16.mxu0 %v1778
  %3243 = vmatpush1.bf16.msra.mxu0 %v1777
  %3244 = vmatprep.subr.bf16.mxu0 %v1770
  %3245 = vmatpush1.bf16.msra.mxu0 %v1769
  %3246 = vmatprep.subr.bf16.mxu0 %v1762
  %3247 = vmatpush1.bf16.msra.mxu0 %v1761
  %3248 = vmatprep.subr.bf16.mxu0 %v1882
  %3249 = vmatpush2.bf16.msra.mxu0 %v1881
  %3250 = vmatprep.subr.bf16.mxu0 %v1874
  %3251 = vmatpush2.bf16.msra.mxu0 %v1873
  %3252 = vmatprep.subr.bf16.mxu0 %v1866
  %3253 = vmatpush2.bf16.msra.mxu0 %v1865
  %3254 = vmatprep.subr.bf16.mxu0 %v1858
  %3255 = vmatpush2.bf16.msra.mxu0 %v1857
  %3256 = vmatprep.subr.bf16.mxu0 %v1850
  %3257 = vmatpush2.bf16.msra.mxu0 %v1849
  %3258 = vmatprep.subr.bf16.mxu0 %v1842
  %3259 = vmatpush2.bf16.msra.mxu0 %v1841
  %3260 = vmatprep.subr.bf16.mxu0 %v1834
  %3261 = vmatpush2.bf16.msra.mxu0 %v1833
  %3262 = vmatprep.subr.bf16.mxu0 %v1826
  %3263 = vmatpush2.bf16.msra.mxu0 %v1825
  %3264 = vmatprep.mubr.bf16.mxu0 %v3231
  %3265 = vmatmul.mubr.bf16.gmra.mxu0 %v3230
  %v3266 = vpop.f32.mrf.mxu0
  %v3267 = vadd.f32 0.0, %v3266
  %v3268 = vpop.f32.mrf.mxu0
  %v3269 = vadd.f32 0.0, %v3268
  %v3270 = vpop.f32.mrf.mxu0
  %v3271 = vpop.f32.mrf.mxu0
  %3272 = vdwg.mxu0
  %3273 = vmatprep.subr.bf16.mxu0 %v1820
  %3274 = vmatpush1.bf16.msra.mxu0 %v1819
  %3275 = vmatprep.subr.bf16.mxu0 %v1812
  %3276 = vmatpush1.bf16.msra.mxu0 %v1811
  %3277 = vmatprep.subr.bf16.mxu0 %v1804
  %3278 = vmatpush1.bf16.msra.mxu0 %v1803
  %3279 = vmatprep.subr.bf16.mxu0 %v1796
  %3280 = vmatpush1.bf16.msra.mxu0 %v1795
  %3281 = vmatprep.subr.bf16.mxu0 %v1788
  %3282 = vmatpush1.bf16.msra.mxu0 %v1787
  %3283 = vmatprep.subr.bf16.mxu0 %v1780
  %3284 = vmatpush1.bf16.msra.mxu0 %v1779
  %3285 = vmatprep.subr.bf16.mxu0 %v1772
  %3286 = vmatpush1.bf16.msra.mxu0 %v1771
  %3287 = vmatprep.subr.bf16.mxu0 %v1764
  %3288 = vmatpush1.bf16.msra.mxu0 %v1763
  %3289 = vmatprep.subr.bf16.mxu0 %v1884
  %3290 = vmatpush2.bf16.msra.mxu0 %v1883
  %3291 = vmatprep.subr.bf16.mxu0 %v1876
  %3292 = vmatpush2.bf16.msra.mxu0 %v1875
  %3293 = vmatprep.subr.bf16.mxu0 %v1868
  %3294 = vmatpush2.bf16.msra.mxu0 %v1867
  %3295 = vmatprep.subr.bf16.mxu0 %v1860
  %3296 = vmatpush2.bf16.msra.mxu0 %v1859
  %3297 = vmatprep.subr.bf16.mxu0 %v1852
  %3298 = vmatpush2.bf16.msra.mxu0 %v1851
  %3299 = vmatprep.subr.bf16.mxu0 %v1844
  %3300 = vmatpush2.bf16.msra.mxu0 %v1843
  %3301 = vmatprep.subr.bf16.mxu0 %v1836
  %3302 = vmatpush2.bf16.msra.mxu0 %v1835
  %3303 = vmatprep.subr.bf16.mxu0 %v1828
  %3304 = vmatpush2.bf16.msra.mxu0 %v1827
  %3305 = vmatprep.mubr.bf16.mxu0 %v3231
  %3306 = vmatmul.mubr.bf16.gmra.mxu0 %v3230
  %v3307 = vpop.f32.mrf.mxu0
  %v3308 = vadd.f32 0.0, %v3307
  %v3309 = vpop.f32.mrf.mxu0
  %v3310 = vadd.f32 0.0, %v3309
  %v3311 = vpop.f32.mrf.mxu0
  %v3312 = vpop.f32.mrf.mxu0
  %3313 = vdwg.mxu0
  %3314 = vmatprep.subr.bf16.mxu0 %v1822
  %3315 = vmatpush1.bf16.msra.mxu0 %v1821
  %3316 = vmatprep.subr.bf16.mxu0 %v1814
  %3317 = vmatpush1.bf16.msra.mxu0 %v1813
  %3318 = vmatprep.subr.bf16.mxu0 %v1806
  %3319 = vmatpush1.bf16.msra.mxu0 %v1805
  %3320 = vmatprep.subr.bf16.mxu0 %v1798
  %3321 = vmatpush1.bf16.msra.mxu0 %v1797
  %3322 = vmatprep.subr.bf16.mxu0 %v1790
  %3323 = vmatpush1.bf16.msra.mxu0 %v1789
  %3324 = vmatprep.subr.bf16.mxu0 %v1782
  %3325 = vmatpush1.bf16.msra.mxu0 %v1781
  %3326 = vmatprep.subr.bf16.mxu0 %v1774
  %3327 = vmatpush1.bf16.msra.mxu0 %v1773
  %3328 = vmatprep.subr.bf16.mxu0 %v1766
  %3329 = vmatpush1.bf16.msra.mxu0 %v1765
  %3330 = vmatprep.subr.bf16.mxu0 %v1886
  %3331 = vmatpush2.bf16.msra.mxu0 %v1885
  %3332 = vmatprep.subr.bf16.mxu0 %v1878
  %3333 = vmatpush2.bf16.msra.mxu0 %v1877
  %3334 = vmatprep.subr.bf16.mxu0 %v1870
  %3335 = vmatpush2.bf16.msra.mxu0 %v1869
  %3336 = vmatprep.subr.bf16.mxu0 %v1862
  %3337 = vmatpush2.bf16.msra.mxu0 %v1861
  %3338 = vmatprep.subr.bf16.mxu0 %v1854
  %3339 = vmatpush2.bf16.msra.mxu0 %v1853
  %3340 = vmatprep.subr.bf16.mxu0 %v1846
  %3341 = vmatpush2.bf16.msra.mxu0 %v1845
  %3342 = vmatprep.subr.bf16.mxu0 %v1838
  %3343 = vmatpush2.bf16.msra.mxu0 %v1837
  %3344 = vmatprep.subr.bf16.mxu0 %v1830
  %3345 = vmatpush2.bf16.msra.mxu0 %v1829
  %3346 = vmatprep.mubr.bf16.mxu0 %v3231
  %3347 = vmatmul.mubr.bf16.gmra.mxu0 %v3230
  %v3348 = vpop.f32.mrf.mxu0
  %v3349 = vadd.f32 0.0, %v3348
  %v3350 = vpop.f32.mrf.mxu0
  %v3351 = vadd.f32 0.0, %v3350
  %v3352 = vpop.f32.mrf.mxu0
  %v3353 = vpop.f32.mrf.mxu0
  %3354 = vdwg.mxu0
  %3355 = vmatprep.subr.bf16.mxu0 %v1824
  %3356 = vmatpush1.bf16.msra.mxu0 %v1823
  %3357 = vmatprep.subr.bf16.mxu0 %v1816
  %3358 = vmatpush1.bf16.msra.mxu0 %v1815
  %3359 = vmatprep.subr.bf16.mxu0 %v1808
  %3360 = vmatpush1.bf16.msra.mxu0 %v1807
  %3361 = vmatprep.subr.bf16.mxu0 %v1800
  %3362 = vmatpush1.bf16.msra.mxu0 %v1799
  %3363 = vmatprep.subr.bf16.mxu0 %v1792
  %3364 = vmatpush1.bf16.msra.mxu0 %v1791
  %3365 = vmatprep.subr.bf16.mxu0 %v1784
  %3366 = vmatpush1.bf16.msra.mxu0 %v1783
  %3367 = vmatprep.subr.bf16.mxu0 %v1776
  %3368 = vmatpush1.bf16.msra.mxu0 %v1775
  %3369 = vmatprep.subr.bf16.mxu0 %v1768
  %3370 = vmatpush1.bf16.msra.mxu0 %v1767
  %3371 = vmatprep.subr.bf16.mxu0 %v1888
  %3372 = vmatpush2.bf16.msra.mxu0 %v1887
  %3373 = vmatprep.subr.bf16.mxu0 %v1880
  %3374 = vmatpush2.bf16.msra.mxu0 %v1879
  %3375 = vmatprep.subr.bf16.mxu0 %v1872
  %3376 = vmatpush2.bf16.msra.mxu0 %v1871
  %3377 = vmatprep.subr.bf16.mxu0 %v1864
  %3378 = vmatpush2.bf16.msra.mxu0 %v1863
  %3379 = vmatprep.subr.bf16.mxu0 %v1856
  %3380 = vmatpush2.bf16.msra.mxu0 %v1855
  %3381 = vmatprep.subr.bf16.mxu0 %v1848
  %3382 = vmatpush2.bf16.msra.mxu0 %v1847
  %3383 = vmatprep.subr.bf16.mxu0 %v1840
  %3384 = vmatpush2.bf16.msra.mxu0 %v1839
  %3385 = vmatprep.subr.bf16.mxu0 %v1832
  %3386 = vmatpush2.bf16.msra.mxu0 %v1831
  %3387 = vmatprep.mubr.bf16.mxu0 %v3231
  %3388 = vmatmul.mubr.bf16.gmra.mxu0 %v3230
  %v3389 = vpop.f32.mrf.mxu0
  %v3390 = vadd.f32 0.0, %v3389
  %v3391 = vpop.f32.mrf.mxu0
  %v3392 = vadd.f32 0.0, %v3391
  %v3393 = vpop.f32.mrf.mxu0
  %v3394 = vpop.f32.mrf.mxu0
  %3395 = vdwg.mxu0
  %v3396 = vadd.f32 %v3222, %v3267
  %v3397 = vadd.f32 %v3223, %v3269
  %v3398 = vadd.f32 %v3224, %v3308
  %v3399 = vadd.f32 %v3225, %v3310
  %v3400 = vadd.f32 %v3226, %v3349
  %v3401 = vadd.f32 %v3227, %v3351
  %v3402 = vadd.f32 %v3228, %v3390
  %v3403 = vadd.f32 %v3229, %v3392
  %v3404 = vxor.u32 %v3396, 2147483648
  %v3405 = vxor.u32 %v3397, 2147483648
  %v3406 = vmul.f32 %v3404, 1.442695
  %v3407 = vpow.pop %v3406
  %v3408 = vmul.f32 %v3405, 1.442695
  %v3409 = vpow.pop %v3408
  %v3410 = vadd.f32 %v3407, 1.0
  %v3411 = vadd.f32 %v3409, 1.0
  %v3412 = vrcp.pop %v3410
  %v3413 = vmul.f32 1.0, %v3412
  %v3414 = vrcp.pop %v3411
  %v3415 = vmul.f32 1.0, %v3414
  %v3416 = vxor.u32 %v3398, 2147483648
  %v3417 = vxor.u32 %v3399, 2147483648
  %v3418 = vmul.f32 %v3416, 1.442695
  %v3419 = vpow.pop %v3418
  %v3420 = vmul.f32 %v3417, 1.442695
  %v3421 = vpow.pop %v3420
  %v3422 = vadd.f32 %v3419, 1.0
  %v3423 = vadd.f32 %v3421, 1.0
  %v3424 = vrcp.pop %v3422
  %v3425 = vmul.f32 1.0, %v3424
  %v3426 = vrcp.pop %v3423
  %v3427 = vmul.f32 1.0, %v3426
  %v3428 = vtanh.pop %v3400
  %v3429 = vtanh.pop %v3401
  %v3430 = vxor.u32 %v3402, 2147483648
  %v3431 = vxor.u32 %v3403, 2147483648
  %v3432 = vmul.f32 %v3430, 1.442695
  %v3433 = vpow.pop %v3432
  %v3434 = vmul.f32 %v3431, 1.442695
  %v3435 = vpow.pop %v3434
  %v3436 = vadd.f32 %v3433, 1.0
  %v3437 = vadd.f32 %v3435, 1.0
  %v3438 = vrcp.pop %v3436
  %v3439 = vmul.f32 1.0, %v3438
  %v3440 = vrcp.pop %v3437
  %v3441 = vmul.f32 1.0, %v3440
  %v3442 = vmul.f32 %v3425, %v3217
  %v3443 = vmul.f32 %v3427, %v3218
  %v3444 = vmul.f32 %v3413, %v3428
  %v3445 = vmul.f32 %v3415, %v3429
  %v3446 = vadd.f32 %v3442, %v3444
  %v3447 = vadd.f32 %v3443, %v3445
  %v3448 = vtanh.pop %v3446
  %v3449 = vtanh.pop %v3447
  %v3450 = vmul.f32 %v3439, %v3448
  %v3451 = vmul.f32 %v3441, %v3449
  %vm3452 = vcmp.gt.s32.totalorder %v1237, 5
  %v3453 = vsel %vm3452, 1, 0
  %3454 = vset.pattern.permute.xlu0 0
  %3455 = vperm.xlu0 %3454, %v3453
  %v3456 = vpop.permute.xlu0 %3455
  %vm3457 = vcmp.eq.s32.totalorder %v3456, 1
  %v3458 = vsel %vm3457, %v3450, %v3215
  %v3459 = vsel %vm3457, %v3451, %v3216
  %v3460 = vsel %vm3457, %v3446, %v3217
  %v3461 = vsel %vm3457, %v3447, %v3218
  %s3462 = smul.u32 6, 8
  %s3463 = smul.addr %s3462, 8
  %s3464 = scalar_lea.vmem [#allocation2], %s3463
  %v3465 = vld [vmem:[%s3464] sm:$0xff]
  %v3466 = vld [vmem:[%s3464 + $0x8] sm:$0xff]
  %v3467 = vld [vmem:[%s3464 + $0x10] sm:$0xff]
  %v3468 = vld [vmem:[%s3464 + $0x18] sm:$0xff]
  %v3469 = vld [vmem:[%s3464 + $0x20] sm:$0xff]
  %v3470 = vld [vmem:[%s3464 + $0x28] sm:$0xff]
  %v3471 = vld [vmem:[%s3464 + $0x30] sm:$0xff]
  %v3472 = vld [vmem:[%s3464 + $0x38] sm:$0xff]
  %v3473 = vpack.c.bf16 %v3458, %v3458
  %v3474 = vpack.c.bf16 %v3459, %v3459
  %3475 = vmatprep.subr.bf16.mxu0 %v1818
  %3476 = vmatpush1.bf16.msra.mxu0 %v1817
  %3477 = vmatprep.subr.bf16.mxu0 %v1810
  %3478 = vmatpush1.bf16.msra.mxu0 %v1809
  %3479 = vmatprep.subr.bf16.mxu0 %v1802
  %3480 = vmatpush1.bf16.msra.mxu0 %v1801
  %3481 = vmatprep.subr.bf16.mxu0 %v1794
  %3482 = vmatpush1.bf16.msra.mxu0 %v1793
  %3483 = vmatprep.subr.bf16.mxu0 %v1786
  %3484 = vmatpush1.bf16.msra.mxu0 %v1785
  %3485 = vmatprep.subr.bf16.mxu0 %v1778
  %3486 = vmatpush1.bf16.msra.mxu0 %v1777
  %3487 = vmatprep.subr.bf16.mxu0 %v1770
  %3488 = vmatpush1.bf16.msra.mxu0 %v1769
  %3489 = vmatprep.subr.bf16.mxu0 %v1762
  %3490 = vmatpush1.bf16.msra.mxu0 %v1761
  %3491 = vmatprep.subr.bf16.mxu0 %v1882
  %3492 = vmatpush2.bf16.msra.mxu0 %v1881
  %3493 = vmatprep.subr.bf16.mxu0 %v1874
  %3494 = vmatpush2.bf16.msra.mxu0 %v1873
  %3495 = vmatprep.subr.bf16.mxu0 %v1866
  %3496 = vmatpush2.bf16.msra.mxu0 %v1865
  %3497 = vmatprep.subr.bf16.mxu0 %v1858
  %3498 = vmatpush2.bf16.msra.mxu0 %v1857
  %3499 = vmatprep.subr.bf16.mxu0 %v1850
  %3500 = vmatpush2.bf16.msra.mxu0 %v1849
  %3501 = vmatprep.subr.bf16.mxu0 %v1842
  %3502 = vmatpush2.bf16.msra.mxu0 %v1841
  %3503 = vmatprep.subr.bf16.mxu0 %v1834
  %3504 = vmatpush2.bf16.msra.mxu0 %v1833
  %3505 = vmatprep.subr.bf16.mxu0 %v1826
  %3506 = vmatpush2.bf16.msra.mxu0 %v1825
  %3507 = vmatprep.mubr.bf16.mxu0 %v3474
  %3508 = vmatmul.mubr.bf16.gmra.mxu0 %v3473
  %v3509 = vpop.f32.mrf.mxu0
  %v3510 = vadd.f32 0.0, %v3509
  %v3511 = vpop.f32.mrf.mxu0
  %v3512 = vadd.f32 0.0, %v3511
  %v3513 = vpop.f32.mrf.mxu0
  %v3514 = vpop.f32.mrf.mxu0
  %3515 = vdwg.mxu0
  %3516 = vmatprep.subr.bf16.mxu0 %v1820
  %3517 = vmatpush1.bf16.msra.mxu0 %v1819
  %3518 = vmatprep.subr.bf16.mxu0 %v1812
  %3519 = vmatpush1.bf16.msra.mxu0 %v1811
  %3520 = vmatprep.subr.bf16.mxu0 %v1804
  %3521 = vmatpush1.bf16.msra.mxu0 %v1803
  %3522 = vmatprep.subr.bf16.mxu0 %v1796
  %3523 = vmatpush1.bf16.msra.mxu0 %v1795
  %3524 = vmatprep.subr.bf16.mxu0 %v1788
  %3525 = vmatpush1.bf16.msra.mxu0 %v1787
  %3526 = vmatprep.subr.bf16.mxu0 %v1780
  %3527 = vmatpush1.bf16.msra.mxu0 %v1779
  %3528 = vmatprep.subr.bf16.mxu0 %v1772
  %3529 = vmatpush1.bf16.msra.mxu0 %v1771
  %3530 = vmatprep.subr.bf16.mxu0 %v1764
  %3531 = vmatpush1.bf16.msra.mxu0 %v1763
  %3532 = vmatprep.subr.bf16.mxu0 %v1884
  %3533 = vmatpush2.bf16.msra.mxu0 %v1883
  %3534 = vmatprep.subr.bf16.mxu0 %v1876
  %3535 = vmatpush2.bf16.msra.mxu0 %v1875
  %3536 = vmatprep.subr.bf16.mxu0 %v1868
  %3537 = vmatpush2.bf16.msra.mxu0 %v1867
  %3538 = vmatprep.subr.bf16.mxu0 %v1860
  %3539 = vmatpush2.bf16.msra.mxu0 %v1859
  %3540 = vmatprep.subr.bf16.mxu0 %v1852
  %3541 = vmatpush2.bf16.msra.mxu0 %v1851
  %3542 = vmatprep.subr.bf16.mxu0 %v1844
  %3543 = vmatpush2.bf16.msra.mxu0 %v1843
  %3544 = vmatprep.subr.bf16.mxu0 %v1836
  %3545 = vmatpush2.bf16.msra.mxu0 %v1835
  %3546 = vmatprep.subr.bf16.mxu0 %v1828
  %3547 = vmatpush2.bf16.msra.mxu0 %v1827
  %3548 = vmatprep.mubr.bf16.mxu0 %v3474
  %3549 = vmatmul.mubr.bf16.gmra.mxu0 %v3473
  %v3550 = vpop.f32.mrf.mxu0
  %v3551 = vadd.f32 0.0, %v3550
  %v3552 = vpop.f32.mrf.mxu0
  %v3553 = vadd.f32 0.0, %v3552
  %v3554 = vpop.f32.mrf.mxu0
  %v3555 = vpop.f32.mrf.mxu0
  %3556 = vdwg.mxu0
  %3557 = vmatprep.subr.bf16.mxu0 %v1822
  %3558 = vmatpush1.bf16.msra.mxu0 %v1821
  %3559 = vmatprep.subr.bf16.mxu0 %v1814
  %3560 = vmatpush1.bf16.msra.mxu0 %v1813
  %3561 = vmatprep.subr.bf16.mxu0 %v1806
  %3562 = vmatpush1.bf16.msra.mxu0 %v1805
  %3563 = vmatprep.subr.bf16.mxu0 %v1798
  %3564 = vmatpush1.bf16.msra.mxu0 %v1797
  %3565 = vmatprep.subr.bf16.mxu0 %v1790
  %3566 = vmatpush1.bf16.msra.mxu0 %v1789
  %3567 = vmatprep.subr.bf16.mxu0 %v1782
  %3568 = vmatpush1.bf16.msra.mxu0 %v1781
  %3569 = vmatprep.subr.bf16.mxu0 %v1774
  %3570 = vmatpush1.bf16.msra.mxu0 %v1773
  %3571 = vmatprep.subr.bf16.mxu0 %v1766
  %3572 = vmatpush1.bf16.msra.mxu0 %v1765
  %3573 = vmatprep.subr.bf16.mxu0 %v1886
  %3574 = vmatpush2.bf16.msra.mxu0 %v1885
  %3575 = vmatprep.subr.bf16.mxu0 %v1878
  %3576 = vmatpush2.bf16.msra.mxu0 %v1877
  %3577 = vmatprep.subr.bf16.mxu0 %v1870
  %3578 = vmatpush2.bf16.msra.mxu0 %v1869
  %3579 = vmatprep.subr.bf16.mxu0 %v1862
  %3580 = vmatpush2.bf16.msra.mxu0 %v1861
  %3581 = vmatprep.subr.bf16.mxu0 %v1854
  %3582 = vmatpush2.bf16.msra.mxu0 %v1853
  %3583 = vmatprep.subr.bf16.mxu0 %v1846
  %3584 = vmatpush2.bf16.msra.mxu0 %v1845
  %3585 = vmatprep.subr.bf16.mxu0 %v1838
  %3586 = vmatpush2.bf16.msra.mxu0 %v1837
  %3587 = vmatprep.subr.bf16.mxu0 %v1830
  %3588 = vmatpush2.bf16.msra.mxu0 %v1829
  %3589 = vmatprep.mubr.bf16.mxu0 %v3474
  %3590 = vmatmul.mubr.bf16.gmra.mxu0 %v3473
  %v3591 = vpop.f32.mrf.mxu0
  %v3592 = vadd.f32 0.0, %v3591
  %v3593 = vpop.f32.mrf.mxu0
  %v3594 = vadd.f32 0.0, %v3593
  %v3595 = vpop.f32.mrf.mxu0
  %v3596 = vpop.f32.mrf.mxu0
  %3597 = vdwg.mxu0
  %3598 = vmatprep.subr.bf16.mxu0 %v1824
  %3599 = vmatpush1.bf16.msra.mxu0 %v1823
  %3600 = vmatprep.subr.bf16.mxu0 %v1816
  %3601 = vmatpush1.bf16.msra.mxu0 %v1815
  %3602 = vmatprep.subr.bf16.mxu0 %v1808
  %3603 = vmatpush1.bf16.msra.mxu0 %v1807
  %3604 = vmatprep.subr.bf16.mxu0 %v1800
  %3605 = vmatpush1.bf16.msra.mxu0 %v1799
  %3606 = vmatprep.subr.bf16.mxu0 %v1792
  %3607 = vmatpush1.bf16.msra.mxu0 %v1791
  %3608 = vmatprep.subr.bf16.mxu0 %v1784
  %3609 = vmatpush1.bf16.msra.mxu0 %v1783
  %3610 = vmatprep.subr.bf16.mxu0 %v1776
  %3611 = vmatpush1.bf16.msra.mxu0 %v1775
  %3612 = vmatprep.subr.bf16.mxu0 %v1768
  %3613 = vmatpush1.bf16.msra.mxu0 %v1767
  %3614 = vmatprep.subr.bf16.mxu0 %v1888
  %3615 = vmatpush2.bf16.msra.mxu0 %v1887
  %3616 = vmatprep.subr.bf16.mxu0 %v1880
  %3617 = vmatpush2.bf16.msra.mxu0 %v1879
  %3618 = vmatprep.subr.bf16.mxu0 %v1872
  %3619 = vmatpush2.bf16.msra.mxu0 %v1871
  %3620 = vmatprep.subr.bf16.mxu0 %v1864
  %3621 = vmatpush2.bf16.msra.mxu0 %v1863
  %3622 = vmatprep.subr.bf16.mxu0 %v1856
  %3623 = vmatpush2.bf16.msra.mxu0 %v1855
  %3624 = vmatprep.subr.bf16.mxu0 %v1848
  %3625 = vmatpush2.bf16.msra.mxu0 %v1847
  %3626 = vmatprep.subr.bf16.mxu0 %v1840
  %3627 = vmatpush2.bf16.msra.mxu0 %v1839
  %3628 = vmatprep.subr.bf16.mxu0 %v1832
  %3629 = vmatpush2.bf16.msra.mxu0 %v1831
  %3630 = vmatprep.mubr.bf16.mxu0 %v3474
  %3631 = vmatmul.mubr.bf16.gmra.mxu0 %v3473
  %v3632 = vpop.f32.mrf.mxu0
  %v3633 = vadd.f32 0.0, %v3632
  %v3634 = vpop.f32.mrf.mxu0
  %v3635 = vadd.f32 0.0, %v3634
  %v3636 = vpop.f32.mrf.mxu0
  %v3637 = vpop.f32.mrf.mxu0
  %3638 = vdwg.mxu0
  %v3639 = vadd.f32 %v3465, %v3510
  %v3640 = vadd.f32 %v3466, %v3512
  %v3641 = vadd.f32 %v3467, %v3551
  %v3642 = vadd.f32 %v3468, %v3553
  %v3643 = vadd.f32 %v3469, %v3592
  %v3644 = vadd.f32 %v3470, %v3594
  %v3645 = vadd.f32 %v3471, %v3633
  %v3646 = vadd.f32 %v3472, %v3635
  %v3647 = vxor.u32 %v3639, 2147483648
  %v3648 = vxor.u32 %v3640, 2147483648
  %v3649 = vmul.f32 %v3647, 1.442695
  %v3650 = vpow.pop %v3649
  %v3651 = vmul.f32 %v3648, 1.442695
  %v3652 = vpow.pop %v3651
  %v3653 = vadd.f32 %v3650, 1.0
  %v3654 = vadd.f32 %v3652, 1.0
  %v3655 = vrcp.pop %v3653
  %v3656 = vmul.f32 1.0, %v3655
  %v3657 = vrcp.pop %v3654
  %v3658 = vmul.f32 1.0, %v3657
  %v3659 = vxor.u32 %v3641, 2147483648
  %v3660 = vxor.u32 %v3642, 2147483648
  %v3661 = vmul.f32 %v3659, 1.442695
  %v3662 = vpow.pop %v3661
  %v3663 = vmul.f32 %v3660, 1.442695
  %v3664 = vpow.pop %v3663
  %v3665 = vadd.f32 %v3662, 1.0
  %v3666 = vadd.f32 %v3664, 1.0
  %v3667 = vrcp.pop %v3665
  %v3668 = vmul.f32 1.0, %v3667
  %v3669 = vrcp.pop %v3666
  %v3670 = vmul.f32 1.0, %v3669
  %v3671 = vtanh.pop %v3643
  %v3672 = vtanh.pop %v3644
  %v3673 = vxor.u32 %v3645, 2147483648
  %v3674 = vxor.u32 %v3646, 2147483648
  %v3675 = vmul.f32 %v3673, 1.442695
  %v3676 = vpow.pop %v3675
  %v3677 = vmul.f32 %v3674, 1.442695
  %v3678 = vpow.pop %v3677
  %v3679 = vadd.f32 %v3676, 1.0
  %v3680 = vadd.f32 %v3678, 1.0
  %v3681 = vrcp.pop %v3679
  %v3682 = vmul.f32 1.0, %v3681
  %v3683 = vrcp.pop %v3680
  %v3684 = vmul.f32 1.0, %v3683
  %v3685 = vmul.f32 %v3668, %v3460
  %v3686 = vmul.f32 %v3670, %v3461
  %v3687 = vmul.f32 %v3656, %v3671
  %v3688 = vmul.f32 %v3658, %v3672
  %v3689 = vadd.f32 %v3685, %v3687
  %v3690 = vadd.f32 %v3686, %v3688
  %v3691 = vtanh.pop %v3689
  %v3692 = vtanh.pop %v3690
  %v3693 = vmul.f32 %v3682, %v3691
  %v3694 = vmul.f32 %v3684, %v3692
  %vm3695 = vcmp.gt.s32.totalorder %v1237, 6
  %v3696 = vsel %vm3695, 1, 0
  %3697 = vset.pattern.permute.xlu0 0
  %3698 = vperm.xlu0 %3697, %v3696
  %v3699 = vpop.permute.xlu0 %3698
  %vm3700 = vcmp.eq.s32.totalorder %v3699, 1
  %v3701 = vsel %vm3700, %v3693, %v3458
  %v3702 = vsel %vm3700, %v3694, %v3459
  %v3703 = vsel %vm3700, %v3689, %v3460
  %v3704 = vsel %vm3700, %v3690, %v3461
  %s3705 = smul.u32 7, 8
  %s3706 = smul.addr %s3705, 8
  %s3707 = scalar_lea.vmem [#allocation2], %s3706
  %v3708 = vld [vmem:[%s3707] sm:$0xff]
  %v3709 = vld [vmem:[%s3707 + $0x8] sm:$0xff]
  %v3710 = vld [vmem:[%s3707 + $0x10] sm:$0xff]
  %v3711 = vld [vmem:[%s3707 + $0x18] sm:$0xff]
  %v3712 = vld [vmem:[%s3707 + $0x20] sm:$0xff]
  %v3713 = vld [vmem:[%s3707 + $0x28] sm:$0xff]
  %v3714 = vld [vmem:[%s3707 + $0x30] sm:$0xff]
  %v3715 = vld [vmem:[%s3707 + $0x38] sm:$0xff]
  %v3716 = vpack.c.bf16 %v3701, %v3701
  %v3717 = vpack.c.bf16 %v3702, %v3702
  %3718 = vmatprep.subr.bf16.mxu0 %v1818
  %3719 = vmatpush1.bf16.msra.mxu0 %v1817
  %3720 = vmatprep.subr.bf16.mxu0 %v1810
  %3721 = vmatpush1.bf16.msra.mxu0 %v1809
  %3722 = vmatprep.subr.bf16.mxu0 %v1802
  %3723 = vmatpush1.bf16.msra.mxu0 %v1801
  %3724 = vmatprep.subr.bf16.mxu0 %v1794
  %3725 = vmatpush1.bf16.msra.mxu0 %v1793
  %3726 = vmatprep.subr.bf16.mxu0 %v1786
  %3727 = vmatpush1.bf16.msra.mxu0 %v1785
  %3728 = vmatprep.subr.bf16.mxu0 %v1778
  %3729 = vmatpush1.bf16.msra.mxu0 %v1777
  %3730 = vmatprep.subr.bf16.mxu0 %v1770
  %3731 = vmatpush1.bf16.msra.mxu0 %v1769
  %3732 = vmatprep.subr.bf16.mxu0 %v1762
  %3733 = vmatpush1.bf16.msra.mxu0 %v1761
  %3734 = vmatprep.subr.bf16.mxu0 %v1882
  %3735 = vmatpush2.bf16.msra.mxu0 %v1881
  %3736 = vmatprep.subr.bf16.mxu0 %v1874
  %3737 = vmatpush2.bf16.msra.mxu0 %v1873
  %3738 = vmatprep.subr.bf16.mxu0 %v1866
  %3739 = vmatpush2.bf16.msra.mxu0 %v1865
  %3740 = vmatprep.subr.bf16.mxu0 %v1858
  %3741 = vmatpush2.bf16.msra.mxu0 %v1857
  %3742 = vmatprep.subr.bf16.mxu0 %v1850
  %3743 = vmatpush2.bf16.msra.mxu0 %v1849
  %3744 = vmatprep.subr.bf16.mxu0 %v1842
  %3745 = vmatpush2.bf16.msra.mxu0 %v1841
  %3746 = vmatprep.subr.bf16.mxu0 %v1834
  %3747 = vmatpush2.bf16.msra.mxu0 %v1833
  %3748 = vmatprep.subr.bf16.mxu0 %v1826
  %3749 = vmatpush2.bf16.msra.mxu0 %v1825
  %3750 = vmatprep.mubr.bf16.mxu0 %v3717
  %3751 = vmatmul.mubr.bf16.gmra.mxu0 %v3716
  %v3752 = vpop.f32.mrf.mxu0
  %v3753 = vadd.f32 0.0, %v3752
  %v3754 = vpop.f32.mrf.mxu0
  %v3755 = vadd.f32 0.0, %v3754
  %v3756 = vpop.f32.mrf.mxu0
  %v3757 = vpop.f32.mrf.mxu0
  %3758 = vdwg.mxu0
  %3759 = vmatprep.subr.bf16.mxu0 %v1820
  %3760 = vmatpush1.bf16.msra.mxu0 %v1819
  %3761 = vmatprep.subr.bf16.mxu0 %v1812
  %3762 = vmatpush1.bf16.msra.mxu0 %v1811
  %3763 = vmatprep.subr.bf16.mxu0 %v1804
  %3764 = vmatpush1.bf16.msra.mxu0 %v1803
  %3765 = vmatprep.subr.bf16.mxu0 %v1796
  %3766 = vmatpush1.bf16.msra.mxu0 %v1795
  %3767 = vmatprep.subr.bf16.mxu0 %v1788
  %3768 = vmatpush1.bf16.msra.mxu0 %v1787
  %3769 = vmatprep.subr.bf16.mxu0 %v1780
  %3770 = vmatpush1.bf16.msra.mxu0 %v1779
  %3771 = vmatprep.subr.bf16.mxu0 %v1772
  %3772 = vmatpush1.bf16.msra.mxu0 %v1771
  %3773 = vmatprep.subr.bf16.mxu0 %v1764
  %3774 = vmatpush1.bf16.msra.mxu0 %v1763
  %3775 = vmatprep.subr.bf16.mxu0 %v1884
  %3776 = vmatpush2.bf16.msra.mxu0 %v1883
  %3777 = vmatprep.subr.bf16.mxu0 %v1876
  %3778 = vmatpush2.bf16.msra.mxu0 %v1875
  %3779 = vmatprep.subr.bf16.mxu0 %v1868
  %3780 = vmatpush2.bf16.msra.mxu0 %v1867
  %3781 = vmatprep.subr.bf16.mxu0 %v1860
  %3782 = vmatpush2.bf16.msra.mxu0 %v1859
  %3783 = vmatprep.subr.bf16.mxu0 %v1852
  %3784 = vmatpush2.bf16.msra.mxu0 %v1851
  %3785 = vmatprep.subr.bf16.mxu0 %v1844
  %3786 = vmatpush2.bf16.msra.mxu0 %v1843
  %3787 = vmatprep.subr.bf16.mxu0 %v1836
  %3788 = vmatpush2.bf16.msra.mxu0 %v1835
  %3789 = vmatprep.subr.bf16.mxu0 %v1828
  %3790 = vmatpush2.bf16.msra.mxu0 %v1827
  %3791 = vmatprep.mubr.bf16.mxu0 %v3717
  %3792 = vmatmul.mubr.bf16.gmra.mxu0 %v3716
  %v3793 = vpop.f32.mrf.mxu0
  %v3794 = vadd.f32 0.0, %v3793
  %v3795 = vpop.f32.mrf.mxu0
  %v3796 = vadd.f32 0.0, %v3795
  %v3797 = vpop.f32.mrf.mxu0
  %v3798 = vpop.f32.mrf.mxu0
  %3799 = vdwg.mxu0
  %3800 = vmatprep.subr.bf16.mxu0 %v1822
  %3801 = vmatpush1.bf16.msra.mxu0 %v1821
  %3802 = vmatprep.subr.bf16.mxu0 %v1814
  %3803 = vmatpush1.bf16.msra.mxu0 %v1813
  %3804 = vmatprep.subr.bf16.mxu0 %v1806
  %3805 = vmatpush1.bf16.msra.mxu0 %v1805
  %3806 = vmatprep.subr.bf16.mxu0 %v1798
  %3807 = vmatpush1.bf16.msra.mxu0 %v1797
  %3808 = vmatprep.subr.bf16.mxu0 %v1790
  %3809 = vmatpush1.bf16.msra.mxu0 %v1789
  %3810 = vmatprep.subr.bf16.mxu0 %v1782
  %3811 = vmatpush1.bf16.msra.mxu0 %v1781
  %3812 = vmatprep.subr.bf16.mxu0 %v1774
  %3813 = vmatpush1.bf16.msra.mxu0 %v1773
  %3814 = vmatprep.subr.bf16.mxu0 %v1766
  %3815 = vmatpush1.bf16.msra.mxu0 %v1765
  %3816 = vmatprep.subr.bf16.mxu0 %v1886
  %3817 = vmatpush2.bf16.msra.mxu0 %v1885
  %3818 = vmatprep.subr.bf16.mxu0 %v1878
  %3819 = vmatpush2.bf16.msra.mxu0 %v1877
  %3820 = vmatprep.subr.bf16.mxu0 %v1870
  %3821 = vmatpush2.bf16.msra.mxu0 %v1869
  %3822 = vmatprep.subr.bf16.mxu0 %v1862
  %3823 = vmatpush2.bf16.msra.mxu0 %v1861
  %3824 = vmatprep.subr.bf16.mxu0 %v1854
  %3825 = vmatpush2.bf16.msra.mxu0 %v1853
  %3826 = vmatprep.subr.bf16.mxu0 %v1846
  %3827 = vmatpush2.bf16.msra.mxu0 %v1845
  %3828 = vmatprep.subr.bf16.mxu0 %v1838
  %3829 = vmatpush2.bf16.msra.mxu0 %v1837
  %3830 = vmatprep.subr.bf16.mxu0 %v1830
  %3831 = vmatpush2.bf16.msra.mxu0 %v1829
  %3832 = vmatprep.mubr.bf16.mxu0 %v3717
  %3833 = vmatmul.mubr.bf16.gmra.mxu0 %v3716
  %v3834 = vpop.f32.mrf.mxu0
  %v3835 = vadd.f32 0.0, %v3834
  %v3836 = vpop.f32.mrf.mxu0
  %v3837 = vadd.f32 0.0, %v3836
  %v3838 = vpop.f32.mrf.mxu0
  %v3839 = vpop.f32.mrf.mxu0
  %3840 = vdwg.mxu0
  %3841 = vmatprep.subr.bf16.mxu0 %v1824
  %3842 = vmatpush1.bf16.msra.mxu0 %v1823
  %3843 = vmatprep.subr.bf16.mxu0 %v1816
  %3844 = vmatpush1.bf16.msra.mxu0 %v1815
  %3845 = vmatprep.subr.bf16.mxu0 %v1808
  %3846 = vmatpush1.bf16.msra.mxu0 %v1807
  %3847 = vmatprep.subr.bf16.mxu0 %v1800
  %3848 = vmatpush1.bf16.msra.mxu0 %v1799
  %3849 = vmatprep.subr.bf16.mxu0 %v1792
  %3850 = vmatpush1.bf16.msra.mxu0 %v1791
  %3851 = vmatprep.subr.bf16.mxu0 %v1784
  %3852 = vmatpush1.bf16.msra.mxu0 %v1783
  %3853 = vmatprep.subr.bf16.mxu0 %v1776
  %3854 = vmatpush1.bf16.msra.mxu0 %v1775
  %3855 = vmatprep.subr.bf16.mxu0 %v1768
  %3856 = vmatpush1.bf16.msra.mxu0 %v1767
  %3857 = vmatprep.subr.bf16.mxu0 %v1888
  %3858 = vmatpush2.bf16.msra.mxu0 %v1887
  %3859 = vmatprep.subr.bf16.mxu0 %v1880
  %3860 = vmatpush2.bf16.msra.mxu0 %v1879
  %3861 = vmatprep.subr.bf16.mxu0 %v1872
  %3862 = vmatpush2.bf16.msra.mxu0 %v1871
  %3863 = vmatprep.subr.bf16.mxu0 %v1864
  %3864 = vmatpush2.bf16.msra.mxu0 %v1863
  %3865 = vmatprep.subr.bf16.mxu0 %v1856
  %3866 = vmatpush2.bf16.msra.mxu0 %v1855
  %3867 = vmatprep.subr.bf16.mxu0 %v1848
  %3868 = vmatpush2.bf16.msra.mxu0 %v1847
  %3869 = vmatprep.subr.bf16.mxu0 %v1840
  %3870 = vmatpush2.bf16.msra.mxu0 %v1839
  %3871 = vmatprep.subr.bf16.mxu0 %v1832
  %3872 = vmatpush2.bf16.msra.mxu0 %v1831
  %3873 = vmatprep.mubr.bf16.mxu0 %v3717
  %3874 = vmatmul.mubr.bf16.gmra.mxu0 %v3716
  %v3875 = vpop.f32.mrf.mxu0
  %v3876 = vadd.f32 0.0, %v3875
  %v3877 = vpop.f32.mrf.mxu0
  %v3878 = vadd.f32 0.0, %v3877
  %v3879 = vpop.f32.mrf.mxu0
  %v3880 = vpop.f32.mrf.mxu0
  %3881 = vdwg.mxu0
  %v3882 = vadd.f32 %v3708, %v3753
  %v3883 = vadd.f32 %v3709, %v3755
  %v3884 = vadd.f32 %v3710, %v3794
  %v3885 = vadd.f32 %v3711, %v3796
  %v3886 = vadd.f32 %v3712, %v3835
  %v3887 = vadd.f32 %v3713, %v3837
  %v3888 = vadd.f32 %v3714, %v3876
  %v3889 = vadd.f32 %v3715, %v3878
  %v3890 = vxor.u32 %v3882, 2147483648
  %v3891 = vxor.u32 %v3883, 2147483648
  %v3892 = vmul.f32 %v3890, 1.442695
  %v3893 = vpow.pop %v3892
  %v3894 = vmul.f32 %v3891, 1.442695
  %v3895 = vpow.pop %v3894
  %v3896 = vadd.f32 %v3893, 1.0
  %v3897 = vadd.f32 %v3895, 1.0
  %v3898 = vrcp.pop %v3896
  %v3899 = vmul.f32 1.0, %v3898
  %v3900 = vrcp.pop %v3897
  %v3901 = vmul.f32 1.0, %v3900
  %v3902 = vxor.u32 %v3884, 2147483648
  %v3903 = vxor.u32 %v3885, 2147483648
  %v3904 = vmul.f32 %v3902, 1.442695
  %v3905 = vpow.pop %v3904
  %v3906 = vmul.f32 %v3903, 1.442695
  %v3907 = vpow.pop %v3906
  %v3908 = vadd.f32 %v3905, 1.0
  %v3909 = vadd.f32 %v3907, 1.0
  %v3910 = vrcp.pop %v3908
  %v3911 = vmul.f32 1.0, %v3910
  %v3912 = vrcp.pop %v3909
  %v3913 = vmul.f32 1.0, %v3912
  %v3914 = vtanh.pop %v3886
  %v3915 = vtanh.pop %v3887
  %v3916 = vxor.u32 %v3888, 2147483648
  %v3917 = vxor.u32 %v3889, 2147483648
  %v3918 = vmul.f32 %v3916, 1.442695
  %v3919 = vpow.pop %v3918
  %v3920 = vmul.f32 %v3917, 1.442695
  %v3921 = vpow.pop %v3920
  %v3922 = vadd.f32 %v3919, 1.0
  %v3923 = vadd.f32 %v3921, 1.0
  %v3924 = vrcp.pop %v3922
  %v3925 = vmul.f32 1.0, %v3924
  %v3926 = vrcp.pop %v3923
  %v3927 = vmul.f32 1.0, %v3926
  %v3928 = vmul.f32 %v3911, %v3703
  %v3929 = vmul.f32 %v3913, %v3704
  %v3930 = vmul.f32 %v3899, %v3914
  %v3931 = vmul.f32 %v3901, %v3915
  %v3932 = vadd.f32 %v3928, %v3930
  %v3933 = vadd.f32 %v3929, %v3931
  %v3934 = vtanh.pop %v3932
  %v3935 = vtanh.pop %v3933
  %v3936 = vmul.f32 %v3925, %v3934
  %v3937 = vmul.f32 %v3927, %v3935
  %vm3938 = vcmp.gt.s32.totalorder %v1237, 7
  %v3939 = vsel %vm3938, 1, 0
  %3940 = vset.pattern.permute.xlu0 0
  %3941 = vperm.xlu0 %3940, %v3939
  %v3942 = vpop.permute.xlu0 %3941
  %vm3943 = vcmp.eq.s32.totalorder %v3942, 1
  %v3944 = vsel %vm3943, %v3936, %v3701
  %v3945 = vsel %vm3943, %v3937, %v3702
  %v3946 = vsel %vm3943, %v3932, %v3703
  %v3947 = vsel %vm3943, %v3933, %v3704
  %3948 = vst [vmem:[%s5] sm:$0xff] %v3944
  %3949 = vst [vmem:[%s5 + $0x8] sm:$0xff] %v3945
  %3950 = vst [vmem:[%s6] sm:$0xff] %v3946
  %3951 = vst [vmem:[%s6 + $0x8] sm:$0xff] %v3947
  // Predicated region
  $region22: #{simple_encoder_lstm_forward.1} parent=0 // pred_check
    _
  $region23: #{simple_encoder_lstm_forward.1} parent=0 // pred_check_branch
    %3953 = sbr.rel (0) target = $region25
  $region24: #{simple_encoder_lstm_forward.1} parent=0 // pred_region
    _
  $region25: #{simple_encoder_lstm_forward.1} parent=0 // pred_fallthru
    _
  // Predicated region
  $region26: #{simple_encoder_lstm_forward.1} parent=0 // pred_check
    _
  $region27: #{simple_encoder_lstm_forward.1} parent=0 // pred_check_branch
    %3955 = sbr.rel (0) target = $region29
  $region28: #{simple_encoder_lstm_forward.1} parent=0 // pred_region
    _
  $region29: #{simple_encoder_lstm_forward.1} parent=0 // pred_fallthru
    _
  // Predicated region
  $region30: #{simple_encoder_lstm_forward.1} parent=0 // pred_check
    _
  $region31: #{simple_encoder_lstm_forward.1} parent=0 // pred_check_branch
    %3957 = sbr.rel (0) target = $region33
  $region32: #{simple_encoder_lstm_forward.1} parent=0 // pred_region
    _
  $region33: #{simple_encoder_lstm_forward.1} parent=0 // pred_fallthru
    _
  // Predicated region
  $region34: #{simple_encoder_lstm_forward.1} parent=0 // pred_check
    _
  $region35: #{simple_encoder_lstm_forward.1} parent=0 // pred_check_branch
    %3959 = sbr.rel (0) target = $region37
  $region36: #{simple_encoder_lstm_forward.1} parent=0 // pred_region
    _
  $region37: #{simple_encoder_lstm_forward.1} parent=0 // pred_fallthru
    _

</llo_original>
